<compile_context>
chip_gen: v7x
topology: tpu7x:2x2x1
jax: 0.10.0
libtpu: 0.0.40
codegen_flags: <defaults>
</compile_context>

<pallas_src>
import jax
import jax.numpy as jnp
from jax import lax
from jax.experimental import pallas as pl
from jax.experimental.pallas import tpu as pltpu

_EPS = 1e-5  # nn.BatchNorm3d default eps


# --------------------------------------------------------------------------- #
# helpers
# --------------------------------------------------------------------------- #
def _vmem_limit():
    """Generation-aware scoped-VMEM budget (v7x has 64 MiB, v5e/v6e 128 MiB)."""
    try:
        cap = int(pltpu.get_tpu_info().vmem_capacity_bytes)
    except Exception:
        cap = 64 * 1024 * 1024          # conservative (v7x-safe) fallback
    return int(min(cap * 3 // 4, 96 * 1024 * 1024))


# --------------------------------------------------------------------------- #
# conv3d 3x3x3 (stride 1, pad 1) with in-kernel tap extraction
#   input layout : xp_flat (N, D+2, (H+4)*(W+2), Cin)  bf16, zero padded:
#                  valid voxel (d, h, w) lives at depth d+1, flat row (h+2)*Wp + w
#   output       : h   (N, D, H*Wp, Cout)  bf16   (cols w >= W of each row are garbage)
#                  st  (N, D, 2, Cout)     f32    per-tile (sum, mean-shifted M2)
# --------------------------------------------------------------------------- #
def _conv_pass(xp_flat, w27, colmask, N, D, H, W, vmem_limit):
    Wp = W + 2
    Hs = H + 4
    MROW = H * Wp
    Cin = xp_flat.shape[-1]
    Cout = w27.shape[-1]
    n_valid = float(H * W)

    def kernel(mask_ref, x0_ref, x1_ref, x2_ref, w_ref, h_ref, st_ref):
        xs = (x0_ref, x1_ref, x2_ref)
        acc = jnp.zeros((MROW, Cout), jnp.float32)
        # 27 shifted matmuls, all reading the VMEM-resident depth slabs.
        for kd in range(3):
            xr = xs[kd]
            for kh in range(3):
                for kw in range(3):
                    off = (kh + 1) * Wp + (kw - 1)           # static, >= 0
                    t = kd * 9 + kh * 3 + kw
                    acc = acc + jnp.dot(xr[pl.ds(off, MROW), :], w_ref[t],
                                        preferred_element_type=jnp.float32)
        h_ref[...] = acc.astype(h_ref.dtype)

        # Fused BN batch statistics (mean-shifted), garbage columns masked out.
        m = mask_ref[...]                                     # (MROW, 1) f32
        s = jnp.sum(acc * m, axis=0, keepdims=True)           # (1, Cout)
        mean = s * (1.0 / n_valid)
        d = (acc - mean) * m
        st_ref[0:1, :] = s
        st_ref[1:2, :] = jnp.sum(d * d, axis=0, keepdims=True)

    def x_spec(kd):
        return pl.BlockSpec((None, None, Hs * Wp, Cin),
                            lambda n, d, _kd=kd: (n, d + _kd, 0, 0))

    h, st = pl.pallas_call(
        kernel,
        out_shape=(jax.ShapeDtypeStruct((N, D, MROW, Cout), jnp.bfloat16),
                   jax.ShapeDtypeStruct((N, D, 2, Cout), jnp.float32)),
        grid=(N, D),
        in_specs=[
            pl.BlockSpec((MROW, 1), lambda n, d: (0, 0)),           # resident mask
            x_spec(0), x_spec(1), x_spec(2),                        # 3 depth taps
            pl.BlockSpec((27, Cin, Cout), lambda n, d: (0, 0, 0)),  # resident weights
        ],
        out_specs=(
            pl.BlockSpec((None, None, MROW, Cout), lambda n, d: (n, d, 0, 0)),
            pl.BlockSpec((None, None, 2, Cout), lambda n, d: (n, d, 0, 0)),
        ),
        compiler_params=pltpu.CompilerParams(
            dimension_semantics=("parallel", "parallel"),
            vmem_limit_bytes=vmem_limit),
    )(colmask, xp_flat, xp_flat, xp_flat, w27)
    return h, st


def _bn_from_stats(st, gamma, beta, n_per_tile, m_total):
    """Combine per-tile (sum, M2) with Chan's formula -> BN scale/bias."""
    c = st.shape[-1]
    sums = st[..., 0, :].reshape(-1, c)       # (T, C)
    m2s = st[..., 1, :].reshape(-1, c)
    mean_t = sums / n_per_tile
    mean = jnp.sum(sums, axis=0) / m_total
    m2 = jnp.sum(m2s, axis=0) + n_per_tile * jnp.sum((mean_t - mean) ** 2, axis=0)
    var = m2 / m_total                          # biased variance (training-mode BN)
    scale = gamma * lax.rsqrt(var + _EPS)
    bias = beta - mean * scale
    return (scale.reshape(1, 1, -1).astype(jnp.float32),
            bias.reshape(1, 1, -1).astype(jnp.float32))


# --------------------------------------------------------------------------- #
# BN1-apply + ReLU, written bf16 directly into conv2's padded layout
#   in : h  (N, D, H*Wp, C) bf16   out: (N, D+2, H+4, Wp, C) bf16 (zero padded)
# --------------------------------------------------------------------------- #
def _bn_relu_pad(h, colmask3, scale, bias, N, D, H, W, vmem_limit):
    Wp = W + 2
    Hs = H + 4
    C = h.shape[-1]
    h5 = h.reshape(N, D, H, Wp, C)             # free bitcast view

    def kernel(mask_ref, h_ref, s_ref, b_ref, o_ref):
        dd = pl.program_id(1)
        interior = jnp.logical_and(dd >= 1, dd <= D)
        y = jnp.maximum(h_ref[...].astype(jnp.float32) * s_ref[...] + b_ref[...], 0.0)
        keep = jnp.logical_and(mask_ref[...] > 0.5, interior)
        y = jnp.where(keep, y, 0.0).astype(o_ref.dtype)
        zrow = jnp.zeros((2,) + o_ref.shape[1:], o_ref.dtype)
        o_ref[0:2] = zrow                      # top padding rows
        o_ref[2:2 + H] = y                     # interior (garbage cols zeroed)
        o_ref[2 + H:4 + H] = zrow              # bottom padding rows

    return pl.pallas_call(
        kernel,
        out_shape=jax.ShapeDtypeStruct((N, D + 2, Hs, Wp, C), jnp.bfloat16),
        grid=(N, D + 2),
        in_specs=[
            pl.BlockSpec((H, Wp, 1), lambda n, dd: (0, 0, 0)),
            pl.BlockSpec((None, None, H, Wp, C),
                         lambda n, dd: (n, jnp.clip(dd - 1, 0, D - 1), 0, 0, 0)),
            pl.BlockSpec((1, 1, C), lambda n, dd: (0, 0, 0)),
            pl.BlockSpec((1, 1, C), lambda n, dd: (0, 0, 0)),
        ],
        out_specs=pl.BlockSpec((None, None, Hs, Wp, C),
                               lambda n, dd: (n, dd, 0, 0, 0)),
        compiler_params=pltpu.CompilerParams(
            dimension_semantics=("parallel", "parallel"),
            vmem_limit_bytes=vmem_limit),
    )(colmask3, h5, scale, bias)


# --------------------------------------------------------------------------- #
# BN2-apply + identity residual + ReLU (residual read straight from x, f32)
# --------------------------------------------------------------------------- #
def _bn_add_relu(h2, x, scale, bias, N, D, H, W, vmem_limit):
    Wp = W + 2
    C = h2.shape[-1]
    h5 = h2.reshape(N, D, H, Wp, C)

    def kernel(h_ref, x_ref, s_ref, b_ref, o_ref):
        y = h_ref[:, 0:W, :].astype(jnp.float32) * s_ref[...] + b_ref[...]
        o_ref[...] = jnp.maximum(y + x_ref[...], 0.0)

    return pl.pallas_call(
        kernel,
        out_shape=jax.ShapeDtypeStruct((N, D, H, W, C), jnp.float32),
        grid=(N, D),
        in_specs=[
            pl.BlockSpec((None, None, H, Wp, C), lambda n, d: (n, d, 0, 0, 0)),
            pl.BlockSpec((None, None, H, W, C), lambda n, d: (n, d, 0, 0, 0)),
            pl.BlockSpec((1, 1, C), lambda n, d: (0, 0, 0)),
            pl.BlockSpec((1, 1, C), lambda n, d: (0, 0, 0)),
        ],
        out_specs=pl.BlockSpec((None, None, H, W, C), lambda n, d: (n, d, 0, 0, 0)),
        compiler_params=pltpu.CompilerParams(
            dimension_semantics=("parallel", "parallel"),
            vmem_limit_bytes=vmem_limit),
    )(h5, x, scale, bias)


# --------------------------------------------------------------------------- #
# full block
# --------------------------------------------------------------------------- #
def basic_block_3d(x_ndhwc, params):
    """Forward of BasicBlock3D (stride=1, downsample=None, identity residual)."""
    N, D, H, W, in_planes = x_ndhwc.shape
    planes = params["w1"].shape[-1]
    assert in_planes == planes, "identity residual requires in_planes == planes"
    Wp = W + 2
    Hs = H + 4
    MROW = H * Wp
    m_total = N * D * H * W
    vmem_limit = _vmem_limit()

    # Validity mask for the 2 "garbage" columns of each flattened output row.
    col_valid = (jnp.arange(Wp) < W)
    colmask = jnp.tile(col_valid, (H,)).astype(jnp.float32).reshape(MROW, 1)
    colmask3 = colmask.reshape(H, Wp, 1)

    # Weights tap-major (27, Cin, Cout), bf16 (MXU operands).
    w1 = params["w1"].reshape(27, in_planes, planes).astype(jnp.bfloat16)
    w2 = params["w2"].reshape(27, planes, planes).astype(jnp.bfloat16)

    # Pad x once (depth 1/1, rows 2/2, cols 0/2) into the conv-ready bf16
    # layout and flatten the spatial plane (free bitcast reshape).
    xp = jnp.pad(x_ndhwc.astype(jnp.bfloat16),
                 ((0, 0), (1, 1), (2, 2), (0, 2), (0, 0)))
    xp_flat = xp.reshape(N, D + 2, Hs * Wp, in_planes)

    # conv1 (+ fused BN1 batch stats) -> BN1-apply + ReLU into conv2's layout
    h1, st1 = _conv_pass(xp_flat, w1, colmask, N, D, H, W, vmem_limit)
    s1, b1 = _bn_from_stats(st1, params["g1"], params["b1"], H * W, m_total)
    a1p = _bn_relu_pad(h1, colmask3, s1, b1, N, D, H, W, vmem_limit)
    a1_flat = a1p.reshape(N, D + 2, Hs * Wp, planes)

    # conv2 (+ fused BN2 batch stats) -> BN2-apply + residual + ReLU
    h2, st2 = _conv_pass(a1_flat, w2, colmask, N, D, H, W, vmem_limit)
    s2, b2 = _bn_from_stats(st2, params["g2"], params["b2"], H * W, m_total)
    return _bn_add_relu(h2, x_ndhwc, s2, b2, N, D, H, W, vmem_limit)


# --------------------------------------------------------------------------- #
# pure-JAX reference
# --------------------------------------------------------------------------- #
def reference_block(x, params):
    """Reference forward; convs use bf16 operands with f32 accumulation to
    mirror the kernel's bf16 MXU compute (intermediates stay f32)."""
    def conv(x, w):
        return lax.conv_general_dilated(
            x.astype(jnp.bfloat16), w.astype(jnp.bfloat16), (1, 1, 1),
            [(1, 1), (1, 1), (1, 1)],
            dimension_numbers=("NDHWC", "DHWIO", "NDHWC"),
            preferred_element_type=jnp.float32)

    def bn(y, g, b):
        mean = jnp.mean(y, axis=(0, 1, 2, 3), keepdims=True)
        var = jnp.mean(jnp.square(y - mean), axis=(0, 1, 2, 3), keepdims=True)
        return (y - mean) * lax.rsqrt(var + _EPS) * g + b

    h = jax.nn.relu(bn(conv(x, params["w1"]), params["g1"], params["b1"]))
    h = bn(conv(h, params["w2"]), params["g2"], params["b2"]) + x
    return jax.nn.relu(h)


if __name__ == "__main__":
    key = jax.random.PRNGKey(0)
    N, D, H, W = 2, 8, 8, 8
    in_planes = planes = 8          # identity residual requires in_planes == planes
    k1, k2, k3, k4, k5, k6, k7 = jax.random.split(key, 7)

    # x corresponds to PyTorch NCDHW (2, 8, 8, 8, 8); stored here as NDHWC.
    x = jax.random.normal(k1, (N, D, H, W, in_planes), jnp.float32)
    params = dict(
        w1=jax.random.normal(k2, (3, 3, 3, in_planes, planes), jnp.float32) * 0.1,
        g1=1.0 + 0.1 * jax.random.normal(k3, (planes,), jnp.float32),
        b1=0.1 * jax.random.normal(k4, (planes,), jnp.float32),
        w2=jax.random.normal(k5, (3, 3, 3, planes, planes), jnp.float32) * 0.1,
        g2=1.0 + 0.1 * jax.random.normal(k6, (planes,), jnp.float32),
        b2=0.1 * jax.random.normal(k7, (planes,), jnp.float32),
    )

    out = jax.block_until_ready(jax.jit(basic_block_3d)(x, params))
    ref = jax.block_until_ready(jax.jit(reference_block)(x, params))

    assert out.shape == (N, D, H, W, planes), out.shape
    max_err = float(jnp.max(jnp.abs(out - ref)))
    mean_err = float(jnp.mean(jnp.abs(out - ref)))
    # The kernel stores h1/a1/h2 in bf16 (the reference keeps them f32), so a
    # few 1e-2 of max deviation is expected; structural bugs would be O(1).
    assert max_err < 1e-1, f"max abs err {max_err}"
    assert mean_err < 2e-2, f"mean abs err {mean_err}"
    print("KERNEL_OK")
</pallas_src>

<mosaic_0001>
module attributes {stable_mosaic.version = 11 : i64} {
  func.func @kernel(%arg0: i32, %arg1: i32, %arg2: memref<80x1xf32, #tpu.memory_space<vmem>>, %arg3: memref<1x1x120x8xbf16, #tpu.memory_space<vmem>>, %arg4: memref<1x1x120x8xbf16, #tpu.memory_space<vmem>>, %arg5: memref<1x1x120x8xbf16, #tpu.memory_space<vmem>>, %arg6: memref<27x8x8xbf16, #tpu.memory_space<vmem>>, %arg7: memref<1x1x80x8xbf16, #tpu.memory_space<vmem>>, %arg8: memref<1x1x2x8xf32, #tpu.memory_space<vmem>>) attributes {dimension_semantics = [#tpu.dimension_semantics<parallel>, #tpu.dimension_semantics<parallel>], iteration_bounds = array<i64: 2, 8>, scalar_prefetch = 0 : i64, scratch_operands = 0 : i64, tpu.core_type = #tpu.core_type<tc>, window_params = [{pipeline_mode = #tpu.pipeline_mode<synchronous>, transform_indices = @transform_0, window_bounds = array<i64: 80, 1>}, {transform_indices = @transform_1, window_bounds = array<i64: 1, 1, 120, 8>}, {transform_indices = @transform_2, window_bounds = array<i64: 1, 1, 120, 8>}, {transform_indices = @transform_3, window_bounds = array<i64: 1, 1, 120, 8>}, {pipeline_mode = #tpu.pipeline_mode<synchronous>, transform_indices = @transform_4, window_bounds = array<i64: 27, 8, 8>}, {transform_indices = @transform_5, window_bounds = array<i64: 1, 1, 80, 8>}, {transform_indices = @transform_6, window_bounds = array<i64: 1, 1, 2, 8>}]} {
    %cst = arith.constant 0.000000e+00 : f32
    %0 = vector.broadcast %cst : f32 to vector<80x8xf32>
    %c0 = arith.constant 0 : index
    %c0_0 = arith.constant 0 : index
    %c9 = arith.constant 9 : index
    %c0_1 = arith.constant 0 : index
    %1 = vector.load %arg3[%c0, %c0_0, %c9, %c0_1] : memref<1x1x120x8xbf16, #tpu.memory_space<vmem>>, vector<1x1x80x8xbf16>
    %2 = vector.shape_cast %1 : vector<1x1x80x8xbf16> to vector<80x8xbf16>
    %c0_2 = arith.constant 0 : index
    %c0_3 = arith.constant 0 : index
    %c0_4 = arith.constant 0 : index
    %3 = vector.load %arg6[%c0_2, %c0_3, %c0_4] : memref<27x8x8xbf16, #tpu.memory_space<vmem>>, vector<1x8x8xbf16>
    %4 = vector.shape_cast %3 : vector<1x8x8xbf16> to vector<8x8xbf16>
    %cst_5 = arith.constant dense<0.000000e+00> : vector<80x8xf32>
    %5 = tpu.matmul %2, %4, %cst_5 {dimension_numbers = #tpu.dot_dimension_numbers<[1], [0], [0], [1], [0, 0, 1, 1], [], []>} : vector<80x8xbf16>, vector<8x8xbf16>, vector<80x8xf32> -> vector<80x8xf32>
    %6 = arith.addf %0, %5 : vector<80x8xf32>
    %c0_6 = arith.constant 0 : index
    %c0_7 = arith.constant 0 : index
    %c10 = arith.constant 10 : index
    %c0_8 = arith.constant 0 : index
    %7 = vector.load %arg3[%c0_6, %c0_7, %c10, %c0_8] : memref<1x1x120x8xbf16, #tpu.memory_space<vmem>>, vector<1x1x80x8xbf16>
    %8 = vector.shape_cast %7 : vector<1x1x80x8xbf16> to vector<80x8xbf16>
    %c1 = arith.constant 1 : index
    %c0_9 = arith.constant 0 : index
    %c0_10 = arith.constant 0 : index
    %9 = vector.load %arg6[%c1, %c0_9, %c0_10] : memref<27x8x8xbf16, #tpu.memory_space<vmem>>, vector<1x8x8xbf16>
    %10 = vector.shape_cast %9 : vector<1x8x8xbf16> to vector<8x8xbf16>
    %cst_11 = arith.constant dense<0.000000e+00> : vector<80x8xf32>
    %11 = tpu.matmul %8, %10, %cst_11 {dimension_numbers = #tpu.dot_dimension_numbers<[1], [0], [0], [1], [0, 0, 1, 1], [], []>} : vector<80x8xbf16>, vector<8x8xbf16>, vector<80x8xf32> -> vector<80x8xf32>
    %12 = arith.addf %6, %11 : vector<80x8xf32>
    %c0_12 = arith.constant 0 : index
    %c0_13 = arith.constant 0 : index
    %c11 = arith.constant 11 : index
    %c0_14 = arith.constant 0 : index
    %13 = vector.load %arg3[%c0_12, %c0_13, %c11, %c0_14] : memref<1x1x120x8xbf16, #tpu.memory_space<vmem>>, vector<1x1x80x8xbf16>
    %14 = vector.shape_cast %13 : vector<1x1x80x8xbf16> to vector<80x8xbf16>
    %c2 = arith.constant 2 : index
    %c0_15 = arith.constant 0 : index
    %c0_16 = arith.constant 0 : index
    %15 = vector.load %arg6[%c2, %c0_15, %c0_16] : memref<27x8x8xbf16, #tpu.memory_space<vmem>>, vector<1x8x8xbf16>
    %16 = vector.shape_cast %15 : vector<1x8x8xbf16> to vector<8x8xbf16>
    %cst_17 = arith.constant dense<0.000000e+00> : vector<80x8xf32>
    %17 = tpu.matmul %14, %16, %cst_17 {dimension_numbers = #tpu.dot_dimension_numbers<[1], [0], [0], [1], [0, 0, 1, 1], [], []>} : vector<80x8xbf16>, vector<8x8xbf16>, vector<80x8xf32> -> vector<80x8xf32>
    %18 = arith.addf %12, %17 : vector<80x8xf32>
    %c0_18 = arith.constant 0 : index
    %c0_19 = arith.constant 0 : index
    %c19 = arith.constant 19 : index
    %c0_20 = arith.constant 0 : index
    %19 = vector.load %arg3[%c0_18, %c0_19, %c19, %c0_20] : memref<1x1x120x8xbf16, #tpu.memory_space<vmem>>, vector<1x1x80x8xbf16>
    %20 = vector.shape_cast %19 : vector<1x1x80x8xbf16> to vector<80x8xbf16>
    %c3 = arith.constant 3 : index
    %c0_21 = arith.constant 0 : index
    %c0_22 = arith.constant 0 : index
    %21 = vector.load %arg6[%c3, %c0_21, %c0_22] : memref<27x8x8xbf16, #tpu.memory_space<vmem>>, vector<1x8x8xbf16>
    %22 = vector.shape_cast %21 : vector<1x8x8xbf16> to vector<8x8xbf16>
    %cst_23 = arith.constant dense<0.000000e+00> : vector<80x8xf32>
    %23 = tpu.matmul %20, %22, %cst_23 {dimension_numbers = #tpu.dot_dimension_numbers<[1], [0], [0], [1], [0, 0, 1, 1], [], []>} : vector<80x8xbf16>, vector<8x8xbf16>, vector<80x8xf32> -> vector<80x8xf32>
    %24 = arith.addf %18, %23 : vector<80x8xf32>
    %c0_24 = arith.constant 0 : index
    %c0_25 = arith.constant 0 : index
    %c20 = arith.constant 20 : index
    %c0_26 = arith.constant 0 : index
    %25 = vector.load %arg3[%c0_24, %c0_25, %c20, %c0_26] : memref<1x1x120x8xbf16, #tpu.memory_space<vmem>>, vector<1x1x80x8xbf16>
    %26 = vector.shape_cast %25 : vector<1x1x80x8xbf16> to vector<80x8xbf16>
    %c4 = arith.constant 4 : index
    %c0_27 = arith.constant 0 : index
    %c0_28 = arith.constant 0 : index
    %27 = vector.load %arg6[%c4, %c0_27, %c0_28] : memref<27x8x8xbf16, #tpu.memory_space<vmem>>, vector<1x8x8xbf16>
    %28 = vector.shape_cast %27 : vector<1x8x8xbf16> to vector<8x8xbf16>
    %cst_29 = arith.constant dense<0.000000e+00> : vector<80x8xf32>
    %29 = tpu.matmul %26, %28, %cst_29 {dimension_numbers = #tpu.dot_dimension_numbers<[1], [0], [0], [1], [0, 0, 1, 1], [], []>} : vector<80x8xbf16>, vector<8x8xbf16>, vector<80x8xf32> -> vector<80x8xf32>
    %30 = arith.addf %24, %29 : vector<80x8xf32>
    %c0_30 = arith.constant 0 : index
    %c0_31 = arith.constant 0 : index
    %c21 = arith.constant 21 : index
    %c0_32 = arith.constant 0 : index
    %31 = vector.load %arg3[%c0_30, %c0_31, %c21, %c0_32] : memref<1x1x120x8xbf16, #tpu.memory_space<vmem>>, vector<1x1x80x8xbf16>
    %32 = vector.shape_cast %31 : vector<1x1x80x8xbf16> to vector<80x8xbf16>
    %c5 = arith.constant 5 : index
    %c0_33 = arith.constant 0 : index
    %c0_34 = arith.constant 0 : index
    %33 = vector.load %arg6[%c5, %c0_33, %c0_34] : memref<27x8x8xbf16, #tpu.memory_space<vmem>>, vector<1x8x8xbf16>
    %34 = vector.shape_cast %33 : vector<1x8x8xbf16> to vector<8x8xbf16>
    %cst_35 = arith.constant dense<0.000000e+00> : vector<80x8xf32>
    %35 = tpu.matmul %32, %34, %cst_35 {dimension_numbers = #tpu.dot_dimension_numbers<[1], [0], [0], [1], [0, 0, 1, 1], [], []>} : vector<80x8xbf16>, vector<8x8xbf16>, vector<80x8xf32> -> vector<80x8xf32>
    %36 = arith.addf %30, %35 : vector<80x8xf32>
    %c0_36 = arith.constant 0 : index
    %c0_37 = arith.constant 0 : index
    %c29 = arith.constant 29 : index
    %c0_38 = arith.constant 0 : index
    %37 = vector.load %arg3[%c0_36, %c0_37, %c29, %c0_38] : memref<1x1x120x8xbf16, #tpu.memory_space<vmem>>, vector<1x1x80x8xbf16>
    %38 = vector.shape_cast %37 : vector<1x1x80x8xbf16> to vector<80x8xbf16>
    %c6 = arith.constant 6 : index
    %c0_39 = arith.constant 0 : index
    %c0_40 = arith.constant 0 : index
    %39 = vector.load %arg6[%c6, %c0_39, %c0_40] : memref<27x8x8xbf16, #tpu.memory_space<vmem>>, vector<1x8x8xbf16>
    %40 = vector.shape_cast %39 : vector<1x8x8xbf16> to vector<8x8xbf16>
    %cst_41 = arith.constant dense<0.000000e+00> : vector<80x8xf32>
    %41 = tpu.matmul %38, %40, %cst_41 {dimension_numbers = #tpu.dot_dimension_numbers<[1], [0], [0], [1], [0, 0, 1, 1], [], []>} : vector<80x8xbf16>, vector<8x8xbf16>, vector<80x8xf32> -> vector<80x8xf32>
    %42 = arith.addf %36, %41 : vector<80x8xf32>
    %c0_42 = arith.constant 0 : index
    %c0_43 = arith.constant 0 : index
    %c30 = arith.constant 30 : index
    %c0_44 = arith.constant 0 : index
    %43 = vector.load %arg3[%c0_42, %c0_43, %c30, %c0_44] : memref<1x1x120x8xbf16, #tpu.memory_space<vmem>>, vector<1x1x80x8xbf16>
    %44 = vector.shape_cast %43 : vector<1x1x80x8xbf16> to vector<80x8xbf16>
    %c7 = arith.constant 7 : index
    %c0_45 = arith.constant 0 : index
    %c0_46 = arith.constant 0 : index
    %45 = vector.load %arg6[%c7, %c0_45, %c0_46] : memref<27x8x8xbf16, #tpu.memory_space<vmem>>, vector<1x8x8xbf16>
    %46 = vector.shape_cast %45 : vector<1x8x8xbf16> to vector<8x8xbf16>
    %cst_47 = arith.constant dense<0.000000e+00> : vector<80x8xf32>
    %47 = tpu.matmul %44, %46, %cst_47 {dimension_numbers = #tpu.dot_dimension_numbers<[1], [0], [0], [1], [0, 0, 1, 1], [], []>} : vector<80x8xbf16>, vector<8x8xbf16>, vector<80x8xf32> -> vector<80x8xf32>
    %48 = arith.addf %42, %47 : vector<80x8xf32>
    %c0_48 = arith.constant 0 : index
    %c0_49 = arith.constant 0 : index
    %c31 = arith.constant 31 : index
    %c0_50 = arith.constant 0 : index
    %49 = vector.load %arg3[%c0_48, %c0_49, %c31, %c0_50] : memref<1x1x120x8xbf16, #tpu.memory_space<vmem>>, vector<1x1x80x8xbf16>
    %50 = vector.shape_cast %49 : vector<1x1x80x8xbf16> to vector<80x8xbf16>
    %c8 = arith.constant 8 : index
    %c0_51 = arith.constant 0 : index
    %c0_52 = arith.constant 0 : index
    %51 = vector.load %arg6[%c8, %c0_51, %c0_52] : memref<27x8x8xbf16, #tpu.memory_space<vmem>>, vector<1x8x8xbf16>
    %52 = vector.shape_cast %51 : vector<1x8x8xbf16> to vector<8x8xbf16>
    %cst_53 = arith.constant dense<0.000000e+00> : vector<80x8xf32>
    %53 = tpu.matmul %50, %52, %cst_53 {dimension_numbers = #tpu.dot_dimension_numbers<[1], [0], [0], [1], [0, 0, 1, 1], [], []>} : vector<80x8xbf16>, vector<8x8xbf16>, vector<80x8xf32> -> vector<80x8xf32>
    %54 = arith.addf %48, %53 : vector<80x8xf32>
    %c0_54 = arith.constant 0 : index
    %c0_55 = arith.constant 0 : index
    %c9_56 = arith.constant 9 : index
    %c0_57 = arith.constant 0 : index
    %55 = vector.load %arg4[%c0_54, %c0_55, %c9_56, %c0_57] : memref<1x1x120x8xbf16, #tpu.memory_space<vmem>>, vector<1x1x80x8xbf16>
    %56 = vector.shape_cast %55 : vector<1x1x80x8xbf16> to vector<80x8xbf16>
    %c9_58 = arith.constant 9 : index
    %c0_59 = arith.constant 0 : index
    %c0_60 = arith.constant 0 : index
    %57 = vector.load %arg6[%c9_58, %c0_59, %c0_60] : memref<27x8x8xbf16, #tpu.memory_space<vmem>>, vector<1x8x8xbf16>
    %58 = vector.shape_cast %57 : vector<1x8x8xbf16> to vector<8x8xbf16>
    %cst_61 = arith.constant dense<0.000000e+00> : vector<80x8xf32>
    %59 = tpu.matmul %56, %58, %cst_61 {dimension_numbers = #tpu.dot_dimension_numbers<[1], [0], [0], [1], [0, 0, 1, 1], [], []>} : vector<80x8xbf16>, vector<8x8xbf16>, vector<80x8xf32> -> vector<80x8xf32>
    %60 = arith.addf %54, %59 : vector<80x8xf32>
    %c0_62 = arith.constant 0 : index
    %c0_63 = arith.constant 0 : index
    %c10_64 = arith.constant 10 : index
    %c0_65 = arith.constant 0 : index
    %61 = vector.load %arg4[%c0_62, %c0_63, %c10_64, %c0_65] : memref<1x1x120x8xbf16, #tpu.memory_space<vmem>>, vector<1x1x80x8xbf16>
    %62 = vector.shape_cast %61 : vector<1x1x80x8xbf16> to vector<80x8xbf16>
    %c10_66 = arith.constant 10 : index
    %c0_67 = arith.constant 0 : index
    %c0_68 = arith.constant 0 : index
    %63 = vector.load %arg6[%c10_66, %c0_67, %c0_68] : memref<27x8x8xbf16, #tpu.memory_space<vmem>>, vector<1x8x8xbf16>
    %64 = vector.shape_cast %63 : vector<1x8x8xbf16> to vector<8x8xbf16>
    %cst_69 = arith.constant dense<0.000000e+00> : vector<80x8xf32>
    %65 = tpu.matmul %62, %64, %cst_69 {dimension_numbers = #tpu.dot_dimension_numbers<[1], [0], [0], [1], [0, 0, 1, 1], [], []>} : vector<80x8xbf16>, vector<8x8xbf16>, vector<80x8xf32> -> vector<80x8xf32>
    %66 = arith.addf %60, %65 : vector<80x8xf32>
    %c0_70 = arith.constant 0 : index
    %c0_71 = arith.constant 0 : index
    %c11_72 = arith.constant 11 : index
    %c0_73 = arith.constant 0 : index
    %67 = vector.load %arg4[%c0_70, %c0_71, %c11_72, %c0_73] : memref<1x1x120x8xbf16, #tpu.memory_space<vmem>>, vector<1x1x80x8xbf16>
    %68 = vector.shape_cast %67 : vector<1x1x80x8xbf16> to vector<80x8xbf16>
    %c11_74 = arith.constant 11 : index
    %c0_75 = arith.constant 0 : index
    %c0_76 = arith.constant 0 : index
    %69 = vector.load %arg6[%c11_74, %c0_75, %c0_76] : memref<27x8x8xbf16, #tpu.memory_space<vmem>>, vector<1x8x8xbf16>
    %70 = vector.shape_cast %69 : vector<1x8x8xbf16> to vector<8x8xbf16>
    %cst_77 = arith.constant dense<0.000000e+00> : vector<80x8xf32>
    %71 = tpu.matmul %68, %70, %cst_77 {dimension_numbers = #tpu.dot_dimension_numbers<[1], [0], [0], [1], [0, 0, 1, 1], [], []>} : vector<80x8xbf16>, vector<8x8xbf16>, vector<80x8xf32> -> vector<80x8xf32>
    %72 = arith.addf %66, %71 : vector<80x8xf32>
    %c0_78 = arith.constant 0 : index
    %c0_79 = arith.constant 0 : index
    %c19_80 = arith.constant 19 : index
    %c0_81 = arith.constant 0 : index
    %73 = vector.load %arg4[%c0_78, %c0_79, %c19_80, %c0_81] : memref<1x1x120x8xbf16, #tpu.memory_space<vmem>>, vector<1x1x80x8xbf16>
    %74 = vector.shape_cast %73 : vector<1x1x80x8xbf16> to vector<80x8xbf16>
    %c12 = arith.constant 12 : index
    %c0_82 = arith.constant 0 : index
    %c0_83 = arith.constant 0 : index
    %75 = vector.load %arg6[%c12, %c0_82, %c0_83] : memref<27x8x8xbf16, #tpu.memory_space<vmem>>, vector<1x8x8xbf16>
    %76 = vector.shape_cast %75 : vector<1x8x8xbf16> to vector<8x8xbf16>
    %cst_84 = arith.constant dense<0.000000e+00> : vector<80x8xf32>
    %77 = tpu.matmul %74, %76, %cst_84 {dimension_numbers = #tpu.dot_dimension_numbers<[1], [0], [0], [1], [0, 0, 1, 1], [], []>} : vector<80x8xbf16>, vector<8x8xbf16>, vector<80x8xf32> -> vector<80x8xf32>
    %78 = arith.addf %72, %77 : vector<80x8xf32>
    %c0_85 = arith.constant 0 : index
    %c0_86 = arith.constant 0 : index
    %c20_87 = arith.constant 20 : index
    %c0_88 = arith.constant 0 : index
    %79 = vector.load %arg4[%c0_85, %c0_86, %c20_87, %c0_88] : memref<1x1x120x8xbf16, #tpu.memory_space<vmem>>, vector<1x1x80x8xbf16>
    %80 = vector.shape_cast %79 : vector<1x1x80x8xbf16> to vector<80x8xbf16>
    %c13 = arith.constant 13 : index
    %c0_89 = arith.constant 0 : index
    %c0_90 = arith.constant 0 : index
    %81 = vector.load %arg6[%c13, %c0_89, %c0_90] : memref<27x8x8xbf16, #tpu.memory_space<vmem>>, vector<1x8x8xbf16>
    %82 = vector.shape_cast %81 : vector<1x8x8xbf16> to vector<8x8xbf16>
    %cst_91 = arith.constant dense<0.000000e+00> : vector<80x8xf32>
    %83 = tpu.matmul %80, %82, %cst_91 {dimension_numbers = #tpu.dot_dimension_numbers<[1], [0], [0], [1], [0, 0, 1, 1], [], []>} : vector<80x8xbf16>, vector<8x8xbf16>, vector<80x8xf32> -> vector<80x8xf32>
    %84 = arith.addf %78, %83 : vector<80x8xf32>
    %c0_92 = arith.constant 0 : index
    %c0_93 = arith.constant 0 : index
    %c21_94 = arith.constant 21 : index
    %c0_95 = arith.constant 0 : index
    %85 = vector.load %arg4[%c0_92, %c0_93, %c21_94, %c0_95] : memref<1x1x120x8xbf16, #tpu.memory_space<vmem>>, vector<1x1x80x8xbf16>
    %86 = vector.shape_cast %85 : vector<1x1x80x8xbf16> to vector<80x8xbf16>
    %c14 = arith.constant 14 : index
    %c0_96 = arith.constant 0 : index
    %c0_97 = arith.constant 0 : index
    %87 = vector.load %arg6[%c14, %c0_96, %c0_97] : memref<27x8x8xbf16, #tpu.memory_space<vmem>>, vector<1x8x8xbf16>
    %88 = vector.shape_cast %87 : vector<1x8x8xbf16> to vector<8x8xbf16>
    %cst_98 = arith.constant dense<0.000000e+00> : vector<80x8xf32>
    %89 = tpu.matmul %86, %88, %cst_98 {dimension_numbers = #tpu.dot_dimension_numbers<[1], [0], [0], [1], [0, 0, 1, 1], [], []>} : vector<80x8xbf16>, vector<8x8xbf16>, vector<80x8xf32> -> vector<80x8xf32>
    %90 = arith.addf %84, %89 : vector<80x8xf32>
    %c0_99 = arith.constant 0 : index
    %c0_100 = arith.constant 0 : index
    %c29_101 = arith.constant 29 : index
    %c0_102 = arith.constant 0 : index
    %91 = vector.load %arg4[%c0_99, %c0_100, %c29_101, %c0_102] : memref<1x1x120x8xbf16, #tpu.memory_space<vmem>>, vector<1x1x80x8xbf16>
    %92 = vector.shape_cast %91 : vector<1x1x80x8xbf16> to vector<80x8xbf16>
    %c15 = arith.constant 15 : index
    %c0_103 = arith.constant 0 : index
    %c0_104 = arith.constant 0 : index
    %93 = vector.load %arg6[%c15, %c0_103, %c0_104] : memref<27x8x8xbf16, #tpu.memory_space<vmem>>, vector<1x8x8xbf16>
    %94 = vector.shape_cast %93 : vector<1x8x8xbf16> to vector<8x8xbf16>
    %cst_105 = arith.constant dense<0.000000e+00> : vector<80x8xf32>
    %95 = tpu.matmul %92, %94, %cst_105 {dimension_numbers = #tpu.dot_dimension_numbers<[1], [0], [0], [1], [0, 0, 1, 1], [], []>} : vector<80x8xbf16>, vector<8x8xbf16>, vector<80x8xf32> -> vector<80x8xf32>
    %96 = arith.addf %90, %95 : vector<80x8xf32>
    %c0_106 = arith.constant 0 : index
    %c0_107 = arith.constant 0 : index
    %c30_108 = arith.constant 30 : index
    %c0_109 = arith.constant 0 : index
    %97 = vector.load %arg4[%c0_106, %c0_107, %c30_108, %c0_109] : memref<1x1x120x8xbf16, #tpu.memory_space<vmem>>, vector<1x1x80x8xbf16>
    %98 = vector.shape_cast %97 : vector<1x1x80x8xbf16> to vector<80x8xbf16>
    %c16 = arith.constant 16 : index
    %c0_110 = arith.constant 0 : index
    %c0_111 = arith.constant 0 : index
    %99 = vector.load %arg6[%c16, %c0_110, %c0_111] : memref<27x8x8xbf16, #tpu.memory_space<vmem>>, vector<1x8x8xbf16>
    %100 = vector.shape_cast %99 : vector<1x8x8xbf16> to vector<8x8xbf16>
    %cst_112 = arith.constant dense<0.000000e+00> : vector<80x8xf32>
    %101 = tpu.matmul %98, %100, %cst_112 {dimension_numbers = #tpu.dot_dimension_numbers<[1], [0], [0], [1], [0, 0, 1, 1], [], []>} : vector<80x8xbf16>, vector<8x8xbf16>, vector<80x8xf32> -> vector<80x8xf32>
    %102 = arith.addf %96, %101 : vector<80x8xf32>
    %c0_113 = arith.constant 0 : index
    %c0_114 = arith.constant 0 : index
    %c31_115 = arith.constant 31 : index
    %c0_116 = arith.constant 0 : index
    %103 = vector.load %arg4[%c0_113, %c0_114, %c31_115, %c0_116] : memref<1x1x120x8xbf16, #tpu.memory_space<vmem>>, vector<1x1x80x8xbf16>
    %104 = vector.shape_cast %103 : vector<1x1x80x8xbf16> to vector<80x8xbf16>
    %c17 = arith.constant 17 : index
    %c0_117 = arith.constant 0 : index
    %c0_118 = arith.constant 0 : index
    %105 = vector.load %arg6[%c17, %c0_117, %c0_118] : memref<27x8x8xbf16, #tpu.memory_space<vmem>>, vector<1x8x8xbf16>
    %106 = vector.shape_cast %105 : vector<1x8x8xbf16> to vector<8x8xbf16>
    %cst_119 = arith.constant dense<0.000000e+00> : vector<80x8xf32>
    %107 = tpu.matmul %104, %106, %cst_119 {dimension_numbers = #tpu.dot_dimension_numbers<[1], [0], [0], [1], [0, 0, 1, 1], [], []>} : vector<80x8xbf16>, vector<8x8xbf16>, vector<80x8xf32> -> vector<80x8xf32>
    %108 = arith.addf %102, %107 : vector<80x8xf32>
    %c0_120 = arith.constant 0 : index
    %c0_121 = arith.constant 0 : index
    %c9_122 = arith.constant 9 : index
    %c0_123 = arith.constant 0 : index
    %109 = vector.load %arg5[%c0_120, %c0_121, %c9_122, %c0_123] : memref<1x1x120x8xbf16, #tpu.memory_space<vmem>>, vector<1x1x80x8xbf16>
    %110 = vector.shape_cast %109 : vector<1x1x80x8xbf16> to vector<80x8xbf16>
    %c18 = arith.constant 18 : index
    %c0_124 = arith.constant 0 : index
    %c0_125 = arith.constant 0 : index
    %111 = vector.load %arg6[%c18, %c0_124, %c0_125] : memref<27x8x8xbf16, #tpu.memory_space<vmem>>, vector<1x8x8xbf16>
    %112 = vector.shape_cast %111 : vector<1x8x8xbf16> to vector<8x8xbf16>
    %cst_126 = arith.constant dense<0.000000e+00> : vector<80x8xf32>
    %113 = tpu.matmul %110, %112, %cst_126 {dimension_numbers = #tpu.dot_dimension_numbers<[1], [0], [0], [1], [0, 0, 1, 1], [], []>} : vector<80x8xbf16>, vector<8x8xbf16>, vector<80x8xf32> -> vector<80x8xf32>
    %114 = arith.addf %108, %113 : vector<80x8xf32>
    %c0_127 = arith.constant 0 : index
    %c0_128 = arith.constant 0 : index
    %c10_129 = arith.constant 10 : index
    %c0_130 = arith.constant 0 : index
    %115 = vector.load %arg5[%c0_127, %c0_128, %c10_129, %c0_130] : memref<1x1x120x8xbf16, #tpu.memory_space<vmem>>, vector<1x1x80x8xbf16>
    %116 = vector.shape_cast %115 : vector<1x1x80x8xbf16> to vector<80x8xbf16>
    %c19_131 = arith.constant 19 : index
    %c0_132 = arith.constant 0 : index
    %c0_133 = arith.constant 0 : index
    %117 = vector.load %arg6[%c19_131, %c0_132, %c0_133] : memref<27x8x8xbf16, #tpu.memory_space<vmem>>, vector<1x8x8xbf16>
    %118 = vector.shape_cast %117 : vector<1x8x8xbf16> to vector<8x8xbf16>
    %cst_134 = arith.constant dense<0.000000e+00> : vector<80x8xf32>
    %119 = tpu.matmul %116, %118, %cst_134 {dimension_numbers = #tpu.dot_dimension_numbers<[1], [0], [0], [1], [0, 0, 1, 1], [], []>} : vector<80x8xbf16>, vector<8x8xbf16>, vector<80x8xf32> -> vector<80x8xf32>
    %120 = arith.addf %114, %119 : vector<80x8xf32>
    %c0_135 = arith.constant 0 : index
    %c0_136 = arith.constant 0 : index
    %c11_137 = arith.constant 11 : index
    %c0_138 = arith.constant 0 : index
    %121 = vector.load %arg5[%c0_135, %c0_136, %c11_137, %c0_138] : memref<1x1x120x8xbf16, #tpu.memory_space<vmem>>, vector<1x1x80x8xbf16>
    %122 = vector.shape_cast %121 : vector<1x1x80x8xbf16> to vector<80x8xbf16>
    %c20_139 = arith.constant 20 : index
    %c0_140 = arith.constant 0 : index
    %c0_141 = arith.constant 0 : index
    %123 = vector.load %arg6[%c20_139, %c0_140, %c0_141] : memref<27x8x8xbf16, #tpu.memory_space<vmem>>, vector<1x8x8xbf16>
    %124 = vector.shape_cast %123 : vector<1x8x8xbf16> to vector<8x8xbf16>
    %cst_142 = arith.constant dense<0.000000e+00> : vector<80x8xf32>
    %125 = tpu.matmul %122, %124, %cst_142 {dimension_numbers = #tpu.dot_dimension_numbers<[1], [0], [0], [1], [0, 0, 1, 1], [], []>} : vector<80x8xbf16>, vector<8x8xbf16>, vector<80x8xf32> -> vector<80x8xf32>
    %126 = arith.addf %120, %125 : vector<80x8xf32>
    %c0_143 = arith.constant 0 : index
    %c0_144 = arith.constant 0 : index
    %c19_145 = arith.constant 19 : index
    %c0_146 = arith.constant 0 : index
    %127 = vector.load %arg5[%c0_143, %c0_144, %c19_145, %c0_146] : memref<1x1x120x8xbf16, #tpu.memory_space<vmem>>, vector<1x1x80x8xbf16>
    %128 = vector.shape_cast %127 : vector<1x1x80x8xbf16> to vector<80x8xbf16>
    %c21_147 = arith.constant 21 : index
    %c0_148 = arith.constant 0 : index
    %c0_149 = arith.constant 0 : index
    %129 = vector.load %arg6[%c21_147, %c0_148, %c0_149] : memref<27x8x8xbf16, #tpu.memory_space<vmem>>, vector<1x8x8xbf16>
    %130 = vector.shape_cast %129 : vector<1x8x8xbf16> to vector<8x8xbf16>
    %cst_150 = arith.constant dense<0.000000e+00> : vector<80x8xf32>
    %131 = tpu.matmul %128, %130, %cst_150 {dimension_numbers = #tpu.dot_dimension_numbers<[1], [0], [0], [1], [0, 0, 1, 1], [], []>} : vector<80x8xbf16>, vector<8x8xbf16>, vector<80x8xf32> -> vector<80x8xf32>
    %132 = arith.addf %126, %131 : vector<80x8xf32>
    %c0_151 = arith.constant 0 : index
    %c0_152 = arith.constant 0 : index
    %c20_153 = arith.constant 20 : index
    %c0_154 = arith.constant 0 : index
    %133 = vector.load %arg5[%c0_151, %c0_152, %c20_153, %c0_154] : memref<1x1x120x8xbf16, #tpu.memory_space<vmem>>, vector<1x1x80x8xbf16>
    %134 = vector.shape_cast %133 : vector<1x1x80x8xbf16> to vector<80x8xbf16>
    %c22 = arith.constant 22 : index
    %c0_155 = arith.constant 0 : index
    %c0_156 = arith.constant 0 : index
    %135 = vector.load %arg6[%c22, %c0_155, %c0_156] : memref<27x8x8xbf16, #tpu.memory_space<vmem>>, vector<1x8x8xbf16>
    %136 = vector.shape_cast %135 : vector<1x8x8xbf16> to vector<8x8xbf16>
    %cst_157 = arith.constant dense<0.000000e+00> : vector<80x8xf32>
    %137 = tpu.matmul %134, %136, %cst_157 {dimension_numbers = #tpu.dot_dimension_numbers<[1], [0], [0], [1], [0, 0, 1, 1], [], []>} : vector<80x8xbf16>, vector<8x8xbf16>, vector<80x8xf32> -> vector<80x8xf32>
    %138 = arith.addf %132, %137 : vector<80x8xf32>
    %c0_158 = arith.constant 0 : index
    %c0_159 = arith.constant 0 : index
    %c21_160 = arith.constant 21 : index
    %c0_161 = arith.constant 0 : index
    %139 = vector.load %arg5[%c0_158, %c0_159, %c21_160, %c0_161] : memref<1x1x120x8xbf16, #tpu.memory_space<vmem>>, vector<1x1x80x8xbf16>
    %140 = vector.shape_cast %139 : vector<1x1x80x8xbf16> to vector<80x8xbf16>
    %c23 = arith.constant 23 : index
    %c0_162 = arith.constant 0 : index
    %c0_163 = arith.constant 0 : index
    %141 = vector.load %arg6[%c23, %c0_162, %c0_163] : memref<27x8x8xbf16, #tpu.memory_space<vmem>>, vector<1x8x8xbf16>
    %142 = vector.shape_cast %141 : vector<1x8x8xbf16> to vector<8x8xbf16>
    %cst_164 = arith.constant dense<0.000000e+00> : vector<80x8xf32>
    %143 = tpu.matmul %140, %142, %cst_164 {dimension_numbers = #tpu.dot_dimension_numbers<[1], [0], [0], [1], [0, 0, 1, 1], [], []>} : vector<80x8xbf16>, vector<8x8xbf16>, vector<80x8xf32> -> vector<80x8xf32>
    %144 = arith.addf %138, %143 : vector<80x8xf32>
    %c0_165 = arith.constant 0 : index
    %c0_166 = arith.constant 0 : index
    %c29_167 = arith.constant 29 : index
    %c0_168 = arith.constant 0 : index
    %145 = vector.load %arg5[%c0_165, %c0_166, %c29_167, %c0_168] : memref<1x1x120x8xbf16, #tpu.memory_space<vmem>>, vector<1x1x80x8xbf16>
    %146 = vector.shape_cast %145 : vector<1x1x80x8xbf16> to vector<80x8xbf16>
    %c24 = arith.constant 24 : index
    %c0_169 = arith.constant 0 : index
    %c0_170 = arith.constant 0 : index
    %147 = vector.load %arg6[%c24, %c0_169, %c0_170] : memref<27x8x8xbf16, #tpu.memory_space<vmem>>, vector<1x8x8xbf16>
    %148 = vector.shape_cast %147 : vector<1x8x8xbf16> to vector<8x8xbf16>
    %cst_171 = arith.constant dense<0.000000e+00> : vector<80x8xf32>
    %149 = tpu.matmul %146, %148, %cst_171 {dimension_numbers = #tpu.dot_dimension_numbers<[1], [0], [0], [1], [0, 0, 1, 1], [], []>} : vector<80x8xbf16>, vector<8x8xbf16>, vector<80x8xf32> -> vector<80x8xf32>
    %150 = arith.addf %144, %149 : vector<80x8xf32>
    %c0_172 = arith.constant 0 : index
    %c0_173 = arith.constant 0 : index
    %c30_174 = arith.constant 30 : index
    %c0_175 = arith.constant 0 : index
    %151 = vector.load %arg5[%c0_172, %c0_173, %c30_174, %c0_175] : memref<1x1x120x8xbf16, #tpu.memory_space<vmem>>, vector<1x1x80x8xbf16>
    %152 = vector.shape_cast %151 : vector<1x1x80x8xbf16> to vector<80x8xbf16>
    %c25 = arith.constant 25 : index
    %c0_176 = arith.constant 0 : index
    %c0_177 = arith.constant 0 : index
    %153 = vector.load %arg6[%c25, %c0_176, %c0_177] : memref<27x8x8xbf16, #tpu.memory_space<vmem>>, vector<1x8x8xbf16>
    %154 = vector.shape_cast %153 : vector<1x8x8xbf16> to vector<8x8xbf16>
    %cst_178 = arith.constant dense<0.000000e+00> : vector<80x8xf32>
    %155 = tpu.matmul %152, %154, %cst_178 {dimension_numbers = #tpu.dot_dimension_numbers<[1], [0], [0], [1], [0, 0, 1, 1], [], []>} : vector<80x8xbf16>, vector<8x8xbf16>, vector<80x8xf32> -> vector<80x8xf32>
    %156 = arith.addf %150, %155 : vector<80x8xf32>
    %c0_179 = arith.constant 0 : index
    %c0_180 = arith.constant 0 : index
    %c31_181 = arith.constant 31 : index
    %c0_182 = arith.constant 0 : index
    %157 = vector.load %arg5[%c0_179, %c0_180, %c31_181, %c0_182] : memref<1x1x120x8xbf16, #tpu.memory_space<vmem>>, vector<1x1x80x8xbf16>
    %158 = vector.shape_cast %157 : vector<1x1x80x8xbf16> to vector<80x8xbf16>
    %c26 = arith.constant 26 : index
    %c0_183 = arith.constant 0 : index
    %c0_184 = arith.constant 0 : index
    %159 = vector.load %arg6[%c26, %c0_183, %c0_184] : memref<27x8x8xbf16, #tpu.memory_space<vmem>>, vector<1x8x8xbf16>
    %160 = vector.shape_cast %159 : vector<1x8x8xbf16> to vector<8x8xbf16>
    %cst_185 = arith.constant dense<0.000000e+00> : vector<80x8xf32>
    %161 = tpu.matmul %158, %160, %cst_185 {dimension_numbers = #tpu.dot_dimension_numbers<[1], [0], [0], [1], [0, 0, 1, 1], [], []>} : vector<80x8xbf16>, vector<8x8xbf16>, vector<80x8xf32> -> vector<80x8xf32>
    %162 = arith.addf %156, %161 : vector<80x8xf32>
    %163 = arith.truncf %162 : vector<80x8xf32> to vector<80x8xbf16>
    %c0_186 = arith.constant 0 : index
    %c0_187 = arith.constant 0 : index
    %c0_188 = arith.constant 0 : index
    %c0_189 = arith.constant 0 : index
    %164 = vector.load %arg7[%c0_186, %c0_187, %c0_188, %c0_189] : memref<1x1x80x8xbf16, #tpu.memory_space<vmem>>, vector<1x1x80x8xbf16>
    %165 = vector.shape_cast %164 : vector<1x1x80x8xbf16> to vector<80x8xbf16>
    %166 = vector.shape_cast %163 : vector<80x8xbf16> to vector<1x1x80x8xbf16>
    tpu.vector_store %arg7[%c0_186, %c0_187, %c0_188, %c0_189], %166 {strides = array<i32>} : memref<1x1x80x8xbf16, #tpu.memory_space<vmem>>, vector<1x1x80x8xbf16>,
    %c0_190 = arith.constant 0 : index
    %c0_191 = arith.constant 0 : index
    %167 = vector.load %arg2[%c0_190, %c0_191] : memref<80x1xf32, #tpu.memory_space<vmem>>, vector<80x1xf32>
    %168 = vector.broadcast %167 : vector<80x1xf32> to vector<80x8xf32>
    %169 = arith.mulf %162, %168 : vector<80x8xf32>
    %cst_192 = arith.constant dense<0.000000e+00> : vector<8xf32>
    %170 = vector.multi_reduction <add>, %169, %cst_192 [0] : vector<80x8xf32> to vector<8xf32>
    %171 = vector.shape_cast %170 : vector<8xf32> to vector<1x8xf32>
    %cst_193 = arith.constant 1.562500e-02 : f32
    %172 = vector.broadcast %cst_193 : f32 to vector<1x8xf32>
    %173 = arith.mulf %171, %172 : vector<1x8xf32>
    %174 = vector.broadcast %173 : vector<1x8xf32> to vector<80x8xf32>
    %175 = arith.subf %162, %174 : vector<80x8xf32>
    %176 = vector.broadcast %167 : vector<80x1xf32> to vector<80x8xf32>
    %177 = arith.mulf %175, %176 : vector<80x8xf32>
    %c0_194 = arith.constant 0 : index
    %c0_195 = arith.constant 0 : index
    %c0_196 = arith.constant 0 : index
    %c0_197 = arith.constant 0 : index
    %178 = vector.load %arg8[%c0_194, %c0_195, %c0_196, %c0_197] : memref<1x1x2x8xf32, #tpu.memory_space<vmem>>, vector<1x1x1x8xf32>
    %179 = vector.shape_cast %178 : vector<1x1x1x8xf32> to vector<1x8xf32>
    %180 = vector.shape_cast %171 : vector<1x8xf32> to vector<1x1x1x8xf32>
    tpu.vector_store %arg8[%c0_194, %c0_195, %c0_196, %c0_197], %180 {strides = array<i32>} : memref<1x1x2x8xf32, #tpu.memory_space<vmem>>, vector<1x1x1x8xf32>,
    %181 = arith.mulf %177, %177 : vector<80x8xf32>
    %cst_198 = arith.constant dense<0.000000e+00> : vector<8xf32>
    %182 = vector.multi_reduction <add>, %181, %cst_198 [0] : vector<80x8xf32> to vector<8xf32>
    %183 = vector.shape_cast %182 : vector<8xf32> to vector<1x8xf32>
    %c0_199 = arith.constant 0 : index
    %c0_200 = arith.constant 0 : index
    %c1_201 = arith.constant 1 : index
    %c0_202 = arith.constant 0 : index
    %184 = vector.load %arg8[%c0_199, %c0_200, %c1_201, %c0_202] : memref<1x1x2x8xf32, #tpu.memory_space<vmem>>, vector<1x1x1x8xf32>
    %185 = vector.shape_cast %184 : vector<1x1x1x8xf32> to vector<1x8xf32>
    %186 = vector.shape_cast %183 : vector<1x8xf32> to vector<1x1x1x8xf32>
    tpu.vector_store %arg8[%c0_199, %c0_200, %c1_201, %c0_202], %186 {strides = array<i32>} : memref<1x1x2x8xf32, #tpu.memory_space<vmem>>, vector<1x1x1x8xf32>,
    return
  }
  func.func @transform_0(%arg0: i32, %arg1: i32) -> (i32, i32) {
    %c0_i32 = arith.constant 0 : i32
    %c0_i32_0 = arith.constant 0 : i32
    %c0_i32_1 = arith.constant 0 : i32
    return %c0_i32, %c0_i32_0 : i32, i32
  }
  func.func @transform_1(%arg0: i32, %arg1: i32) -> (i32, i32, i32, i32) {
    %c0_i32 = arith.constant 0 : i32
    %0 = arith.addi %arg1, %c0_i32 : i32
    %c0_i32_0 = arith.constant 0 : i32
    %c0_i32_1 = arith.constant 0 : i32
    %c0_i32_2 = arith.constant 0 : i32
    return %arg0, %0, %c0_i32_0, %c0_i32_1 : i32, i32, i32, i32
  }
  func.func @transform_2(%arg0: i32, %arg1: i32) -> (i32, i32, i32, i32) {
    %c1_i32 = arith.constant 1 : i32
    %0 = arith.addi %arg1, %c1_i32 : i32
    %c0_i32 = arith.constant 0 : i32
    %c0_i32_0 = arith.constant 0 : i32
    %c0_i32_1 = arith.constant 0 : i32
    return %arg0, %0, %c0_i32, %c0_i32_0 : i32, i32, i32, i32
  }
  func.func @transform_3(%arg0: i32, %arg1: i32) -> (i32, i32, i32, i32) {
    %c2_i32 = arith.constant 2 : i32
    %0 = arith.addi %arg1, %c2_i32 : i32
    %c0_i32 = arith.constant 0 : i32
    %c0_i32_0 = arith.constant 0 : i32
    %c0_i32_1 = arith.constant 0 : i32
    return %arg0, %0, %c0_i32, %c0_i32_0 : i32, i32, i32, i32
  }
  func.func @transform_4(%arg0: i32, %arg1: i32) -> (i32, i32, i32) {
    %c0_i32 = arith.constant 0 : i32
    %c0_i32_0 = arith.constant 0 : i32
    %c0_i32_1 = arith.constant 0 : i32
    %c0_i32_2 = arith.constant 0 : i32
    return %c0_i32, %c0_i32_0, %c0_i32_1 : i32, i32, i32
  }
  func.func @transform_5(%arg0: i32, %arg1: i32) -> (i32, i32, i32, i32) {
    %c0_i32 = arith.constant 0 : i32
    %c0_i32_0 = arith.constant 0 : i32
    %c0_i32_1 = arith.constant 0 : i32
    return %arg0, %arg1, %c0_i32, %c0_i32_0 : i32, i32, i32, i32
  }
  func.func @transform_6(%arg0: i32, %arg1: i32) -> (i32, i32, i32, i32) {
    %c0_i32 = arith.constant 0 : i32
    %c0_i32_0 = arith.constant 0 : i32
    %c0_i32_1 = arith.constant 0 : i32
    return %arg0, %arg1, %c0_i32, %c0_i32_0 : i32, i32, i32, i32
  }
}

module attributes {stable_mosaic.version = 11 : i64} {
  func.func @kernel(%arg0: i32, %arg1: i32, %arg2: memref<1x1x8x10x8xbf16, #tpu.memory_space<vmem>>, %arg3: memref<1x1x8x8x8xf32, #tpu.memory_space<vmem>>, %arg4: memref<1x1x8xf32, #tpu.memory_space<vmem>>, %arg5: memref<1x1x8xf32, #tpu.memory_space<vmem>>, %arg6: memref<1x1x8x8x8xf32, #tpu.memory_space<vmem>>) attributes {dimension_semantics = [#tpu.dimension_semantics<parallel>, #tpu.dimension_semantics<parallel>], iteration_bounds = array<i64: 2, 8>, scalar_prefetch = 0 : i64, scratch_operands = 0 : i64, tpu.core_type = #tpu.core_type<tc>, window_params = [{transform_indices = @transform_0, window_bounds = array<i64: 1, 1, 8, 10, 8>}, {transform_indices = @transform_1, window_bounds = array<i64: 1, 1, 8, 8, 8>}, {pipeline_mode = #tpu.pipeline_mode<synchronous>, transform_indices = @transform_2, window_bounds = array<i64: 1, 1, 8>}, {pipeline_mode = #tpu.pipeline_mode<synchronous>, transform_indices = @transform_3, window_bounds = array<i64: 1, 1, 8>}, {transform_indices = @transform_4, window_bounds = array<i64: 1, 1, 8, 8, 8>}]} {
    %c0 = arith.constant 0 : index
    %c0_0 = arith.constant 0 : index
    %c0_1 = arith.constant 0 : index
    %c0_2 = arith.constant 0 : index
    %c0_3 = arith.constant 0 : index
    %0 = vector.load %arg2[%c0, %c0_0, %c0_1, %c0_2, %c0_3] : memref<1x1x8x10x8xbf16, #tpu.memory_space<vmem>>, vector<1x1x8x8x8xbf16>
    %1 = vector.shape_cast %0 : vector<1x1x8x8x8xbf16> to vector<8x8x8xbf16>
    %2 = arith.extf %1 : vector<8x8x8xbf16> to vector<8x8x8xf32>
    %c0_4 = arith.constant 0 : index
    %c0_5 = arith.constant 0 : index
    %c0_6 = arith.constant 0 : index
    %3 = vector.load %arg4[%c0_4, %c0_5, %c0_6] : memref<1x1x8xf32, #tpu.memory_space<vmem>>, vector<1x1x8xf32>
    %4 = vector.broadcast %3 : vector<1x1x8xf32> to vector<8x8x8xf32>
    %5 = arith.mulf %2, %4 : vector<8x8x8xf32>
    %c0_7 = arith.constant 0 : index
    %c0_8 = arith.constant 0 : index
    %c0_9 = arith.constant 0 : index
    %6 = vector.load %arg5[%c0_7, %c0_8, %c0_9] : memref<1x1x8xf32, #tpu.memory_space<vmem>>, vector<1x1x8xf32>
    %7 = vector.broadcast %6 : vector<1x1x8xf32> to vector<8x8x8xf32>
    %8 = arith.addf %5, %7 : vector<8x8x8xf32>
    %c0_10 = arith.constant 0 : index
    %c0_11 = arith.constant 0 : index
    %c0_12 = arith.constant 0 : index
    %c0_13 = arith.constant 0 : index
    %c0_14 = arith.constant 0 : index
    %9 = vector.load %arg3[%c0_10, %c0_11, %c0_12, %c0_13, %c0_14] : memref<1x1x8x8x8xf32, #tpu.memory_space<vmem>>, vector<1x1x8x8x8xf32>
    %10 = vector.shape_cast %9 : vector<1x1x8x8x8xf32> to vector<8x8x8xf32>
    %11 = arith.addf %8, %10 : vector<8x8x8xf32>
    %cst = arith.constant 0.000000e+00 : f32
    %12 = vector.broadcast %cst : f32 to vector<8x8x8xf32>
    %13 = arith.maximumf %11, %12 : vector<8x8x8xf32>
    %c0_15 = arith.constant 0 : index
    %c0_16 = arith.constant 0 : index
    %c0_17 = arith.constant 0 : index
    %c0_18 = arith.constant 0 : index
    %c0_19 = arith.constant 0 : index
    %14 = vector.load %arg6[%c0_15, %c0_16, %c0_17, %c0_18, %c0_19] : memref<1x1x8x8x8xf32, #tpu.memory_space<vmem>>, vector<1x1x8x8x8xf32>
    %15 = vector.shape_cast %14 : vector<1x1x8x8x8xf32> to vector<8x8x8xf32>
    %16 = vector.shape_cast %13 : vector<8x8x8xf32> to vector<1x1x8x8x8xf32>
    tpu.vector_store %arg6[%c0_15, %c0_16, %c0_17, %c0_18, %c0_19], %16 {strides = array<i32>} : memref<1x1x8x8x8xf32, #tpu.memory_space<vmem>>, vector<1x1x8x8x8xf32>,
    return
  }
  func.func @transform_0(%arg0: i32, %arg1: i32) -> (i32, i32, i32, i32, i32) {
    %c0_i32 = arith.constant 0 : i32
    %c0_i32_0 = arith.constant 0 : i32
    %c0_i32_1 = arith.constant 0 : i32
    %c0_i32_2 = arith.constant 0 : i32
    return %arg0, %arg1, %c0_i32, %c0_i32_0, %c0_i32_1 : i32, i32, i32, i32, i32
  }
  func.func @transform_1(%arg0: i32, %arg1: i32) -> (i32, i32, i32, i32, i32) {
    %c0_i32 = arith.constant 0 : i32
    %c0_i32_0 = arith.constant 0 : i32
    %c0_i32_1 = arith.constant 0 : i32
    %c0_i32_2 = arith.constant 0 : i32
    return %arg0, %arg1, %c0_i32, %c0_i32_0, %c0_i32_1 : i32, i32, i32, i32, i32
  }
  func.func @transform_2(%arg0: i32, %arg1: i32) -> (i32, i32, i32) {
    %c0_i32 = arith.constant 0 : i32
    %c0_i32_0 = arith.constant 0 : i32
    %c0_i32_1 = arith.constant 0 : i32
    %c0_i32_2 = arith.constant 0 : i32
    return %c0_i32, %c0_i32_0, %c0_i32_1 : i32, i32, i32
  }
  func.func @transform_3(%arg0: i32, %arg1: i32) -> (i32, i32, i32) {
    %c0_i32 = arith.constant 0 : i32
    %c0_i32_0 = arith.constant 0 : i32
    %c0_i32_1 = arith.constant 0 : i32
    %c0_i32_2 = arith.constant 0 : i32
    return %c0_i32, %c0_i32_0, %c0_i32_1 : i32, i32, i32
  }
  func.func @transform_4(%arg0: i32, %arg1: i32) -> (i32, i32, i32, i32, i32) {
    %c0_i32 = arith.constant 0 : i32
    %c0_i32_0 = arith.constant 0 : i32
    %c0_i32_1 = arith.constant 0 : i32
    %c0_i32_2 = arith.constant 0 : i32
    return %arg0, %arg1, %c0_i32, %c0_i32_0, %c0_i32_1 : i32, i32, i32, i32, i32
  }
}

module attributes {stable_mosaic.version = 11 : i64} {
  func.func @kernel(%arg0: i32, %arg1: i32, %arg2: memref<8x10x1xf32, #tpu.memory_space<vmem>>, %arg3: memref<1x1x8x10x8xbf16, #tpu.memory_space<vmem>>, %arg4: memref<1x1x8xf32, #tpu.memory_space<vmem>>, %arg5: memref<1x1x8xf32, #tpu.memory_space<vmem>>, %arg6: memref<1x1x12x10x8xbf16, #tpu.memory_space<vmem>>) attributes {dimension_semantics = [#tpu.dimension_semantics<parallel>, #tpu.dimension_semantics<parallel>], iteration_bounds = array<i64: 2, 10>, scalar_prefetch = 0 : i64, scratch_operands = 0 : i64, tpu.core_type = #tpu.core_type<tc>, window_params = [{pipeline_mode = #tpu.pipeline_mode<synchronous>, transform_indices = @transform_0, window_bounds = array<i64: 8, 10, 1>}, {transform_indices = @transform_1, window_bounds = array<i64: 1, 1, 8, 10, 8>}, {pipeline_mode = #tpu.pipeline_mode<synchronous>, transform_indices = @transform_2, window_bounds = array<i64: 1, 1, 8>}, {pipeline_mode = #tpu.pipeline_mode<synchronous>, transform_indices = @transform_3, window_bounds = array<i64: 1, 1, 8>}, {transform_indices = @transform_4, window_bounds = array<i64: 1, 1, 12, 10, 8>}]} {
    %c1_i32 = arith.constant 1 : i32
    %0 = arith.cmpi sge, %arg1, %c1_i32 : i32
    %c8_i32 = arith.constant 8 : i32
    %1 = arith.cmpi sle, %arg1, %c8_i32 : i32
    %2 = arith.andi %0, %1 : i1
    %c0 = arith.constant 0 : index
    %c0_0 = arith.constant 0 : index
    %c0_1 = arith.constant 0 : index
    %c0_2 = arith.constant 0 : index
    %c0_3 = arith.constant 0 : index
    %3 = vector.load %arg3[%c0, %c0_0, %c0_1, %c0_2, %c0_3] : memref<1x1x8x10x8xbf16, #tpu.memory_space<vmem>>, vector<1x1x8x10x8xbf16>
    %4 = vector.shape_cast %3 : vector<1x1x8x10x8xbf16> to vector<8x10x8xbf16>
    %5 = arith.extf %4 : vector<8x10x8xbf16> to vector<8x10x8xf32>
    %c0_4 = arith.constant 0 : index
    %c0_5 = arith.constant 0 : index
    %c0_6 = arith.constant 0 : index
    %6 = vector.load %arg4[%c0_4, %c0_5, %c0_6] : memref<1x1x8xf32, #tpu.memory_space<vmem>>, vector<1x1x8xf32>
    %7 = vector.broadcast %6 : vector<1x1x8xf32> to vector<8x10x8xf32>
    %8 = arith.mulf %5, %7 : vector<8x10x8xf32>
    %c0_7 = arith.constant 0 : index
    %c0_8 = arith.constant 0 : index
    %c0_9 = arith.constant 0 : index
    %9 = vector.load %arg5[%c0_7, %c0_8, %c0_9] : memref<1x1x8xf32, #tpu.memory_space<vmem>>, vector<1x1x8xf32>
    %10 = vector.broadcast %9 : vector<1x1x8xf32> to vector<8x10x8xf32>
    %11 = arith.addf %8, %10 : vector<8x10x8xf32>
    %cst = arith.constant 0.000000e+00 : f32
    %12 = vector.broadcast %cst : f32 to vector<8x10x8xf32>
    %13 = arith.maximumf %11, %12 : vector<8x10x8xf32>
    %c0_10 = arith.constant 0 : index
    %c0_11 = arith.constant 0 : index
    %c0_12 = arith.constant 0 : index
    %14 = vector.load %arg2[%c0_10, %c0_11, %c0_12] : memref<8x10x1xf32, #tpu.memory_space<vmem>>, vector<8x10x1xf32>
    %cst_13 = arith.constant 5.000000e-01 : f32
    %15 = vector.broadcast %cst_13 : f32 to vector<8x10x1xf32>
    %16 = arith.cmpf ogt, %14, %15 : vector<8x10x1xf32>
    %17 = vector.broadcast %2 : i1 to vector<8x10x1xi1>
    %18 = arith.andi %16, %17 : vector<8x10x1xi1>
    %cst_14 = arith.constant 0.000000e+00 : f32
    %19 = vector.shape_cast %18 : vector<8x10x1xi1> to vector<8x10x1xi1>
    %20 = vector.broadcast %19 : vector<8x10x1xi1> to vector<8x10x8xi1>
    %21 = vector.broadcast %cst_14 : f32 to vector<8x10x8xf32>
    %22 = arith.select %20, %13, %21 : vector<8x10x8xi1>, vector<8x10x8xf32>
    %23 = arith.truncf %22 : vector<8x10x8xf32> to vector<8x10x8xbf16>
    %cst_15 = arith.constant 0.000000e+00 : bf16
    %24 = vector.broadcast %cst_15 : bf16 to vector<2x10x8xbf16>
    %c0_16 = arith.constant 0 : index
    %c0_17 = arith.constant 0 : index
    %c0_18 = arith.constant 0 : index
    %c0_19 = arith.constant 0 : index
    %c0_20 = arith.constant 0 : index
    %25 = vector.load %arg6[%c0_16, %c0_17, %c0_18, %c0_19, %c0_20] : memref<1x1x12x10x8xbf16, #tpu.memory_space<vmem>>, vector<1x1x2x10x8xbf16>
    %26 = vector.shape_cast %25 : vector<1x1x2x10x8xbf16> to vector<2x10x8xbf16>
    %27 = vector.shape_cast %24 : vector<2x10x8xbf16> to vector<1x1x2x10x8xbf16>
    tpu.vector_store %arg6[%c0_16, %c0_17, %c0_18, %c0_19, %c0_20], %27 {strides = array<i32>} : memref<1x1x12x10x8xbf16, #tpu.memory_space<vmem>>, vector<1x1x2x10x8xbf16>,
    %c0_21 = arith.constant 0 : index
    %c0_22 = arith.constant 0 : index
    %c2 = arith.constant 2 : index
    %c0_23 = arith.constant 0 : index
    %c0_24 = arith.constant 0 : index
    %28 = vector.load %arg6[%c0_21, %c0_22, %c2, %c0_23, %c0_24] : memref<1x1x12x10x8xbf16, #tpu.memory_space<vmem>>, vector<1x1x8x10x8xbf16>
    %29 = vector.shape_cast %28 : vector<1x1x8x10x8xbf16> to vector<8x10x8xbf16>
    %30 = vector.shape_cast %23 : vector<8x10x8xbf16> to vector<1x1x8x10x8xbf16>
    tpu.vector_store %arg6[%c0_21, %c0_22, %c2, %c0_23, %c0_24], %30 {strides = array<i32>} : memref<1x1x12x10x8xbf16, #tpu.memory_space<vmem>>, vector<1x1x8x10x8xbf16>,
    %c0_25 = arith.constant 0 : index
    %c0_26 = arith.constant 0 : index
    %c10 = arith.constant 10 : index
    %c0_27 = arith.constant 0 : index
    %c0_28 = arith.constant 0 : index
    %31 = vector.load %arg6[%c0_25, %c0_26, %c10, %c0_27, %c0_28] : memref<1x1x12x10x8xbf16, #tpu.memory_space<vmem>>, vector<1x1x2x10x8xbf16>
    %32 = vector.shape_cast %31 : vector<1x1x2x10x8xbf16> to vector<2x10x8xbf16>
    %33 = vector.shape_cast %24 : vector<2x10x8xbf16> to vector<1x1x2x10x8xbf16>
    tpu.vector_store %arg6[%c0_25, %c0_26, %c10, %c0_27, %c0_28], %33 {strides = array<i32>} : memref<1x1x12x10x8xbf16, #tpu.memory_space<vmem>>, vector<1x1x2x10x8xbf16>,
    return
  }
  func.func @transform_0(%arg0: i32, %arg1: i32) -> (i32, i32, i32) {
    %c0_i32 = arith.constant 0 : i32
    %c0_i32_0 = arith.constant 0 : i32
    %c0_i32_1 = arith.constant 0 : i32
    %c0_i32_2 = arith.constant 0 : i32
    return %c0_i32, %c0_i32_0, %c0_i32_1 : i32, i32, i32
  }
  func.func @transform_1(%arg0: i32, %arg1: i32) -> (i32, i32, i32, i32, i32) {
    %c1_i32 = arith.constant 1 : i32
    %0 = arith.subi %arg1, %c1_i32 : i32
    %c0_i32 = arith.constant 0 : i32
    %c7_i32 = arith.constant 7 : i32
    %1 = arith.maxsi %c0_i32, %0 : i32
    %2 = arith.minsi %c7_i32, %1 : i32
    %c0_i32_0 = arith.constant 0 : i32
    %c0_i32_1 = arith.constant 0 : i32
    %c0_i32_2 = arith.constant 0 : i32
    %c0_i32_3 = arith.constant 0 : i32
    return %arg0, %2, %c0_i32_0, %c0_i32_1, %c0_i32_2 : i32, i32, i32, i32, i32
  }
  func.func @transform_2(%arg0: i32, %arg1: i32) -> (i32, i32, i32) {
    %c0_i32 = arith.constant 0 : i32
    %c0_i32_0 = arith.constant 0 : i32
    %c0_i32_1 = arith.constant 0 : i32
    %c0_i32_2 = arith.constant 0 : i32
    return %c0_i32, %c0_i32_0, %c0_i32_1 : i32, i32, i32
  }
  func.func @transform_3(%arg0: i32, %arg1: i32) -> (i32, i32, i32) {
    %c0_i32 = arith.constant 0 : i32
    %c0_i32_0 = arith.constant 0 : i32
    %c0_i32_1 = arith.constant 0 : i32
    %c0_i32_2 = arith.constant 0 : i32
    return %c0_i32, %c0_i32_0, %c0_i32_1 : i32, i32, i32
  }
  func.func @transform_4(%arg0: i32, %arg1: i32) -> (i32, i32, i32, i32, i32) {
    %c0_i32 = arith.constant 0 : i32
    %c0_i32_0 = arith.constant 0 : i32
    %c0_i32_1 = arith.constant 0 : i32
    %c0_i32_2 = arith.constant 0 : i32
    return %arg0, %arg1, %c0_i32, %c0_i32_0, %c0_i32_1 : i32, i32, i32, i32, i32
  }
}

</mosaic_0001>

<llo_original>
// kernel: basic_block_3d.7
$region0: #{basic_block_3d.7}
  #allocation0 [shape = 'u32[]', space=smem, size = 0x4, offset = 0x4, fixed_abs, tag = 'smem constant byte address 0x4 - core index']
  #allocation1 [shape = 'u32[144,128]{1,0:T(1,128)}', space=vmem, size = 0x12000, scoped, tag = 'internal scratch']
  %s0 = inlined_call_operand.vmem [shape: bf16[2,8,8,10,8], index: 0, kind: input, shape index: {}]
  %s1 = inlined_call_operand.vmem [shape: f32[2,8,8,8,8], index: 1, kind: input, shape index: {}]
  %s2 = inlined_call_operand.vmem [shape: f32[1,1,8], index: 2, kind: input, shape index: {}]
  %s3 = inlined_call_operand.vmem [shape: f32[1,1,8], index: 3, kind: input, shape index: {}]
  %s4 = inlined_call_operand.hbm [shape: f32[2,8,8,8,8], index: 4, kind: output, shape index: {}]
  %s5 = sld [smem:[#allocation0]]
  $region49: #{basic_block_3d.7} parent=0
    _
  %s7 = ssub.s32 1, %s5
  %s8 = scalar_select 0, %s7, %s5
  $region1: #{basic_block_3d.7} parent=0
    #allocation2 [shape = 'u8[65536]{0}', space=vmem, size = 0x10000, scoped, tag = 'output window, operand 0']
    #allocation3 [shape = 's32[2]{0}', space=sflag, size = 0x8, scoped, tag = 'scoped memory for basic_block_3d.7']
    %9 = vsyncpa [#allocation3], 0
    %s10 = scalar_lea.sflag [#allocation3], 1
    %11 = vsyncpa %s10, 0
    loop: start=0, step=1, limit=18
    $region2: #{basic_block_3d.7} parent=1 // loop_pre_header
      _
    $region3: #{basic_block_3d.7} parent=1 // loop_header
      %s13 = sphi 0, %s17
      %p14 = scmp.ge.s32.totalorder %s13, 18
      %s20 = sphi 0, %s32
      %s21 = sphi 0, %s28
      %s22 = sphi 0, %s20
      %s23 = sphi 0, %s21
      %s24 = sphi 0, %s22
      %s25 = sphi 0, %s23
      %s37 = sphi 0, %s39
      %s40 = sphi 0, %s37
      %s41 = sphi 0, %s40
      %s57 = sphi 0, %s41
      %s65 = sphi 0, %s67
      %s68 = sphi 0, %s65
      %s69 = sphi 0, %s68
      %s85 = sphi 0, %s69
      %s89 = sphi 0, %s89
      %s91 = sphi 0, %s89
      %s92 = sphi 0, %s91
      %s106 = sphi 0, %s92
      %s110 = sphi 0, %s110
      %s112 = sphi 0, %s110
      %s113 = sphi 0, %s112
      %s127 = sphi 0, %s113
      %s135 = sphi 0, %s137
      %s138 = sphi 0, %s135
      %s139 = sphi 0, %s138
      %s155 = sphi 0, %s139
    $region4: #{basic_block_3d.7} parent=1 // loop_header_branch
      %16 = sbr.rel (%p14) target = $region8
    $region5: #{basic_block_3d.7} parent=1 // loop_body
      %s18 = ssub.s32 %s13, 1
      %s19 = ssub.s32 %s13, 2
      %s26 = sadd.s32 1, %s21
      %p27 = scmp.ge.s32.totalorder %s26, 8
      %s28 = scalar_select %p27, 0, %s26
      %s29 = sadd.s32 1, %s20
      %s30 = scalar_select %p27, %s29, %s20
      %p31 = scmp.ge.s32.totalorder %s30, 2
      %s32 = scalar_select %p31, 0, %s30
      %s33 = ssub.s32 %s20, %s32
      %s34 = ssub.s32 %s21, %s28
      %s35 = sor.u32 %s33, %s34
      %p36 = scmp.eq.s32.totalorder %s35, 0
      %s38 = sadd.s32 %s37, 1
      %s39 = scalar_select %p36, %s37, %s38
      %p42 = pneg %p36
      %p43 = scmp.eq.s32.totalorder %s13, 15
      %p44 = por %p42, %p43
      %p45 = scmp.ne.s32.totalorder %s37, %s40
      %p46 = scmp.eq.s32.totalorder %s13, 0
      %p47 = por %p45, %p46
      %p48 = scmp.ne.s32.totalorder %s37, %s40
      %p49 = scmp.eq.s32.totalorder %s18, 15
      %p50 = por %p48, %p49
      %p51 = scmp.ne.s32.totalorder %s40, %s41
      %p52 = scmp.eq.s32.totalorder %s18, 0
      %p53 = por %p51, %p52
      %p54 = scmp.ne.s32.totalorder %s40, %s41
      %p55 = scmp.eq.s32.totalorder %s19, 15
      %p56 = por %p54, %p55
      %p58 = scmp.ne.s32.totalorder %s41, %s57
      %p59 = scmp.eq.s32.totalorder %s19, 0
      %p60 = por %p58, %p59
      %s61 = ssub.s32 %s20, %s32
      %s62 = ssub.s32 %s21, %s28
      %s63 = sor.u32 %s61, %s62
      %p64 = scmp.eq.s32.totalorder %s63, 0
      %s66 = sadd.s32 %s65, 1
      %s67 = scalar_select %p64, %s65, %s66
      %p70 = pneg %p64
      %p71 = scmp.eq.s32.totalorder %s13, 15
      %p72 = por %p70, %p71
      %p73 = scmp.ne.s32.totalorder %s65, %s68
      %p74 = scmp.eq.s32.totalorder %s13, 0
      %p75 = por %p73, %p74
      %p76 = scmp.ne.s32.totalorder %s65, %s68
      %p77 = scmp.eq.s32.totalorder %s18, 15
      %p78 = por %p76, %p77
      %p79 = scmp.ne.s32.totalorder %s68, %s69
      %p80 = scmp.eq.s32.totalorder %s18, 0
      %p81 = por %p79, %p80
      %p82 = scmp.ne.s32.totalorder %s68, %s69
      %p83 = scmp.eq.s32.totalorder %s19, 15
      %p84 = por %p82, %p83
      %p86 = scmp.ne.s32.totalorder %s69, %s85
      %p87 = scmp.eq.s32.totalorder %s19, 0
      %p88 = por %p86, %p87
      %s90 = sadd.s32 %s89, 1
      %p93 = scmp.eq.s32.totalorder %s13, 15
      %p94 = scmp.ne.s32.totalorder %s89, %s91
      %p95 = scmp.eq.s32.totalorder %s13, 0
      %p96 = por %p94, %p95
      %p97 = scmp.ne.s32.totalorder %s89, %s91
      %p98 = scmp.eq.s32.totalorder %s18, 15
      %p99 = por %p97, %p98
      %p100 = scmp.ne.s32.totalorder %s91, %s92
      %p101 = scmp.eq.s32.totalorder %s18, 0
      %p102 = por %p100, %p101
      %p103 = scmp.ne.s32.totalorder %s91, %s92
      %p104 = scmp.eq.s32.totalorder %s19, 15
      %p105 = por %p103, %p104
      %p107 = scmp.ne.s32.totalorder %s92, %s106
      %p108 = scmp.eq.s32.totalorder %s19, 0
      %p109 = por %p107, %p108
      %s111 = sadd.s32 %s110, 1
      %p114 = scmp.eq.s32.totalorder %s13, 15
      %p115 = scmp.ne.s32.totalorder %s110, %s112
      %p116 = scmp.eq.s32.totalorder %s13, 0
      %p117 = por %p115, %p116
      %p118 = scmp.ne.s32.totalorder %s110, %s112
      %p119 = scmp.eq.s32.totalorder %s18, 15
      %p120 = por %p118, %p119
      %p121 = scmp.ne.s32.totalorder %s112, %s113
      %p122 = scmp.eq.s32.totalorder %s18, 0
      %p123 = por %p121, %p122
      %p124 = scmp.ne.s32.totalorder %s112, %s113
      %p125 = scmp.eq.s32.totalorder %s19, 15
      %p126 = por %p124, %p125
      %p128 = scmp.ne.s32.totalorder %s113, %s127
      %p129 = scmp.eq.s32.totalorder %s19, 0
      %p130 = por %p128, %p129
      %s131 = ssub.s32 %s20, %s32
      %s132 = ssub.s32 %s21, %s28
      %s133 = sor.u32 %s131, %s132
      %p134 = scmp.eq.s32.totalorder %s133, 0
      %s136 = sadd.s32 %s135, 1
      %s137 = scalar_select %p134, %s135, %s136
      %p140 = pneg %p134
      %p141 = scmp.eq.s32.totalorder %s13, 15
      %p142 = por %p140, %p141
      %p143 = scmp.ne.s32.totalorder %s135, %s138
      %p144 = scmp.eq.s32.totalorder %s13, 0
      %p145 = por %p143, %p144
      %p146 = scmp.ne.s32.totalorder %s135, %s138
      %p147 = scmp.eq.s32.totalorder %s18, 15
      %p148 = por %p146, %p147
      %p149 = scmp.ne.s32.totalorder %s138, %s139
      %p150 = scmp.eq.s32.totalorder %s18, 0
      %p151 = por %p149, %p150
      %p152 = scmp.ne.s32.totalorder %s138, %s139
      %p153 = scmp.eq.s32.totalorder %s19, 15
      %p154 = por %p152, %p153
      %p156 = scmp.ne.s32.totalorder %s139, %s155
      %p157 = scmp.eq.s32.totalorder %s19, 0
      %p158 = por %p156, %p157
      %p159 = scmp.le.s32.totalorder 1, %s13
      %p160 = scmp.lt.s32.totalorder %s13, 17
      %p161 = pnand %p159, %p160
      %p162 = pneg %p161
      // Predicated region
      $region9: #{basic_block_3d.7} parent=5 // pred_check
        _
      $region10: #{basic_block_3d.7} parent=5 // pred_check_branch
        %164 = sbr.rel (%p161) target = $region12
      $region11: #{basic_block_3d.7} parent=5 // pred_region
        %s165 = ssub.s32 %s13, 1
        // Predicated region
        $region13: #{basic_block_3d.7} parent=11 // pred_check
          %p166 = pneg %p102
        $region14: #{basic_block_3d.7} parent=11 // pred_check_branch
          %168 = sbr.rel (%p166) target = $region16
        $region15: #{basic_block_3d.7} parent=11 // pred_region
          _
        $region16: #{basic_block_3d.7} parent=11 // pred_fallthru
          _
        // Predicated region
        $region17: #{basic_block_3d.7} parent=11 // pred_check
          %p169 = pneg %p123
        $region18: #{basic_block_3d.7} parent=11 // pred_check_branch
          %171 = sbr.rel (%p169) target = $region20
        $region19: #{basic_block_3d.7} parent=11 // pred_region
          _
        $region20: #{basic_block_3d.7} parent=11 // pred_fallthru
          _
      $region12: #{basic_block_3d.7} parent=5 // pred_fallthru
        _
      %p172 = scmp.lt.s32.totalorder %s13, 16
      // Predicated region
      $region21: #{basic_block_3d.7} parent=5 // pred_check
        %p173 = pneg %p172
      $region22: #{basic_block_3d.7} parent=5 // pred_check_branch
        %175 = sbr.rel (%p173) target = $region24
      $region23: #{basic_block_3d.7} parent=5 // pred_region
        // Predicated region
        $region25: #{basic_block_3d.7} parent=23 // pred_check
          %p176 = pneg %p47
        $region26: #{basic_block_3d.7} parent=23 // pred_check_branch
          %178 = sbr.rel (%p176) target = $region28
        $region27: #{basic_block_3d.7} parent=23 // pred_region
          %p179 = scmp.lt.s32.totalorder %s20, 1
          %s180 = scalar_select %p179, %s20, 1
          %p181 = scmp.lt.s32.totalorder %s21, 7
          %s182 = scalar_select %p181, %s21, 7
          %s183 = smul.addr %s182, 16
          %s184 = smul.addr %s180, 128
          %s185 = sadd.s32 %s183, %s184
          %s186 = smul.addr %s185, 4
          %s187 = scalar_lea.vmem %s0, %s186
        $region28: #{basic_block_3d.7} parent=23 // pred_fallthru
          _
        // Predicated region
        $region29: #{basic_block_3d.7} parent=23 // pred_check
          %p188 = pneg %p75
        $region30: #{basic_block_3d.7} parent=23 // pred_check_branch
          %190 = sbr.rel (%p188) target = $region32
        $region31: #{basic_block_3d.7} parent=23 // pred_region
          %p191 = scmp.lt.s32.totalorder %s20, 1
          %s192 = scalar_select %p191, %s20, 1
          %p193 = scmp.lt.s32.totalorder %s21, 7
          %s194 = scalar_select %p193, %s21, 7
          %s195 = smul.addr %s194, 8
          %s196 = smul.addr %s192, 64
          %s197 = sadd.s32 %s195, %s196
          %s198 = smul.addr %s197, 8
          %s199 = scalar_lea.vmem %s1, %s198
        $region32: #{basic_block_3d.7} parent=23 // pred_fallthru
          _
      $region24: #{basic_block_3d.7} parent=5 // pred_fallthru
        _
      %p200 = scmp.le.s32.totalorder 1, %s13
      %p201 = scmp.lt.s32.totalorder %s13, 17
      %p202 = pnand %p200, %p201
      %p203 = pneg %p202
      // Predicated region
      $region33: #{basic_block_3d.7} parent=5 // pred_check
        _
      $region34: #{basic_block_3d.7} parent=5 // pred_check_branch
        %205 = sbr.rel (%p202) target = $region36
      $region35: #{basic_block_3d.7} parent=5 // pred_region
        %s206 = ssub.s32 %s13, 1
        %p207 = scmp.lt.s32.totalorder %s22, 1
        %s208 = scalar_select %p207, %s22, 1
        %p209 = scmp.lt.s32.totalorder %s23, 7
        %s210 = scalar_select %p209, %s23, 7
        %s211 = smul.addr %s210, 16
        %s212 = smul.addr %s208, 128
        %s213 = sadd.s32 %s211, %s212
        %s214 = smul.addr %s213, 4
        %s215 = scalar_lea.vmem %s0, %s214
        %p216 = pneg %p53
        %p217 = pneg %p50
        %p218 = scmp.lt.s32.totalorder %s22, 1
        %s219 = scalar_select %p218, %s22, 1
        %p220 = scmp.lt.s32.totalorder %s23, 7
        %s221 = scalar_select %p220, %s23, 7
        %s222 = smul.addr %s221, 8
        %s223 = smul.addr %s219, 64
        %s224 = sadd.s32 %s222, %s223
        %s225 = smul.addr %s224, 8
        %s226 = scalar_lea.vmem %s1, %s225
        %p227 = pneg %p81
        %p228 = pneg %p78
        %p229 = pneg %p102
        %p230 = pneg %p99
        %p231 = pneg %p123
        %p232 = pneg %p120
        %p233 = pneg %p151
        %p234 = pneg %p148
        %s235 = sand.u32 %s138, 1
        %s236 = scalar_lea.sflag [#allocation3], %s235
        %s237 = sand.u32 %s138, 1
        %s238 = smul.addr %s237, 64
        %s239 = scalar_lea.vmem [#allocation2], %s238
        %p240 = scmp.lt.s32.totalorder %s22, 1
        %s241 = scalar_select %p240, %s22, 1
        %p242 = scmp.lt.s32.totalorder %s23, 7
        %s243 = scalar_select %p242, %s23, 7
        %s244 = smul.addr %s243, 16
        %s245 = smul.addr %s241, 128
        %s246 = sadd.s32 %s244, %s245
        %s247 = smul.addr %s246, 4
        %s248 = scalar_lea.vmem %s0, %s247
        %p249 = scmp.lt.s32.totalorder %s22, 1
        %s250 = scalar_select %p249, %s22, 1
        %p251 = scmp.lt.s32.totalorder %s23, 7
        %s252 = scalar_select %p251, %s23, 7
        %s253 = smul.addr %s252, 8
        %s254 = smul.addr %s250, 64
        %s255 = sadd.s32 %s253, %s254
        %s256 = smul.addr %s255, 8
        %s257 = scalar_lea.vmem %s1, %s256
        %v258 = vld [vmem:[%s248] sm:$0xf]
        %v259 = vld [vmem:[%s248 + $0x8] sm:$0xf]
        %v260 = vld [vmem:[%s248 + $0x10] sm:$0xf]
        %v261 = vld [vmem:[%s248 + $0x18] sm:$0xf]
        %v262 = vld [vmem:[%s248 + $0x20] sm:$0xf]
        %v263 = vld [vmem:[%s248 + $0x28] sm:$0xf]
        %v264 = vld [vmem:[%s248 + $0x30] sm:$0xf]
        %v265 = vld [vmem:[%s248 + $0x38] sm:$0xf]
        %v266 = vunpack.c.l.bf16 %v258
        %v267 = vunpack.c.l.bf16 %v259
        %v268 = vunpack.c.l.bf16 %v260
        %v269 = vunpack.c.l.bf16 %v261
        %v270 = vunpack.c.l.bf16 %v262
        %v271 = vunpack.c.l.bf16 %v263
        %v272 = vunpack.c.l.bf16 %v264
        %v273 = vunpack.c.l.bf16 %v265
        %v274 = vld [vmem:[%s2] sm:$0x1]
        %v276 = vlaneseq
        %v277 = vshrl.u32 %v276, 7
        %v278 = vsub.s32 0, %v277
        %v279 = vrot.slane %v274, %v278
        %v281 = vmul.f32 %v266, %v279
        %v282 = vmul.f32 %v267, %v279
        %v283 = vmul.f32 %v268, %v279
        %v284 = vmul.f32 %v269, %v279
        %v285 = vmul.f32 %v270, %v279
        %v286 = vmul.f32 %v271, %v279
        %v287 = vmul.f32 %v272, %v279
        %v288 = vmul.f32 %v273, %v279
        %v289 = vld [vmem:[%s3] sm:$0x1]
        %v291 = vlaneseq
        %v292 = vshrl.u32 %v291, 7
        %v293 = vsub.s32 0, %v292
        %v294 = vrot.slane %v289, %v293
        %v296 = vadd.f32 %v281, %v294
        %v297 = vadd.f32 %v282, %v294
        %v298 = vadd.f32 %v283, %v294
        %v299 = vadd.f32 %v284, %v294
        %v300 = vadd.f32 %v285, %v294
        %v301 = vadd.f32 %v286, %v294
        %v302 = vadd.f32 %v287, %v294
        %v303 = vadd.f32 %v288, %v294
        %v304 = vld [vmem:[%s257] sm:$0xff]
        %v305 = vld [vmem:[%s257 + $0x8] sm:$0xff]
        %v306 = vld [vmem:[%s257 + $0x10] sm:$0xff]
        %v307 = vld [vmem:[%s257 + $0x18] sm:$0xff]
        %v308 = vld [vmem:[%s257 + $0x20] sm:$0xff]
        %v309 = vld [vmem:[%s257 + $0x28] sm:$0xff]
        %v310 = vld [vmem:[%s257 + $0x30] sm:$0xff]
        %v311 = vld [vmem:[%s257 + $0x38] sm:$0xff]
        %v312 = vadd.f32 %v296, %v304
        %v313 = vadd.f32 %v297, %v305
        %v314 = vadd.f32 %v298, %v306
        %v315 = vadd.f32 %v299, %v307
        %v316 = vadd.f32 %v300, %v308
        %v317 = vadd.f32 %v301, %v309
        %v318 = vadd.f32 %v302, %v310
        %v319 = vadd.f32 %v303, %v311
        %v320 = vmax.f32 %v312, 0.0
        %v321 = vmax.f32 %v313, 0.0
        %v322 = vmax.f32 %v314, 0.0
        %v323 = vmax.f32 %v315, 0.0
        %v324 = vmax.f32 %v316, 0.0
        %v325 = vmax.f32 %v317, 0.0
        %v326 = vmax.f32 %v318, 0.0
        %v327 = vmax.f32 %v319, 0.0
        %vm328 = vcmask 64512
        %329 = vst.msk [vmem:[%s239] sm:$0xff] %vm328, %v320
        %330 = vst.msk [vmem:[%s239 + $0x8] sm:$0xff] %vm328, %v321
        %331 = vst.msk [vmem:[%s239 + $0x10] sm:$0xff] %vm328, %v322
        %332 = vst.msk [vmem:[%s239 + $0x18] sm:$0xff] %vm328, %v323
        %333 = vst.msk [vmem:[%s239 + $0x20] sm:$0xff] %vm328, %v324
        %334 = vst.msk [vmem:[%s239 + $0x28] sm:$0xff] %vm328, %v325
        %335 = vst.msk [vmem:[%s239 + $0x30] sm:$0xff] %vm328, %v326
        %336 = vst.msk [vmem:[%s239 + $0x38] sm:$0xff] %vm328, %v327
        %s337 = sand.u32 %s138, 1
        %s338 = scalar_lea.sflag [#allocation3], %s337
        %s339 = sand.u32 %s138, 1
        %s340 = smul.addr %s339, 64
        %s341 = scalar_lea.vmem [#allocation2], %s340
        // Predicated region
        $region37: #{basic_block_3d.7} parent=35 // pred_check
          %p342 = pneg %p148
        $region38: #{basic_block_3d.7} parent=35 // pred_check_branch
          %344 = sbr.rel (%p342) target = $region40
        $region39: #{basic_block_3d.7} parent=35 // pred_region
          %s346 = ssub.s32 1024, 1024
          %347 = vsyncadd %s338, %s346
          %s348 = smul.addr %s23, 8
          %s349 = smul.addr %s22, 64
          %s350 = sadd.s32 %s348, %s349
          %s351 = smul.addr %s350, 128
          %s352 = scalar_lea.hbm %s4, %s351
          %s353 = sshll.u32 %s341, 4
          %s354 = int_to_ptr.vmem [resolvable:$true] %s353
          %359 = dma.vmem_to_hbm [thread:$0]  %s354, 1024, %s352, %s338, 128, 128, 8
        $region40: #{basic_block_3d.7} parent=35 // pred_fallthru
          _
      $region36: #{basic_block_3d.7} parent=5 // pred_fallthru
        _
      %p360 = scmp.le.s32.totalorder 2, %s13
      // Predicated region
      $region41: #{basic_block_3d.7} parent=5 // pred_check
        %p361 = pneg %p360
      $region42: #{basic_block_3d.7} parent=5 // pred_check_branch
        %363 = sbr.rel (%p361) target = $region44
      $region43: #{basic_block_3d.7} parent=5 // pred_region
        %s364 = ssub.s32 %s13, 2
        // Predicated region
        $region45: #{basic_block_3d.7} parent=43 // pred_check
          %p365 = pneg %p154
        $region46: #{basic_block_3d.7} parent=43 // pred_check_branch
          %367 = sbr.rel (%p365) target = $region48
        $region47: #{basic_block_3d.7} parent=43 // pred_region
          %s368 = sand.u32 %s139, 1
          %s369 = scalar_lea.sflag [#allocation3], %s368
          %s370 = sand.u32 %s139, 1
          %s371 = smul.addr %s370, 64
          %s372 = scalar_lea.vmem [#allocation2], %s371
          %373 = dma.done %s369, 1024
        $region48: #{basic_block_3d.7} parent=43 // pred_fallthru
          _
      $region44: #{basic_block_3d.7} parent=5 // pred_fallthru
        _
    $region6: #{basic_block_3d.7} parent=1 // loop_footer
      %s17 = sadd.s32 1, %s13
    $region7: #{basic_block_3d.7} parent=1 // loop_footer_branch
      %12 = sbr.rel target = $region3
    $region8: #{basic_block_3d.7} parent=1 // loop_exit
      _
    %374 = vsyncpa [#allocation3], 1
    %s375 = scalar_lea.sflag [#allocation3], 1
    %376 = vsyncpa %s375, 1

// kernel: basic_block_3d.5
$region0: #{basic_block_3d.5}
  #allocation0 [shape = 'u32[]', space=smem, size = 0x4, offset = 0x4, fixed_abs, tag = 'smem constant byte address 0x4 - core index']
  #allocation1 [shape = 'u32[144,128]{1,0:T(1,128)}', space=vmem, size = 0x12000, scoped, tag = 'internal scratch']
  %s0 = inlined_call_operand.vmem [shape: f32[8,10,1], index: 0, kind: input, shape index: {}]
  %s1 = inlined_call_operand.vmem [shape: bf16[2,8,8,10,8], index: 1, kind: input, shape index: {}]
  %s2 = inlined_call_operand.vmem [shape: f32[1,1,8], index: 2, kind: input, shape index: {}]
  %s3 = inlined_call_operand.vmem [shape: f32[1,1,8], index: 3, kind: input, shape index: {}]
  %s4 = inlined_call_operand.vmem [shape: bf16[2,10,12,10,8], index: 4, kind: output, shape index: {}]
  %s5 = sld [smem:[#allocation0]]
  $region49: #{basic_block_3d.5} parent=0
    _
  %s7 = ssub.s32 1, %s5
  %s8 = scalar_select 0, %s7, %s5
  loop: start=0, step=1, limit=22
  $region2: #{basic_block_3d.5} parent=0 // loop_pre_header
    _
  $region3: #{basic_block_3d.5} parent=0 // loop_header
    %s10 = sphi 0, %s14
    %p11 = scmp.ge.s32.totalorder %s10, 22
    %s17 = sphi 0, %s29
    %s18 = sphi 0, %s25
    %s19 = sphi 0, %s17
    %s20 = sphi 0, %s18
    %s21 = sphi 0, %s19
    %s22 = sphi 0, %s20
    %s30 = sphi 0, %s30
    %s32 = sphi 0, %s30
    %s33 = sphi 0, %s32
    %s47 = sphi 0, %s33
    %s65 = sphi 0, %s67
    %s68 = sphi 0, %s65
    %s69 = sphi 0, %s68
    %s85 = sphi 0, %s69
    %s89 = sphi 0, %s89
    %s91 = sphi 0, %s89
    %s92 = sphi 0, %s91
    %s106 = sphi 0, %s92
    %s110 = sphi 0, %s110
    %s112 = sphi 0, %s110
    %s113 = sphi 0, %s112
    %s127 = sphi 0, %s113
    %s135 = sphi 0, %s137
    %s138 = sphi 0, %s135
    %s139 = sphi 0, %s138
    %s155 = sphi 0, %s139
  $region4: #{basic_block_3d.5} parent=0 // loop_header_branch
    %13 = sbr.rel (%p11) target = $region8
  $region5: #{basic_block_3d.5} parent=0 // loop_body
    %s15 = ssub.s32 %s10, 1
    %s16 = ssub.s32 %s10, 2
    %s23 = sadd.s32 1, %s18
    %p24 = scmp.ge.s32.totalorder %s23, 10
    %s25 = scalar_select %p24, 0, %s23
    %s26 = sadd.s32 1, %s17
    %s27 = scalar_select %p24, %s26, %s17
    %p28 = scmp.ge.s32.totalorder %s27, 2
    %s29 = scalar_select %p28, 0, %s27
    %s31 = sadd.s32 %s30, 1
    %p34 = scmp.eq.s32.totalorder %s10, 19
    %p35 = scmp.ne.s32.totalorder %s30, %s32
    %p36 = scmp.eq.s32.totalorder %s10, 0
    %p37 = por %p35, %p36
    %p38 = scmp.ne.s32.totalorder %s30, %s32
    %p39 = scmp.eq.s32.totalorder %s15, 19
    %p40 = por %p38, %p39
    %p41 = scmp.ne.s32.totalorder %s32, %s33
    %p42 = scmp.eq.s32.totalorder %s15, 0
    %p43 = por %p41, %p42
    %p44 = scmp.ne.s32.totalorder %s32, %s33
    %p45 = scmp.eq.s32.totalorder %s16, 19
    %p46 = por %p44, %p45
    %p48 = scmp.ne.s32.totalorder %s33, %s47
    %p49 = scmp.eq.s32.totalorder %s16, 0
    %p50 = por %p48, %p49
    %s51 = ssub.s32 %s18, 1
    %p52 = scmp.gt.s32.totalorder %s51, 0
    %s53 = scalar_select %p52, %s51, 0
    %p54 = scmp.lt.s32.totalorder %s53, 7
    %s55 = scalar_select %p54, %s53, 7
    %s56 = ssub.s32 %s25, 1
    %p57 = scmp.gt.s32.totalorder %s56, 0
    %s58 = scalar_select %p57, %s56, 0
    %p59 = scmp.lt.s32.totalorder %s58, 7
    %s60 = scalar_select %p59, %s58, 7
    %s61 = ssub.s32 %s17, %s29
    %s62 = ssub.s32 %s55, %s60
    %s63 = sor.u32 %s61, %s62
    %p64 = scmp.eq.s32.totalorder %s63, 0
    %s66 = sadd.s32 %s65, 1
    %s67 = scalar_select %p64, %s65, %s66
    %p70 = pneg %p64
    %p71 = scmp.eq.s32.totalorder %s10, 19
    %p72 = por %p70, %p71
    %p73 = scmp.ne.s32.totalorder %s65, %s68
    %p74 = scmp.eq.s32.totalorder %s10, 0
    %p75 = por %p73, %p74
    %p76 = scmp.ne.s32.totalorder %s65, %s68
    %p77 = scmp.eq.s32.totalorder %s15, 19
    %p78 = por %p76, %p77
    %p79 = scmp.ne.s32.totalorder %s68, %s69
    %p80 = scmp.eq.s32.totalorder %s15, 0
    %p81 = por %p79, %p80
    %p82 = scmp.ne.s32.totalorder %s68, %s69
    %p83 = scmp.eq.s32.totalorder %s16, 19
    %p84 = por %p82, %p83
    %p86 = scmp.ne.s32.totalorder %s69, %s85
    %p87 = scmp.eq.s32.totalorder %s16, 0
    %p88 = por %p86, %p87
    %s90 = sadd.s32 %s89, 1
    %p93 = scmp.eq.s32.totalorder %s10, 19
    %p94 = scmp.ne.s32.totalorder %s89, %s91
    %p95 = scmp.eq.s32.totalorder %s10, 0
    %p96 = por %p94, %p95
    %p97 = scmp.ne.s32.totalorder %s89, %s91
    %p98 = scmp.eq.s32.totalorder %s15, 19
    %p99 = por %p97, %p98
    %p100 = scmp.ne.s32.totalorder %s91, %s92
    %p101 = scmp.eq.s32.totalorder %s15, 0
    %p102 = por %p100, %p101
    %p103 = scmp.ne.s32.totalorder %s91, %s92
    %p104 = scmp.eq.s32.totalorder %s16, 19
    %p105 = por %p103, %p104
    %p107 = scmp.ne.s32.totalorder %s92, %s106
    %p108 = scmp.eq.s32.totalorder %s16, 0
    %p109 = por %p107, %p108
    %s111 = sadd.s32 %s110, 1
    %p114 = scmp.eq.s32.totalorder %s10, 19
    %p115 = scmp.ne.s32.totalorder %s110, %s112
    %p116 = scmp.eq.s32.totalorder %s10, 0
    %p117 = por %p115, %p116
    %p118 = scmp.ne.s32.totalorder %s110, %s112
    %p119 = scmp.eq.s32.totalorder %s15, 19
    %p120 = por %p118, %p119
    %p121 = scmp.ne.s32.totalorder %s112, %s113
    %p122 = scmp.eq.s32.totalorder %s15, 0
    %p123 = por %p121, %p122
    %p124 = scmp.ne.s32.totalorder %s112, %s113
    %p125 = scmp.eq.s32.totalorder %s16, 19
    %p126 = por %p124, %p125
    %p128 = scmp.ne.s32.totalorder %s113, %s127
    %p129 = scmp.eq.s32.totalorder %s16, 0
    %p130 = por %p128, %p129
    %s131 = ssub.s32 %s17, %s29
    %s132 = ssub.s32 %s18, %s25
    %s133 = sor.u32 %s131, %s132
    %p134 = scmp.eq.s32.totalorder %s133, 0
    %s136 = sadd.s32 %s135, 1
    %s137 = scalar_select %p134, %s135, %s136
    %p140 = pneg %p134
    %p141 = scmp.eq.s32.totalorder %s10, 19
    %p142 = por %p140, %p141
    %p143 = scmp.ne.s32.totalorder %s135, %s138
    %p144 = scmp.eq.s32.totalorder %s10, 0
    %p145 = por %p143, %p144
    %p146 = scmp.ne.s32.totalorder %s135, %s138
    %p147 = scmp.eq.s32.totalorder %s15, 19
    %p148 = por %p146, %p147
    %p149 = scmp.ne.s32.totalorder %s138, %s139
    %p150 = scmp.eq.s32.totalorder %s15, 0
    %p151 = por %p149, %p150
    %p152 = scmp.ne.s32.totalorder %s138, %s139
    %p153 = scmp.eq.s32.totalorder %s16, 19
    %p154 = por %p152, %p153
    %p156 = scmp.ne.s32.totalorder %s139, %s155
    %p157 = scmp.eq.s32.totalorder %s16, 0
    %p158 = por %p156, %p157
    %p159 = scmp.le.s32.totalorder 1, %s10
    %p160 = scmp.lt.s32.totalorder %s10, 21
    %p161 = pnand %p159, %p160
    %p162 = pneg %p161
    // Predicated region
    $region9: #{basic_block_3d.5} parent=5 // pred_check
      _
    $region10: #{basic_block_3d.5} parent=5 // pred_check_branch
      %164 = sbr.rel (%p161) target = $region12
    $region11: #{basic_block_3d.5} parent=5 // pred_region
      %s165 = ssub.s32 %s10, 1
      // Predicated region
      $region13: #{basic_block_3d.5} parent=11 // pred_check
        %p166 = pneg %p43
      $region14: #{basic_block_3d.5} parent=11 // pred_check_branch
        %168 = sbr.rel (%p166) target = $region16
      $region15: #{basic_block_3d.5} parent=11 // pred_region
        _
      $region16: #{basic_block_3d.5} parent=11 // pred_fallthru
        _
      // Predicated region
      $region17: #{basic_block_3d.5} parent=11 // pred_check
        %p169 = pneg %p102
      $region18: #{basic_block_3d.5} parent=11 // pred_check_branch
        %171 = sbr.rel (%p169) target = $region20
      $region19: #{basic_block_3d.5} parent=11 // pred_region
        _
      $region20: #{basic_block_3d.5} parent=11 // pred_fallthru
        _
      // Predicated region
      $region21: #{basic_block_3d.5} parent=11 // pred_check
        %p172 = pneg %p123
      $region22: #{basic_block_3d.5} parent=11 // pred_check_branch
        %174 = sbr.rel (%p172) target = $region24
      $region23: #{basic_block_3d.5} parent=11 // pred_region
        _
      $region24: #{basic_block_3d.5} parent=11 // pred_fallthru
        _
    $region12: #{basic_block_3d.5} parent=5 // pred_fallthru
      _
    %p175 = scmp.lt.s32.totalorder %s10, 20
    // Predicated region
    $region25: #{basic_block_3d.5} parent=5 // pred_check
      %p176 = pneg %p175
    $region26: #{basic_block_3d.5} parent=5 // pred_check_branch
      %178 = sbr.rel (%p176) target = $region28
    $region27: #{basic_block_3d.5} parent=5 // pred_region
      // Predicated region
      $region29: #{basic_block_3d.5} parent=27 // pred_check
        %p179 = pneg %p75
      $region30: #{basic_block_3d.5} parent=27 // pred_check_branch
        %181 = sbr.rel (%p179) target = $region32
      $region31: #{basic_block_3d.5} parent=27 // pred_region
        %s182 = ssub.s32 %s18, 1
        %p183 = scmp.gt.s32.totalorder %s182, 0
        %s184 = scalar_select %p183, %s182, 0
        %p185 = scmp.lt.s32.totalorder %s184, 7
        %s186 = scalar_select %p185, %s184, 7
        %p187 = scmp.lt.s32.totalorder %s17, 1
        %s188 = scalar_select %p187, %s17, 1
        %p189 = scmp.lt.s32.totalorder %s186, 7
        %s190 = scalar_select %p189, %s186, 7
        %s191 = smul.addr %s190, 16
        %s192 = smul.addr %s188, 128
        %s193 = sadd.s32 %s191, %s192
        %s194 = smul.addr %s193, 4
        %s195 = scalar_lea.vmem %s1, %s194
        %s196 = ssub.s32 %s18, 1
        %p197 = scmp.gt.s32.totalorder %s196, 0
        %s198 = scalar_select %p197, %s196, 0
        %p199 = scmp.lt.s32.totalorder %s198, 7
        %s200 = scalar_select %p199, %s198, 7
      $region32: #{basic_block_3d.5} parent=27 // pred_fallthru
        _
    $region28: #{basic_block_3d.5} parent=5 // pred_fallthru
      _
    %p201 = scmp.le.s32.totalorder 1, %s10
    %p202 = scmp.lt.s32.totalorder %s10, 21
    %p203 = pnand %p201, %p202
    %p204 = pneg %p203
    // Predicated region
    $region33: #{basic_block_3d.5} parent=5 // pred_check
      _
    $region34: #{basic_block_3d.5} parent=5 // pred_check_branch
      %206 = sbr.rel (%p203) target = $region36
    $region35: #{basic_block_3d.5} parent=5 // pred_region
      %s207 = ssub.s32 %s10, 1
      %p208 = pneg %p43
      %p209 = pneg %p40
      %s210 = ssub.s32 %s20, 1
      %p211 = scmp.gt.s32.totalorder %s210, 0
      %s212 = scalar_select %p211, %s210, 0
      %p213 = scmp.lt.s32.totalorder %s212, 7
      %s214 = scalar_select %p213, %s212, 7
      %p215 = scmp.lt.s32.totalorder %s19, 1
      %s216 = scalar_select %p215, %s19, 1
      %p217 = scmp.lt.s32.totalorder %s214, 7
      %s218 = scalar_select %p217, %s214, 7
      %s219 = smul.addr %s218, 16
      %s220 = smul.addr %s216, 128
      %s221 = sadd.s32 %s219, %s220
      %s222 = smul.addr %s221, 4
      %s223 = scalar_lea.vmem %s1, %s222
      %p224 = pneg %p81
      %p225 = pneg %p78
      %p226 = pneg %p102
      %p227 = pneg %p99
      %p228 = pneg %p123
      %p229 = pneg %p120
      %p230 = pneg %p151
      %p231 = pneg %p148
      %p232 = scmp.lt.s32.totalorder %s19, 1
      %s233 = scalar_select %p232, %s19, 1
      %p234 = scmp.lt.s32.totalorder %s20, 9
      %s235 = scalar_select %p234, %s20, 9
      %s236 = smul.addr %s235, 24
      %s237 = smul.addr %s233, 240
      %s238 = sadd.s32 %s236, %s237
      %s239 = smul.addr %s238, 4
      %s240 = scalar_lea.vmem %s4, %s239
      %s241 = ssub.s32 %s20, 1
      %p242 = scmp.gt.s32.totalorder %s241, 0
      %s243 = scalar_select %p242, %s241, 0
      %p244 = scmp.lt.s32.totalorder %s243, 7
      %s245 = scalar_select %p244, %s243, 7
      %p246 = scmp.lt.s32.totalorder %s19, 1
      %s247 = scalar_select %p246, %s19, 1
      %p248 = scmp.lt.s32.totalorder %s245, 7
      %s249 = scalar_select %p248, %s245, 7
      %s250 = smul.addr %s249, 16
      %s251 = smul.addr %s247, 128
      %s252 = sadd.s32 %s250, %s251
      %s253 = smul.addr %s252, 4
      %s254 = scalar_lea.vmem %s1, %s253
      %s255 = ssub.s32 %s20, 1
      %p256 = scmp.gt.s32.totalorder %s255, 0
      %s257 = scalar_select %p256, %s255, 0
      %p258 = scmp.lt.s32.totalorder %s257, 7
      %s259 = scalar_select %p258, %s257, 7
      %p260 = scmp.lt.s32.totalorder %s19, 1
      %s261 = scalar_select %p260, %s19, 1
      %p262 = scmp.lt.s32.totalorder %s20, 9
      %s263 = scalar_select %p262, %s20, 9
      %s264 = smul.addr %s263, 24
      %s265 = smul.addr %s261, 240
      %s266 = sadd.s32 %s264, %s265
      %s267 = smul.addr %s266, 4
      %s268 = scalar_lea.vmem %s4, %s267
      %p270 = scmp.ge.s32.totalorder %s20, 1
      %p271 = scmp.le.s32.totalorder %s20, 8
      %p272 = pnand %p270, %p271
      %p273 = pneg %p272
      %v274 = vld [vmem:[%s254] sm:$0xf]
      %v275 = vld [vmem:[%s254 + $0x4] sm:$0x1]
      %v276 = vld [vmem:[%s254 + $0x8] sm:$0xf]
      %v277 = vld [vmem:[%s254 + $0xc] sm:$0x1]
      %v278 = vld [vmem:[%s254 + $0x10] sm:$0xf]
      %v279 = vld [vmem:[%s254 + $0x14] sm:$0x1]
      %v280 = vld [vmem:[%s254 + $0x18] sm:$0xf]
      %v281 = vld [vmem:[%s254 + $0x1c] sm:$0x1]
      %v282 = vld [vmem:[%s254 + $0x20] sm:$0xf]
      %v283 = vld [vmem:[%s254 + $0x24] sm:$0x1]
      %v284 = vld [vmem:[%s254 + $0x28] sm:$0xf]
      %v285 = vld [vmem:[%s254 + $0x2c] sm:$0x1]
      %v286 = vld [vmem:[%s254 + $0x30] sm:$0xf]
      %v287 = vld [vmem:[%s254 + $0x34] sm:$0x1]
      %v288 = vld [vmem:[%s254 + $0x38] sm:$0xf]
      %v289 = vld [vmem:[%s254 + $0x3c] sm:$0x1]
      %v290 = vunpack.c.l.bf16 %v274
      %v291 = vunpack.c.l.bf16 %v275
      %v292 = vunpack.c.l.bf16 %v276
      %v293 = vunpack.c.l.bf16 %v277
      %v294 = vunpack.c.l.bf16 %v278
      %v295 = vunpack.c.l.bf16 %v279
      %v296 = vunpack.c.l.bf16 %v280
      %v297 = vunpack.c.l.bf16 %v281
      %v298 = vunpack.c.l.bf16 %v282
      %v299 = vunpack.c.l.bf16 %v283
      %v300 = vunpack.c.l.bf16 %v284
      %v301 = vunpack.c.l.bf16 %v285
      %v302 = vunpack.c.l.bf16 %v286
      %v303 = vunpack.c.l.bf16 %v287
      %v304 = vunpack.c.l.bf16 %v288
      %v305 = vunpack.c.l.bf16 %v289
      %v306 = vld [vmem:[%s2] sm:$0x1]
      %v308 = vlaneseq
      %v309 = vshrl.u32 %v308, 7
      %v310 = vsub.s32 0, %v309
      %v311 = vrot.slane %v306, %v310
      %v313 = vmul.f32 %v290, %v311
      %v314 = vmul.f32 %v291, %v311
      %v315 = vmul.f32 %v292, %v311
      %v316 = vmul.f32 %v293, %v311
      %v317 = vmul.f32 %v294, %v311
      %v318 = vmul.f32 %v295, %v311
      %v319 = vmul.f32 %v296, %v311
      %v320 = vmul.f32 %v297, %v311
      %v321 = vmul.f32 %v298, %v311
      %v322 = vmul.f32 %v299, %v311
      %v323 = vmul.f32 %v300, %v311
      %v324 = vmul.f32 %v301, %v311
      %v325 = vmul.f32 %v302, %v311
      %v326 = vmul.f32 %v303, %v311
      %v327 = vmul.f32 %v304, %v311
      %v328 = vmul.f32 %v305, %v311
      %v329 = vld [vmem:[%s3] sm:$0x1]
      %v331 = vlaneseq
      %v332 = vshrl.u32 %v331, 7
      %v333 = vsub.s32 0, %v332
      %v334 = vrot.slane %v329, %v333
      %v336 = vadd.f32 %v313, %v334
      %v337 = vadd.f32 %v314, %v334
      %v338 = vadd.f32 %v315, %v334
      %v339 = vadd.f32 %v316, %v334
      %v340 = vadd.f32 %v317, %v334
      %v341 = vadd.f32 %v318, %v334
      %v342 = vadd.f32 %v319, %v334
      %v343 = vadd.f32 %v320, %v334
      %v344 = vadd.f32 %v321, %v334
      %v345 = vadd.f32 %v322, %v334
      %v346 = vadd.f32 %v323, %v334
      %v347 = vadd.f32 %v324, %v334
      %v348 = vadd.f32 %v325, %v334
      %v349 = vadd.f32 %v326, %v334
      %v350 = vadd.f32 %v327, %v334
      %v351 = vadd.f32 %v328, %v334
      %v352 = vmax.f32 %v336, 0.0
      %v353 = vmax.f32 %v337, 0.0
      %v354 = vmax.f32 %v338, 0.0
      %v355 = vmax.f32 %v339, 0.0
      %v356 = vmax.f32 %v340, 0.0
      %v357 = vmax.f32 %v341, 0.0
      %v358 = vmax.f32 %v342, 0.0
      %v359 = vmax.f32 %v343, 0.0
      %v360 = vmax.f32 %v344, 0.0
      %v361 = vmax.f32 %v345, 0.0
      %v362 = vmax.f32 %v346, 0.0
      %v363 = vmax.f32 %v347, 0.0
      %v364 = vmax.f32 %v348, 0.0
      %v365 = vmax.f32 %v349, 0.0
      %v366 = vmax.f32 %v350, 0.0
      %v367 = vmax.f32 %v351, 0.0
      %v368 = vld [vmem:[%s0] sm:$0xff]
      %v369 = vld [vmem:[%s0 + $0x8] sm:$0x3]
      %v370 = vld [vmem:[%s0 + $0x10] sm:$0xff]
      %v371 = vld [vmem:[%s0 + $0x18] sm:$0x3]
      %v372 = vld [vmem:[%s0 + $0x20] sm:$0xff]
      %v373 = vld [vmem:[%s0 + $0x28] sm:$0x3]
      %v374 = vld [vmem:[%s0 + $0x30] sm:$0xff]
      %v375 = vld [vmem:[%s0 + $0x38] sm:$0x3]
      %v376 = vld [vmem:[%s0 + $0x40] sm:$0xff]
      %v377 = vld [vmem:[%s0 + $0x48] sm:$0x3]
      %v378 = vld [vmem:[%s0 + $0x50] sm:$0xff]
      %v379 = vld [vmem:[%s0 + $0x58] sm:$0x3]
      %v380 = vld [vmem:[%s0 + $0x60] sm:$0xff]
      %v381 = vld [vmem:[%s0 + $0x68] sm:$0x3]
      %v382 = vld [vmem:[%s0 + $0x70] sm:$0xff]
      %v383 = vld [vmem:[%s0 + $0x78] sm:$0x3]
      %vm384 = vcmp.gt.f32.partialorder %v368, 0.5
      %vm385 = vcmp.gt.f32.partialorder %v369, 0.5
      %vm386 = vcmp.gt.f32.partialorder %v370, 0.5
      %vm387 = vcmp.gt.f32.partialorder %v371, 0.5
      %vm388 = vcmp.gt.f32.partialorder %v372, 0.5
      %vm389 = vcmp.gt.f32.partialorder %v373, 0.5
      %vm390 = vcmp.gt.f32.partialorder %v374, 0.5
      %vm391 = vcmp.gt.f32.partialorder %v375, 0.5
      %vm392 = vcmp.gt.f32.partialorder %v376, 0.5
      %vm393 = vcmp.gt.f32.partialorder %v377, 0.5
      %vm394 = vcmp.gt.f32.partialorder %v378, 0.5
      %vm395 = vcmp.gt.f32.partialorder %v379, 0.5
      %vm396 = vcmp.gt.f32.partialorder %v380, 0.5
      %vm397 = vcmp.gt.f32.partialorder %v381, 0.5
      %vm398 = vcmp.gt.f32.partialorder %v382, 0.5
      %vm399 = vcmp.gt.f32.partialorder %v383, 0.5
      %s400 = scalar_select %p273, 1, 0
      %v401 = vstv %s400
      %vm402 = vcmp.eq.s32.totalorder %v401, 1
      %vm403 = vmand %vm384, %vm402
      %vm404 = vmand %vm385, %vm402
      %vm405 = vmand %vm386, %vm402
      %vm406 = vmand %vm387, %vm402
      %vm407 = vmand %vm388, %vm402
      %vm408 = vmand %vm389, %vm402
      %vm409 = vmand %vm390, %vm402
      %vm410 = vmand %vm391, %vm402
      %vm411 = vmand %vm392, %vm402
      %vm412 = vmand %vm393, %vm402
      %vm413 = vmand %vm394, %vm402
      %vm414 = vmand %vm395, %vm402
      %vm415 = vmand %vm396, %vm402
      %vm416 = vmand %vm397, %vm402
      %vm417 = vmand %vm398, %vm402
      %vm418 = vmand %vm399, %vm402
      %v419 = vsel %vm403, 1, 0
      %v420 = vsel %vm404, 1, 0
      %v421 = vsel %vm405, 1, 0
      %v422 = vsel %vm406, 1, 0
      %v423 = vsel %vm407, 1, 0
      %v424 = vsel %vm408, 1, 0
      %v425 = vsel %vm409, 1, 0
      %v426 = vsel %vm410, 1, 0
      %v427 = vsel %vm411, 1, 0
      %v428 = vsel %vm412, 1, 0
      %v429 = vsel %vm413, 1, 0
      %v430 = vsel %vm414, 1, 0
      %v431 = vsel %vm415, 1, 0
      %v432 = vsel %vm416, 1, 0
      %v433 = vsel %vm417, 1, 0
      %v434 = vsel %vm418, 1, 0
      %435 = vset.pattern.permute.xlu0 0
      %436 = vperm.xlu0 %435, %v419
      %v437 = vpop.permute.xlu0 %436
      %438 = vset.pattern.permute.xlu0 0
      %439 = vperm.xlu0 %438, %v420
      %v440 = vpop.permute.xlu0 %439
      %441 = vset.pattern.permute.xlu0 0
      %442 = vperm.xlu0 %441, %v421
      %v443 = vpop.permute.xlu0 %442
      %444 = vset.pattern.permute.xlu0 0
      %445 = vperm.xlu0 %444, %v422
      %v446 = vpop.permute.xlu0 %445
      %447 = vset.pattern.permute.xlu0 0
      %448 = vperm.xlu0 %447, %v423
      %v449 = vpop.permute.xlu0 %448
      %450 = vset.pattern.permute.xlu0 0
      %451 = vperm.xlu0 %450, %v424
      %v452 = vpop.permute.xlu0 %451
      %453 = vset.pattern.permute.xlu0 0
      %454 = vperm.xlu0 %453, %v425
      %v455 = vpop.permute.xlu0 %454
      %456 = vset.pattern.permute.xlu0 0
      %457 = vperm.xlu0 %456, %v426
      %v458 = vpop.permute.xlu0 %457
      %459 = vset.pattern.permute.xlu0 0
      %460 = vperm.xlu0 %459, %v427
      %v461 = vpop.permute.xlu0 %460
      %462 = vset.pattern.permute.xlu0 0
      %463 = vperm.xlu0 %462, %v428
      %v464 = vpop.permute.xlu0 %463
      %465 = vset.pattern.permute.xlu0 0
      %466 = vperm.xlu0 %465, %v429
      %v467 = vpop.permute.xlu0 %466
      %468 = vset.pattern.permute.xlu0 0
      %469 = vperm.xlu0 %468, %v430
      %v470 = vpop.permute.xlu0 %469
      %471 = vset.pattern.permute.xlu0 0
      %472 = vperm.xlu0 %471, %v431
      %v473 = vpop.permute.xlu0 %472
      %474 = vset.pattern.permute.xlu0 0
      %475 = vperm.xlu0 %474, %v432
      %v476 = vpop.permute.xlu0 %475
      %477 = vset.pattern.permute.xlu0 0
      %478 = vperm.xlu0 %477, %v433
      %v479 = vpop.permute.xlu0 %478
      %480 = vset.pattern.permute.xlu0 0
      %481 = vperm.xlu0 %480, %v434
      %v482 = vpop.permute.xlu0 %481
      %vm483 = vcmp.eq.s32.totalorder %v437, 1
      %vm484 = vcmp.eq.s32.totalorder %v440, 1
      %vm485 = vcmp.eq.s32.totalorder %v443, 1
      %vm486 = vcmp.eq.s32.totalorder %v446, 1
      %vm487 = vcmp.eq.s32.totalorder %v449, 1
      %vm488 = vcmp.eq.s32.totalorder %v452, 1
      %vm489 = vcmp.eq.s32.totalorder %v455, 1
      %vm490 = vcmp.eq.s32.totalorder %v458, 1
      %vm491 = vcmp.eq.s32.totalorder %v461, 1
      %vm492 = vcmp.eq.s32.totalorder %v464, 1
      %vm493 = vcmp.eq.s32.totalorder %v467, 1
      %vm494 = vcmp.eq.s32.totalorder %v470, 1
      %vm495 = vcmp.eq.s32.totalorder %v473, 1
      %vm496 = vcmp.eq.s32.totalorder %v476, 1
      %vm497 = vcmp.eq.s32.totalorder %v479, 1
      %vm498 = vcmp.eq.s32.totalorder %v482, 1
      %v499 = vsel %vm483, %v352, 0.0
      %v500 = vsel %vm484, %v353, 0.0
      %v501 = vsel %vm485, %v354, 0.0
      %v502 = vsel %vm486, %v355, 0.0
      %v503 = vsel %vm487, %v356, 0.0
      %v504 = vsel %vm488, %v357, 0.0
      %v505 = vsel %vm489, %v358, 0.0
      %v506 = vsel %vm490, %v359, 0.0
      %v507 = vsel %vm491, %v360, 0.0
      %v508 = vsel %vm492, %v361, 0.0
      %v509 = vsel %vm493, %v362, 0.0
      %v510 = vsel %vm494, %v363, 0.0
      %v511 = vsel %vm495, %v364, 0.0
      %v512 = vsel %vm496, %v365, 0.0
      %v513 = vsel %vm497, %v366, 0.0
      %v514 = vsel %vm498, %v367, 0.0
      %v515 = vpack.c.bf16 %v500, %v499
      %v516 = vpack.c.bf16 %v502, %v501
      %v517 = vpack.c.bf16 %v504, %v503
      %v518 = vpack.c.bf16 %v506, %v505
      %v519 = vpack.c.bf16 %v508, %v507
      %v520 = vpack.c.bf16 %v510, %v509
      %v521 = vpack.c.bf16 %v512, %v511
      %v522 = vpack.c.bf16 %v514, %v513
      %vm523 = vcmask 60416
      %524 = vst.msk [vmem:[%s268] sm:$0xf] %vm523, 0
      %vm525 = vcmask 57344
      %526 = vst.msk [vmem:[%s268 + $0x4] sm:$0x1] %vm525, 0
      %527 = vst.msk [vmem:[%s268 + $0x8] sm:$0xf] %vm523, 0
      %528 = vst.msk [vmem:[%s268 + $0xc] sm:$0x1] %vm525, 0
      %v537 = vunpack.c.l.b16 %v515
      %v538 = vunpack.c.h.b16 %v515
      %v539 = vunpack.c.l.b16 %v516
      %v540 = vunpack.c.h.b16 %v516
      %v541 = vunpack.c.l.b16 %v517
      %v542 = vunpack.c.h.b16 %v517
      %v543 = vunpack.c.l.b16 %v518
      %v544 = vunpack.c.h.b16 %v518
      %v545 = vunpack.c.l.b16 %v519
      %v546 = vunpack.c.h.b16 %v519
      %v547 = vunpack.c.l.b16 %v520
      %v548 = vunpack.c.h.b16 %v520
      %v549 = vunpack.c.l.b16 %v521
      %v550 = vunpack.c.h.b16 %v521
      %v551 = vunpack.c.l.b16 %v522
      %v552 = vunpack.c.h.b16 %v522
      %v553 = vpack.c.b16 %v537, %v537
      %v554 = vpack.c.b16 %v538, %v538
      %v555 = vpack.c.b16 %v539, %v539
      %v556 = vpack.c.b16 %v540, %v540
      %v557 = vpack.c.b16 %v541, %v541
      %v558 = vpack.c.b16 %v542, %v542
      %v559 = vpack.c.b16 %v543, %v543
      %v560 = vpack.c.b16 %v544, %v544
      %v561 = vpack.c.b16 %v545, %v545
      %v562 = vpack.c.b16 %v546, %v546
      %v563 = vpack.c.b16 %v547, %v547
      %v564 = vpack.c.b16 %v548, %v548
      %v565 = vpack.c.b16 %v549, %v549
      %v566 = vpack.c.b16 %v550, %v550
      %v567 = vpack.c.b16 %v551, %v551
      %v568 = vpack.c.b16 %v552, %v552
      %s585 = scalar_lea.vmem %s268, 16
      %586 = vst.msk [vmem:[%s585] sm:$0xf] %vm523, %v553
      %587 = vst.msk [vmem:[%s585 + $0x4] sm:$0x1] %vm525, %v554
      %588 = vst.msk [vmem:[%s585 + $0x8] sm:$0xf] %vm523, %v555
      %589 = vst.msk [vmem:[%s585 + $0xc] sm:$0x1] %vm525, %v556
      %590 = vst.msk [vmem:[%s585 + $0x10] sm:$0xf] %vm523, %v557
      %591 = vst.msk [vmem:[%s585 + $0x14] sm:$0x1] %vm525, %v558
      %592 = vst.msk [vmem:[%s585 + $0x18] sm:$0xf] %vm523, %v559
      %593 = vst.msk [vmem:[%s585 + $0x1c] sm:$0x1] %vm525, %v560
      %594 = vst.msk [vmem:[%s585 + $0x20] sm:$0xf] %vm523, %v561
      %595 = vst.msk [vmem:[%s585 + $0x24] sm:$0x1] %vm525, %v562
      %596 = vst.msk [vmem:[%s585 + $0x28] sm:$0xf] %vm523, %v563
      %597 = vst.msk [vmem:[%s585 + $0x2c] sm:$0x1] %vm525, %v564
      %598 = vst.msk [vmem:[%s585 + $0x30] sm:$0xf] %vm523, %v565
      %599 = vst.msk [vmem:[%s585 + $0x34] sm:$0x1] %vm525, %v566
      %600 = vst.msk [vmem:[%s585 + $0x38] sm:$0xf] %vm523, %v567
      %601 = vst.msk [vmem:[%s585 + $0x3c] sm:$0x1] %vm525, %v568
      %s602 = scalar_lea.vmem %s268, 80
      %603 = vst.msk [vmem:[%s602] sm:$0xf] %vm523, 0
      %604 = vst.msk [vmem:[%s602 + $0x4] sm:$0x1] %vm525, 0
      %605 = vst.msk [vmem:[%s602 + $0x8] sm:$0xf] %vm523, 0
      %606 = vst.msk [vmem:[%s602 + $0xc] sm:$0x1] %vm525, 0
      %p607 = scmp.lt.s32.totalorder %s19, 1
      %s608 = scalar_select %p607, %s19, 1
      %p609 = scmp.lt.s32.totalorder %s20, 9
      %s610 = scalar_select %p609, %s20, 9
      %s611 = smul.addr %s610, 24
      %s612 = smul.addr %s608, 240
      %s613 = sadd.s32 %s611, %s612
      %s614 = smul.addr %s613, 4
      %s615 = scalar_lea.vmem %s4, %s614
      // Predicated region
      $region37: #{basic_block_3d.5} parent=35 // pred_check
        %p616 = pneg %p148
      $region38: #{basic_block_3d.5} parent=35 // pred_check_branch
        %618 = sbr.rel (%p616) target = $region40
      $region39: #{basic_block_3d.5} parent=35 // pred_region
        _
      $region40: #{basic_block_3d.5} parent=35 // pred_fallthru
        _
    $region36: #{basic_block_3d.5} parent=5 // pred_fallthru
      _
    %p619 = scmp.le.s32.totalorder 2, %s10
    // Predicated region
    $region41: #{basic_block_3d.5} parent=5 // pred_check
      %p620 = pneg %p619
    $region42: #{basic_block_3d.5} parent=5 // pred_check_branch
      %622 = sbr.rel (%p620) target = $region44
    $region43: #{basic_block_3d.5} parent=5 // pred_region
      %s623 = ssub.s32 %s10, 2
      // Predicated region
      $region45: #{basic_block_3d.5} parent=43 // pred_check
        %p624 = pneg %p154
      $region46: #{basic_block_3d.5} parent=43 // pred_check_branch
        %626 = sbr.rel (%p624) target = $region48
      $region47: #{basic_block_3d.5} parent=43 // pred_region
        %p627 = scmp.lt.s32.totalorder %s21, 1
        %s628 = scalar_select %p627, %s21, 1
        %p629 = scmp.lt.s32.totalorder %s22, 9
        %s630 = scalar_select %p629, %s22, 9
        %s631 = smul.addr %s630, 24
        %s632 = smul.addr %s628, 240
        %s633 = sadd.s32 %s631, %s632
        %s634 = smul.addr %s633, 4
        %s635 = scalar_lea.vmem %s4, %s634
      $region48: #{basic_block_3d.5} parent=43 // pred_fallthru
        _
    $region44: #{basic_block_3d.5} parent=5 // pred_fallthru
      _
  $region6: #{basic_block_3d.5} parent=0 // loop_footer
    %s14 = sadd.s32 1, %s10
  $region7: #{basic_block_3d.5} parent=0 // loop_footer_branch
    %9 = sbr.rel target = $region3
  $region8: #{basic_block_3d.5} parent=0 // loop_exit
    _

// kernel: basic_block_3d.4
$region0: #{basic_block_3d.4}
  #allocation0 [shape = 'u32[]', space=smem, size = 0x4, offset = 0x4, fixed_abs, tag = 'smem constant byte address 0x4 - core index']
  #allocation1 [shape = 'u32[144,128]{1,0:T(1,128)}', space=vmem, size = 0x12000, scoped, tag = 'internal scratch']
  %s0 = inlined_call_operand.vmem [shape: f32[80,1], index: 0, kind: input, shape index: {}]
  %s1 = inlined_call_operand.vmem [shape: bf16[2,10,120,8], index: 1, kind: input, shape index: {}, may-alias: {1,2,3}]
  %s2 = inlined_call_operand.vmem [shape: bf16[2,10,120,8], index: 2, kind: input, shape index: {}, may-alias: {1,2,3}]
  %s3 = inlined_call_operand.vmem [shape: bf16[2,10,120,8], index: 3, kind: input, shape index: {}, may-alias: {1,2,3}]
  %s4 = inlined_call_operand.vmem [shape: bf16[27,8,8], index: 4, kind: input, shape index: {}]
  %s5 = inlined_call_operand.vmem [shape: bf16[2,8,80,8], index: 5, kind: output, shape index: {0}]
  %s6 = inlined_call_operand.vmem [shape: f32[2,8,2,8], index: 6, kind: output, shape index: {1}]
  %7 = xla_tuple %s5, %s6
  %s8 = sld [smem:[#allocation0]]
  $region61: #{basic_block_3d.4} parent=0
    _
  %s10 = ssub.s32 1, %s8
  %s11 = scalar_select 0, %s10, %s8
  loop: start=0, step=1, limit=18
  $region2: #{basic_block_3d.4} parent=0 // loop_pre_header
    _
  $region3: #{basic_block_3d.4} parent=0 // loop_header
    %s13 = sphi 0, %s17
    %p14 = scmp.ge.s32.totalorder %s13, 18
    %s20 = sphi 0, %s32
    %s21 = sphi 0, %s28
    %s22 = sphi 0, %s20
    %s23 = sphi 0, %s21
    %s24 = sphi 0, %s22
    %s25 = sphi 0, %s23
    %s33 = sphi 0, %s33
    %s35 = sphi 0, %s33
    %s36 = sphi 0, %s35
    %s50 = sphi 0, %s36
    %s58 = sphi 0, %s60
    %s61 = sphi 0, %s58
    %s62 = sphi 0, %s61
    %s78 = sphi 0, %s62
    %s88 = sphi 0, %s90
    %s91 = sphi 0, %s88
    %s92 = sphi 0, %s91
    %s108 = sphi 0, %s92
    %s118 = sphi 0, %s120
    %s121 = sphi 0, %s118
    %s122 = sphi 0, %s121
    %s138 = sphi 0, %s122
    %s142 = sphi 0, %s142
    %s144 = sphi 0, %s142
    %s145 = sphi 0, %s144
    %s159 = sphi 0, %s145
    %s167 = sphi 0, %s169
    %s170 = sphi 0, %s167
    %s171 = sphi 0, %s170
    %s187 = sphi 0, %s171
    %s195 = sphi 0, %s197
    %s198 = sphi 0, %s195
    %s199 = sphi 0, %s198
    %s215 = sphi 0, %s199
  $region4: #{basic_block_3d.4} parent=0 // loop_header_branch
    %16 = sbr.rel (%p14) target = $region8
  $region5: #{basic_block_3d.4} parent=0 // loop_body
    %s18 = ssub.s32 %s13, 1
    %s19 = ssub.s32 %s13, 2
    %s26 = sadd.s32 1, %s21
    %p27 = scmp.ge.s32.totalorder %s26, 8
    %s28 = scalar_select %p27, 0, %s26
    %s29 = sadd.s32 1, %s20
    %s30 = scalar_select %p27, %s29, %s20
    %p31 = scmp.ge.s32.totalorder %s30, 2
    %s32 = scalar_select %p31, 0, %s30
    %s34 = sadd.s32 %s33, 1
    %p37 = scmp.eq.s32.totalorder %s13, 15
    %p38 = scmp.ne.s32.totalorder %s33, %s35
    %p39 = scmp.eq.s32.totalorder %s13, 0
    %p40 = por %p38, %p39
    %p41 = scmp.ne.s32.totalorder %s33, %s35
    %p42 = scmp.eq.s32.totalorder %s18, 15
    %p43 = por %p41, %p42
    %p44 = scmp.ne.s32.totalorder %s35, %s36
    %p45 = scmp.eq.s32.totalorder %s18, 0
    %p46 = por %p44, %p45
    %p47 = scmp.ne.s32.totalorder %s35, %s36
    %p48 = scmp.eq.s32.totalorder %s19, 15
    %p49 = por %p47, %p48
    %p51 = scmp.ne.s32.totalorder %s36, %s50
    %p52 = scmp.eq.s32.totalorder %s19, 0
    %p53 = por %p51, %p52
    %s54 = ssub.s32 %s20, %s32
    %s55 = ssub.s32 %s21, %s28
    %s56 = sor.u32 %s54, %s55
    %p57 = scmp.eq.s32.totalorder %s56, 0
    %s59 = sadd.s32 %s58, 1
    %s60 = scalar_select %p57, %s58, %s59
    %p63 = pneg %p57
    %p64 = scmp.eq.s32.totalorder %s13, 15
    %p65 = por %p63, %p64
    %p66 = scmp.ne.s32.totalorder %s58, %s61
    %p67 = scmp.eq.s32.totalorder %s13, 0
    %p68 = por %p66, %p67
    %p69 = scmp.ne.s32.totalorder %s58, %s61
    %p70 = scmp.eq.s32.totalorder %s18, 15
    %p71 = por %p69, %p70
    %p72 = scmp.ne.s32.totalorder %s61, %s62
    %p73 = scmp.eq.s32.totalorder %s18, 0
    %p74 = por %p72, %p73
    %p75 = scmp.ne.s32.totalorder %s61, %s62
    %p76 = scmp.eq.s32.totalorder %s19, 15
    %p77 = por %p75, %p76
    %p79 = scmp.ne.s32.totalorder %s62, %s78
    %p80 = scmp.eq.s32.totalorder %s19, 0
    %p81 = por %p79, %p80
    %s82 = sadd.s32 %s21, 1
    %s83 = sadd.s32 %s28, 1
    %s84 = ssub.s32 %s20, %s32
    %s85 = ssub.s32 %s82, %s83
    %s86 = sor.u32 %s84, %s85
    %p87 = scmp.eq.s32.totalorder %s86, 0
    %s89 = sadd.s32 %s88, 1
    %s90 = scalar_select %p87, %s88, %s89
    %p93 = pneg %p87
    %p94 = scmp.eq.s32.totalorder %s13, 15
    %p95 = por %p93, %p94
    %p96 = scmp.ne.s32.totalorder %s88, %s91
    %p97 = scmp.eq.s32.totalorder %s13, 0
    %p98 = por %p96, %p97
    %p99 = scmp.ne.s32.totalorder %s88, %s91
    %p100 = scmp.eq.s32.totalorder %s18, 15
    %p101 = por %p99, %p100
    %p102 = scmp.ne.s32.totalorder %s91, %s92
    %p103 = scmp.eq.s32.totalorder %s18, 0
    %p104 = por %p102, %p103
    %p105 = scmp.ne.s32.totalorder %s91, %s92
    %p106 = scmp.eq.s32.totalorder %s19, 15
    %p107 = por %p105, %p106
    %p109 = scmp.ne.s32.totalorder %s92, %s108
    %p110 = scmp.eq.s32.totalorder %s19, 0
    %p111 = por %p109, %p110
    %s112 = sadd.s32 %s21, 2
    %s113 = sadd.s32 %s28, 2
    %s114 = ssub.s32 %s20, %s32
    %s115 = ssub.s32 %s112, %s113
    %s116 = sor.u32 %s114, %s115
    %p117 = scmp.eq.s32.totalorder %s116, 0
    %s119 = sadd.s32 %s118, 1
    %s120 = scalar_select %p117, %s118, %s119
    %p123 = pneg %p117
    %p124 = scmp.eq.s32.totalorder %s13, 15
    %p125 = por %p123, %p124
    %p126 = scmp.ne.s32.totalorder %s118, %s121
    %p127 = scmp.eq.s32.totalorder %s13, 0
    %p128 = por %p126, %p127
    %p129 = scmp.ne.s32.totalorder %s118, %s121
    %p130 = scmp.eq.s32.totalorder %s18, 15
    %p131 = por %p129, %p130
    %p132 = scmp.ne.s32.totalorder %s121, %s122
    %p133 = scmp.eq.s32.totalorder %s18, 0
    %p134 = por %p132, %p133
    %p135 = scmp.ne.s32.totalorder %s121, %s122
    %p136 = scmp.eq.s32.totalorder %s19, 15
    %p137 = por %p135, %p136
    %p139 = scmp.ne.s32.totalorder %s122, %s138
    %p140 = scmp.eq.s32.totalorder %s19, 0
    %p141 = por %p139, %p140
    %s143 = sadd.s32 %s142, 1
    %p146 = scmp.eq.s32.totalorder %s13, 15
    %p147 = scmp.ne.s32.totalorder %s142, %s144
    %p148 = scmp.eq.s32.totalorder %s13, 0
    %p149 = por %p147, %p148
    %p150 = scmp.ne.s32.totalorder %s142, %s144
    %p151 = scmp.eq.s32.totalorder %s18, 15
    %p152 = por %p150, %p151
    %p153 = scmp.ne.s32.totalorder %s144, %s145
    %p154 = scmp.eq.s32.totalorder %s18, 0
    %p155 = por %p153, %p154
    %p156 = scmp.ne.s32.totalorder %s144, %s145
    %p157 = scmp.eq.s32.totalorder %s19, 15
    %p158 = por %p156, %p157
    %p160 = scmp.ne.s32.totalorder %s145, %s159
    %p161 = scmp.eq.s32.totalorder %s19, 0
    %p162 = por %p160, %p161
    %s163 = ssub.s32 %s20, %s32
    %s164 = ssub.s32 %s21, %s28
    %s165 = sor.u32 %s163, %s164
    %p166 = scmp.eq.s32.totalorder %s165, 0
    %s168 = sadd.s32 %s167, 1
    %s169 = scalar_select %p166, %s167, %s168
    %p172 = pneg %p166
    %p173 = scmp.eq.s32.totalorder %s13, 15
    %p174 = por %p172, %p173
    %p175 = scmp.ne.s32.totalorder %s167, %s170
    %p176 = scmp.eq.s32.totalorder %s13, 0
    %p177 = por %p175, %p176
    %p178 = scmp.ne.s32.totalorder %s167, %s170
    %p179 = scmp.eq.s32.totalorder %s18, 15
    %p180 = por %p178, %p179
    %p181 = scmp.ne.s32.totalorder %s170, %s171
    %p182 = scmp.eq.s32.totalorder %s18, 0
    %p183 = por %p181, %p182
    %p184 = scmp.ne.s32.totalorder %s170, %s171
    %p185 = scmp.eq.s32.totalorder %s19, 15
    %p186 = por %p184, %p185
    %p188 = scmp.ne.s32.totalorder %s171, %s187
    %p189 = scmp.eq.s32.totalorder %s19, 0
    %p190 = por %p188, %p189
    %s191 = ssub.s32 %s20, %s32
    %s192 = ssub.s32 %s21, %s28
    %s193 = sor.u32 %s191, %s192
    %p194 = scmp.eq.s32.totalorder %s193, 0
    %s196 = sadd.s32 %s195, 1
    %s197 = scalar_select %p194, %s195, %s196
    %p200 = pneg %p194
    %p201 = scmp.eq.s32.totalorder %s13, 15
    %p202 = por %p200, %p201
    %p203 = scmp.ne.s32.totalorder %s195, %s198
    %p204 = scmp.eq.s32.totalorder %s13, 0
    %p205 = por %p203, %p204
    %p206 = scmp.ne.s32.totalorder %s195, %s198
    %p207 = scmp.eq.s32.totalorder %s18, 15
    %p208 = por %p206, %p207
    %p209 = scmp.ne.s32.totalorder %s198, %s199
    %p210 = scmp.eq.s32.totalorder %s18, 0
    %p211 = por %p209, %p210
    %p212 = scmp.ne.s32.totalorder %s198, %s199
    %p213 = scmp.eq.s32.totalorder %s19, 15
    %p214 = por %p212, %p213
    %p216 = scmp.ne.s32.totalorder %s199, %s215
    %p217 = scmp.eq.s32.totalorder %s19, 0
    %p218 = por %p216, %p217
    %p219 = scmp.le.s32.totalorder 1, %s13
    %p220 = scmp.lt.s32.totalorder %s13, 17
    %p221 = pnand %p219, %p220
    %p222 = pneg %p221
    // Predicated region
    $region9: #{basic_block_3d.4} parent=5 // pred_check
      _
    $region10: #{basic_block_3d.4} parent=5 // pred_check_branch
      %224 = sbr.rel (%p221) target = $region12
    $region11: #{basic_block_3d.4} parent=5 // pred_region
      %s225 = ssub.s32 %s13, 1
      // Predicated region
      $region13: #{basic_block_3d.4} parent=11 // pred_check
        %p226 = pneg %p46
      $region14: #{basic_block_3d.4} parent=11 // pred_check_branch
        %228 = sbr.rel (%p226) target = $region16
      $region15: #{basic_block_3d.4} parent=11 // pred_region
        _
      $region16: #{basic_block_3d.4} parent=11 // pred_fallthru
        _
      // Predicated region
      $region17: #{basic_block_3d.4} parent=11 // pred_check
        %p229 = pneg %p155
      $region18: #{basic_block_3d.4} parent=11 // pred_check_branch
        %231 = sbr.rel (%p229) target = $region20
      $region19: #{basic_block_3d.4} parent=11 // pred_region
        _
      $region20: #{basic_block_3d.4} parent=11 // pred_fallthru
        _
    $region12: #{basic_block_3d.4} parent=5 // pred_fallthru
      _
    %p232 = scmp.lt.s32.totalorder %s13, 16
    // Predicated region
    $region21: #{basic_block_3d.4} parent=5 // pred_check
      %p233 = pneg %p232
    $region22: #{basic_block_3d.4} parent=5 // pred_check_branch
      %235 = sbr.rel (%p233) target = $region24
    $region23: #{basic_block_3d.4} parent=5 // pred_region
      // Predicated region
      $region25: #{basic_block_3d.4} parent=23 // pred_check
        %p236 = pneg %p68
      $region26: #{basic_block_3d.4} parent=23 // pred_check_branch
        %238 = sbr.rel (%p236) target = $region28
      $region27: #{basic_block_3d.4} parent=23 // pred_region
        %p239 = scmp.lt.s32.totalorder %s20, 1
        %s240 = scalar_select %p239, %s20, 1
        %p241 = scmp.lt.s32.totalorder %s21, 9
        %s242 = scalar_select %p241, %s21, 9
        %s243 = smul.addr %s242, 15
        %s244 = smul.addr %s240, 150
        %s245 = sadd.s32 %s243, %s244
        %s246 = smul.addr %s245, 4
        %s247 = scalar_lea.vmem %s1, %s246
      $region28: #{basic_block_3d.4} parent=23 // pred_fallthru
        _
      // Predicated region
      $region29: #{basic_block_3d.4} parent=23 // pred_check
        %p248 = pneg %p98
      $region30: #{basic_block_3d.4} parent=23 // pred_check_branch
        %250 = sbr.rel (%p248) target = $region32
      $region31: #{basic_block_3d.4} parent=23 // pred_region
        %s251 = sadd.s32 %s21, 1
        %p252 = scmp.lt.s32.totalorder %s20, 1
        %s253 = scalar_select %p252, %s20, 1
        %p254 = scmp.lt.s32.totalorder %s251, 9
        %s255 = scalar_select %p254, %s251, 9
        %s256 = smul.addr %s255, 15
        %s257 = smul.addr %s253, 150
        %s258 = sadd.s32 %s256, %s257
        %s259 = smul.addr %s258, 4
        %s260 = scalar_lea.vmem %s2, %s259
        %s261 = sadd.s32 %s21, 1
      $region32: #{basic_block_3d.4} parent=23 // pred_fallthru
        _
      // Predicated region
      $region33: #{basic_block_3d.4} parent=23 // pred_check
        %p262 = pneg %p128
      $region34: #{basic_block_3d.4} parent=23 // pred_check_branch
        %264 = sbr.rel (%p262) target = $region36
      $region35: #{basic_block_3d.4} parent=23 // pred_region
        %s265 = sadd.s32 %s21, 2
        %p266 = scmp.lt.s32.totalorder %s20, 1
        %s267 = scalar_select %p266, %s20, 1
        %p268 = scmp.lt.s32.totalorder %s265, 9
        %s269 = scalar_select %p268, %s265, 9
        %s270 = smul.addr %s269, 15
        %s271 = smul.addr %s267, 150
        %s272 = sadd.s32 %s270, %s271
        %s273 = smul.addr %s272, 4
        %s274 = scalar_lea.vmem %s3, %s273
        %s275 = sadd.s32 %s21, 2
      $region36: #{basic_block_3d.4} parent=23 // pred_fallthru
        _
    $region24: #{basic_block_3d.4} parent=5 // pred_fallthru
      _
    %p276 = scmp.le.s32.totalorder 1, %s13
    %p277 = scmp.lt.s32.totalorder %s13, 17
    %p278 = pnand %p276, %p277
    %p279 = pneg %p278
    // Predicated region
    $region37: #{basic_block_3d.4} parent=5 // pred_check
      _
    $region38: #{basic_block_3d.4} parent=5 // pred_check_branch
      %281 = sbr.rel (%p278) target = $region40
    $region39: #{basic_block_3d.4} parent=5 // pred_region
      %s282 = ssub.s32 %s13, 1
      %p283 = pneg %p46
      %p284 = pneg %p43
      %p285 = scmp.lt.s32.totalorder %s22, 1
      %s286 = scalar_select %p285, %s22, 1
      %p287 = scmp.lt.s32.totalorder %s23, 9
      %s288 = scalar_select %p287, %s23, 9
      %s289 = smul.addr %s288, 15
      %s290 = smul.addr %s286, 150
      %s291 = sadd.s32 %s289, %s290
      %s292 = smul.addr %s291, 4
      %s293 = scalar_lea.vmem %s1, %s292
      %p294 = pneg %p74
      %p295 = pneg %p71
      %s296 = sadd.s32 %s23, 1
      %p297 = scmp.lt.s32.totalorder %s22, 1
      %s298 = scalar_select %p297, %s22, 1
      %p299 = scmp.lt.s32.totalorder %s296, 9
      %s300 = scalar_select %p299, %s296, 9
      %s301 = smul.addr %s300, 15
      %s302 = smul.addr %s298, 150
      %s303 = sadd.s32 %s301, %s302
      %s304 = smul.addr %s303, 4
      %s305 = scalar_lea.vmem %s2, %s304
      %p306 = pneg %p104
      %p307 = pneg %p101
      %s308 = sadd.s32 %s23, 2
      %p309 = scmp.lt.s32.totalorder %s22, 1
      %s310 = scalar_select %p309, %s22, 1
      %p311 = scmp.lt.s32.totalorder %s308, 9
      %s312 = scalar_select %p311, %s308, 9
      %s313 = smul.addr %s312, 15
      %s314 = smul.addr %s310, 150
      %s315 = sadd.s32 %s313, %s314
      %s316 = smul.addr %s315, 4
      %s317 = scalar_lea.vmem %s3, %s316
      %p318 = pneg %p134
      %p319 = pneg %p131
      %p320 = pneg %p155
      %p321 = pneg %p152
      %p322 = pneg %p183
      %p323 = pneg %p180
      %p324 = scmp.lt.s32.totalorder %s22, 1
      %s325 = scalar_select %p324, %s22, 1
      %p326 = scmp.lt.s32.totalorder %s23, 7
      %s327 = scalar_select %p326, %s23, 7
      %s328 = smul.addr %s327, 10
      %s329 = smul.addr %s325, 80
      %s330 = sadd.s32 %s328, %s329
      %s331 = smul.addr %s330, 4
      %s332 = scalar_lea.vmem %s5, %s331
      %p333 = pneg %p211
      %p334 = pneg %p208
      %p335 = scmp.lt.s32.totalorder %s22, 1
      %s336 = scalar_select %p335, %s22, 1
      %p337 = scmp.lt.s32.totalorder %s23, 7
      %s338 = scalar_select %p337, %s23, 7
      %s339 = smul.addr %s336, 8
      %s340 = sadd.s32 %s338, %s339
      %s341 = smul.addr %s340, 2
      %s342 = scalar_lea.vmem %s6, %s341
      %p343 = scmp.lt.s32.totalorder %s22, 1
      %s344 = scalar_select %p343, %s22, 1
      %p345 = scmp.lt.s32.totalorder %s23, 9
      %s346 = scalar_select %p345, %s23, 9
      %s347 = smul.addr %s346, 15
      %s348 = smul.addr %s344, 150
      %s349 = sadd.s32 %s347, %s348
      %s350 = smul.addr %s349, 4
      %s351 = scalar_lea.vmem %s1, %s350
      %s352 = sadd.s32 %s23, 1
      %p353 = scmp.lt.s32.totalorder %s22, 1
      %s354 = scalar_select %p353, %s22, 1
      %p355 = scmp.lt.s32.totalorder %s352, 9
      %s356 = scalar_select %p355, %s352, 9
      %s357 = smul.addr %s356, 15
      %s358 = smul.addr %s354, 150
      %s359 = sadd.s32 %s357, %s358
      %s360 = smul.addr %s359, 4
      %s361 = scalar_lea.vmem %s2, %s360
      %s362 = sadd.s32 %s23, 1
      %s363 = sadd.s32 %s23, 2
      %p364 = scmp.lt.s32.totalorder %s22, 1
      %s365 = scalar_select %p364, %s22, 1
      %p366 = scmp.lt.s32.totalorder %s363, 9
      %s367 = scalar_select %p366, %s363, 9
      %s368 = smul.addr %s367, 15
      %s369 = smul.addr %s365, 150
      %s370 = sadd.s32 %s368, %s369
      %s371 = smul.addr %s370, 4
      %s372 = scalar_lea.vmem %s3, %s371
      %s373 = sadd.s32 %s23, 2
      %p374 = scmp.lt.s32.totalorder %s22, 1
      %s375 = scalar_select %p374, %s22, 1
      %p376 = scmp.lt.s32.totalorder %s23, 7
      %s377 = scalar_select %p376, %s23, 7
      %s378 = smul.addr %s377, 10
      %s379 = smul.addr %s375, 80
      %s380 = sadd.s32 %s378, %s379
      %s381 = smul.addr %s380, 4
      %s382 = scalar_lea.vmem %s5, %s381
      %p383 = scmp.lt.s32.totalorder %s22, 1
      %s384 = scalar_select %p383, %s22, 1
      %p385 = scmp.lt.s32.totalorder %s23, 7
      %s386 = scalar_select %p385, %s23, 7
      %s387 = smul.addr %s384, 8
      %s388 = sadd.s32 %s386, %s387
      %s389 = smul.addr %s388, 2
      %s390 = scalar_lea.vmem %s6, %s389
      %v392 = vld [vmem:[%s351 + $0x4] sm:$0xf]
      %v393 = vld [vmem:[%s351 + $0x8] sm:$0xf]
      %v394 = vld [vmem:[%s351 + $0xc] sm:$0xf]
      %v395 = vld [vmem:[%s351 + $0x10] sm:$0xf]
      %v396 = vld [vmem:[%s351 + $0x14] sm:$0xf]
      %v397 = vld [vmem:[%s351 + $0x18] sm:$0xf]
      %v398 = vld [vmem:[%s351 + $0x1c] sm:$0xf]
      %v399 = vld [vmem:[%s351 + $0x20] sm:$0xf]
      %v400 = vld [vmem:[%s351 + $0x24] sm:$0xf]
      %v401 = vld [vmem:[%s351 + $0x28] sm:$0xf]
      %v402 = vld [vmem:[%s351 + $0x2c] sm:$0x1]
      %v403 = vld [vmem:[%s4] sm:$0xf]
      %v404 = vld [vmem:[%s351 + $0x4] sm:$0xe]
      %s405 = scalar_lea.vmem %s4, 4
      %v406 = vld [vmem:[%s405] sm:$0xf]
      %v418 = vunpack.c.l.b16 %v404
      %v419 = vunpack.c.l.b16 %v393
      %v420 = vunpack.c.l.b16 %v394
      %v421 = vunpack.c.l.b16 %v395
      %v422 = vunpack.c.l.b16 %v396
      %v423 = vunpack.c.l.b16 %v397
      %v424 = vunpack.c.l.b16 %v398
      %v425 = vunpack.c.l.b16 %v399
      %v426 = vunpack.c.l.b16 %v400
      %v427 = vunpack.c.l.b16 %v401
      %v428 = vunpack.c.l.b16 %v402
      %v429 = vpack.c.b16 %v419, %v418
      %v430 = vpack.c.b16 %v421, %v420
      %v431 = vpack.c.b16 %v423, %v422
      %v432 = vpack.c.b16 %v425, %v424
      %v433 = vpack.c.b16 %v427, %v426
      %v434 = vpack.c.b16 %v428, %v428
      %vm435 = vcmask 1046528
      %v436 = vrot.slane %v429, 1
      %v437 = vrot.slane %v430, 1
      %v438 = vsel %vm435, %v436, %v437
      %v439 = vrot.slane %v431, 1
      %v440 = vsel %vm435, %v437, %v439
      %v441 = vrot.slane %v432, 1
      %v442 = vsel %vm435, %v439, %v441
      %v443 = vrot.slane %v433, 1
      %v444 = vsel %vm435, %v441, %v443
      %v445 = vrot.slane %v434, 1
      %v446 = vsel %vm435, %v443, %v445
      %vm447 = vcmask 64512
      %v449 = vsel %vm447, %v438, 0
      %v452 = vsel %vm447, %v440, 0
      %v455 = vsel %vm447, %v442, 0
      %v458 = vsel %vm447, %v444, 0
      %v461 = vsel %vm447, %v446, 0
      %vm463 = vcmask 1043456
      %v465 = vsel %vm463, %v406, 0
      %467 = vmatprep.subr.bf16.mxu0 0
      %468 = vmatpush1.bf16.msra.mxu0 %v465
      %469 = vmatprep.subr.bf16.mxu0 0
      %470 = vmatpush1.bf16.msra.mxu0 0
      %471 = vmatprep.subr.bf16.mxu0 0
      %472 = vmatpush1.bf16.msra.mxu0 0
      %473 = vmatprep.subr.bf16.mxu0 0
      %474 = vmatpush1.bf16.msra.mxu0 0
      %475 = vmatprep.subr.bf16.mxu0 0
      %476 = vmatpush1.bf16.msra.mxu0 0
      %477 = vmatprep.subr.bf16.mxu0 0
      %478 = vmatpush1.bf16.msra.mxu0 0
      %479 = vmatprep.subr.bf16.mxu0 0
      %480 = vmatpush1.bf16.msra.mxu0 0
      %481 = vmatprep.subr.bf16.mxu0 0
      %482 = vmatpush1.bf16.msra.mxu0 0
      %483 = vmatprep.subr.bf16.mxu0 0
      %484 = vmatpush1.bf16.msra.mxu0 0
      %485 = vmatprep.subr.bf16.mxu0 0
      %486 = vmatpush1.bf16.msra.mxu0 0
      %487 = vmatprep.subr.bf16.mxu0 0
      %488 = vmatpush1.bf16.msra.mxu0 0
      %489 = vmatprep.subr.bf16.mxu0 0
      %490 = vmatpush1.bf16.msra.mxu0 0
      %491 = vmatprep.subr.bf16.mxu0 0
      %492 = vmatpush1.bf16.msra.mxu0 0
      %493 = vmatprep.subr.bf16.mxu0 0
      %494 = vmatpush1.bf16.msra.mxu0 0
      %495 = vmatprep.subr.bf16.mxu0 0
      %496 = vmatpush1.bf16.msra.mxu0 0
      %497 = vmatprep.subr.bf16.mxu0 0
      %498 = vmatpush1.bf16.msra.mxu0 0
      %499 = vmatprep.mubr.bf16.mxu0 0
      %500 = vmatmul.mubr.bf16.gmra.mrb[0].mxu0 %v449
      %v501 = vpop.f32.mrb[0].mxu0
      %v502 = vadd.f32 0.0, %v501
      %v503 = vpop.f32.mrb[0].mxu0
      %v504 = vpop.f32.mrb[0].mxu0
      %v505 = vadd.f32 0.0, %v504
      %v506 = vpop.f32.mrb[0].mxu0
      %507 = vmatprep.mubr.bf16.mxu0 0
      %508 = vmatmul.mubr.bf16.gmra.mrb[0].mxu0 %v452
      %v509 = vpop.f32.mrb[0].mxu0
      %v510 = vadd.f32 0.0, %v509
      %v511 = vpop.f32.mrb[0].mxu0
      %v512 = vpop.f32.mrb[0].mxu0
      %v513 = vadd.f32 0.0, %v512
      %v514 = vpop.f32.mrb[0].mxu0
      %515 = vmatprep.mubr.bf16.mxu0 0
      %516 = vmatmul.mubr.bf16.gmra.mrb[0].mxu0 %v455
      %v517 = vpop.f32.mrb[0].mxu0
      %v518 = vadd.f32 0.0, %v517
      %v519 = vpop.f32.mrb[0].mxu0
      %v520 = vpop.f32.mrb[0].mxu0
      %v521 = vadd.f32 0.0, %v520
      %v522 = vpop.f32.mrb[0].mxu0
      %523 = vmatprep.mubr.bf16.mxu0 0
      %524 = vmatmul.mubr.bf16.gmra.mrb[0].mxu0 %v458
      %v525 = vpop.f32.mrb[0].mxu0
      %v526 = vadd.f32 0.0, %v525
      %v527 = vpop.f32.mrb[0].mxu0
      %v528 = vpop.f32.mrb[0].mxu0
      %v529 = vadd.f32 0.0, %v528
      %v530 = vpop.f32.mrb[0].mxu0
      %531 = vmatprep.mubr.bf16.mxu0 0
      %532 = vmatmul.mubr.bf16.gmra.mrb[0].mxu0 %v461
      %v533 = vpop.f32.mrb[0].mxu0
      %v534 = vadd.f32 0.0, %v533
      %v535 = vpop.f32.mrb[0].mxu0
      %v536 = vpop.f32.mrb[0].mxu0
      %v537 = vadd.f32 0.0, %v536
      %v538 = vpop.f32.mrb[0].mxu0
      %539 = vdwg.mxu0
      %v541 = vunpack.c.l.b16 %v392
      %v542 = vpack.c.b16 %v419, %v541
      %vm543 = vsmask.f32 7424
      %v545 = vshrl.u32 %v542, 16
      %v547 = vshll.u32 %v542, 16
      %v549 = vrot.slane %v547, 1
      %v550 = vor.u32 %v545, %v549
      %v552 = vshll.u32 %v430, 16
      %v554 = vrot.slane %v552, 1
      %v555 = vsel %vm543, %v550, %v554
      %v556 = vshrl.u32 %v430, 16
      %v558 = vor.u32 %v556, %v554
      %v560 = vshll.u32 %v431, 16
      %v562 = vrot.slane %v560, 1
      %v563 = vsel %vm543, %v558, %v562
      %v564 = vshrl.u32 %v431, 16
      %v566 = vor.u32 %v564, %v562
      %v568 = vshll.u32 %v432, 16
      %v570 = vrot.slane %v568, 1
      %v571 = vsel %vm543, %v566, %v570
      %v572 = vshrl.u32 %v432, 16
      %v574 = vor.u32 %v572, %v570
      %v576 = vshll.u32 %v433, 16
      %v578 = vrot.slane %v576, 1
      %v579 = vsel %vm543, %v574, %v578
      %v580 = vshrl.u32 %v433, 16
      %v582 = vor.u32 %v580, %v578
      %v584 = vshll.u32 %v434, 16
      %v586 = vrot.slane %v584, 1
      %v587 = vsel %vm543, %v582, %v586
      %v589 = vsel %vm447, %v555, 0
      %v592 = vsel %vm447, %v563, 0
      %v595 = vsel %vm447, %v571, 0
      %v598 = vsel %vm447, %v579, 0
      %v601 = vsel %vm447, %v587, 0
      %v604 = vsel %vm463, %v403, 0
      %606 = vmatprep.subr.bf16.mxu0 0
      %607 = vmatpush1.bf16.msra.mxu0 %v604
      %608 = vmatprep.subr.bf16.mxu0 0
      %609 = vmatpush1.bf16.msra.mxu0 0
      %610 = vmatprep.subr.bf16.mxu0 0
      %611 = vmatpush1.bf16.msra.mxu0 0
      %612 = vmatprep.subr.bf16.mxu0 0
      %613 = vmatpush1.bf16.msra.mxu0 0
      %614 = vmatprep.subr.bf16.mxu0 0
      %615 = vmatpush1.bf16.msra.mxu0 0
      %616 = vmatprep.subr.bf16.mxu0 0
      %617 = vmatpush1.bf16.msra.mxu0 0
      %618 = vmatprep.subr.bf16.mxu0 0
      %619 = vmatpush1.bf16.msra.mxu0 0
      %620 = vmatprep.subr.bf16.mxu0 0
      %621 = vmatpush1.bf16.msra.mxu0 0
      %622 = vmatprep.subr.bf16.mxu0 0
      %623 = vmatpush1.bf16.msra.mxu0 0
      %624 = vmatprep.subr.bf16.mxu0 0
      %625 = vmatpush1.bf16.msra.mxu0 0
      %626 = vmatprep.subr.bf16.mxu0 0
      %627 = vmatpush1.bf16.msra.mxu0 0
      %628 = vmatprep.subr.bf16.mxu0 0
      %629 = vmatpush1.bf16.msra.mxu0 0
      %630 = vmatprep.subr.bf16.mxu0 0
      %631 = vmatpush1.bf16.msra.mxu0 0
      %632 = vmatprep.subr.bf16.mxu0 0
      %633 = vmatpush1.bf16.msra.mxu0 0
      %634 = vmatprep.subr.bf16.mxu0 0
      %635 = vmatpush1.bf16.msra.mxu0 0
      %636 = vmatprep.subr.bf16.mxu0 0
      %637 = vmatpush1.bf16.msra.mxu0 0
      %638 = vmatprep.mubr.bf16.mxu0 0
      %639 = vmatmul.mubr.bf16.gmra.mrb[0].mxu0 %v589
      %v640 = vpop.f32.mrb[0].mxu0
      %v641 = vadd.f32 %v502, %v640
      %v642 = vpop.f32.mrb[0].mxu0
      %v643 = vpop.f32.mrb[0].mxu0
      %v644 = vadd.f32 %v505, %v643
      %v645 = vpop.f32.mrb[0].mxu0
      %646 = vmatprep.mubr.bf16.mxu0 0
      %647 = vmatmul.mubr.bf16.gmra.mrb[0].mxu0 %v592
      %v648 = vpop.f32.mrb[0].mxu0
      %v649 = vadd.f32 %v510, %v648
      %v650 = vpop.f32.mrb[0].mxu0
      %v651 = vpop.f32.mrb[0].mxu0
      %v652 = vadd.f32 %v513, %v651
      %v653 = vpop.f32.mrb[0].mxu0
      %654 = vmatprep.mubr.bf16.mxu0 0
      %655 = vmatmul.mubr.bf16.gmra.mrb[0].mxu0 %v595
      %v656 = vpop.f32.mrb[0].mxu0
      %v657 = vadd.f32 %v518, %v656
      %v658 = vpop.f32.mrb[0].mxu0
      %v659 = vpop.f32.mrb[0].mxu0
      %v660 = vadd.f32 %v521, %v659
      %v661 = vpop.f32.mrb[0].mxu0
      %662 = vmatprep.mubr.bf16.mxu0 0
      %663 = vmatmul.mubr.bf16.gmra.mrb[0].mxu0 %v598
      %v664 = vpop.f32.mrb[0].mxu0
      %v665 = vadd.f32 %v526, %v664
      %v666 = vpop.f32.mrb[0].mxu0
      %v667 = vpop.f32.mrb[0].mxu0
      %v668 = vadd.f32 %v529, %v667
      %v669 = vpop.f32.mrb[0].mxu0
      %670 = vmatprep.mubr.bf16.mxu0 0
      %671 = vmatmul.mubr.bf16.gmra.mrb[0].mxu0 %v601
      %v672 = vpop.f32.mrb[0].mxu0
      %v673 = vadd.f32 %v534, %v672
      %v674 = vpop.f32.mrb[0].mxu0
      %v675 = vpop.f32.mrb[0].mxu0
      %v676 = vadd.f32 %v537, %v675
      %v677 = vpop.f32.mrb[0].mxu0
      %678 = vdwg.mxu0
      %v679 = vld [vmem:[%s351 + $0x2c] sm:$0x3]
      %s680 = scalar_lea.vmem %s4, 8
      %v681 = vld [vmem:[%s680] sm:$0xf]
      %v683 = vunpack.c.l.b16 %v679
      %v684 = vpack.c.b16 %v683, %v683
      %vm685 = vsmask.f32 6400
      %v687 = vshrl.u32 %v429, 16
      %v689 = vrot.slane %v687, 1
      %v690 = vshll.u32 %v429, 16
      %v692 = vrot.slane %v690, 2
      %v693 = vor.u32 %v689, %v692
      %v694 = vrot.slane %v556, 1
      %v695 = vrot.slane %v552, 2
      %v696 = vor.u32 %v694, %v695
      %v697 = vsel %vm685, %v693, %v696
      %v698 = vrot.slane %v564, 1
      %v699 = vrot.slane %v560, 2
      %v700 = vor.u32 %v698, %v699
      %v701 = vsel %vm685, %v696, %v700
      %v702 = vrot.slane %v572, 1
      %v703 = vrot.slane %v568, 2
      %v704 = vor.u32 %v702, %v703
      %v705 = vsel %vm685, %v700, %v704
      %v706 = vrot.slane %v580, 1
      %v707 = vrot.slane %v576, 2
      %v708 = vor.u32 %v706, %v707
      %v709 = vsel %vm685, %v704, %v708
      %v711 = vshrl.u32 %v684, 16
      %v713 = vrot.slane %v711, 1
      %v714 = vshll.u32 %v684, 16
      %v716 = vrot.slane %v714, 2
      %v717 = vor.u32 %v713, %v716
      %v718 = vsel %vm685, %v708, %v717
      %v720 = vsel %vm447, %v697, 0
      %v723 = vsel %vm447, %v701, 0
      %v726 = vsel %vm447, %v705, 0
      %v729 = vsel %vm447, %v709, 0
      %v732 = vsel %vm447, %v718, 0
      %v735 = vsel %vm463, %v681, 0
      %737 = vmatprep.subr.bf16.mxu0 0
      %738 = vmatpush1.bf16.msra.mxu0 %v735
      %739 = vmatprep.subr.bf16.mxu0 0
      %740 = vmatpush1.bf16.msra.mxu0 0
      %741 = vmatprep.subr.bf16.mxu0 0
      %742 = vmatpush1.bf16.msra.mxu0 0
      %743 = vmatprep.subr.bf16.mxu0 0
      %744 = vmatpush1.bf16.msra.mxu0 0
      %745 = vmatprep.subr.bf16.mxu0 0
      %746 = vmatpush1.bf16.msra.mxu0 0
      %747 = vmatprep.subr.bf16.mxu0 0
      %748 = vmatpush1.bf16.msra.mxu0 0
      %749 = vmatprep.subr.bf16.mxu0 0
      %750 = vmatpush1.bf16.msra.mxu0 0
      %751 = vmatprep.subr.bf16.mxu0 0
      %752 = vmatpush1.bf16.msra.mxu0 0
      %753 = vmatprep.subr.bf16.mxu0 0
      %754 = vmatpush1.bf16.msra.mxu0 0
      %755 = vmatprep.subr.bf16.mxu0 0
      %756 = vmatpush1.bf16.msra.mxu0 0
      %757 = vmatprep.subr.bf16.mxu0 0
      %758 = vmatpush1.bf16.msra.mxu0 0
      %759 = vmatprep.subr.bf16.mxu0 0
      %760 = vmatpush1.bf16.msra.mxu0 0
      %761 = vmatprep.subr.bf16.mxu0 0
      %762 = vmatpush1.bf16.msra.mxu0 0
      %763 = vmatprep.subr.bf16.mxu0 0
      %764 = vmatpush1.bf16.msra.mxu0 0
      %765 = vmatprep.subr.bf16.mxu0 0
      %766 = vmatpush1.bf16.msra.mxu0 0
      %767 = vmatprep.subr.bf16.mxu0 0
      %768 = vmatpush1.bf16.msra.mxu0 0
      %769 = vmatprep.mubr.bf16.mxu0 0
      %770 = vmatmul.mubr.bf16.gmra.mrb[0].mxu0 %v720
      %v771 = vpop.f32.mrb[0].mxu0
      %v772 = vadd.f32 0.0, %v771
      %v773 = vpop.f32.mrb[0].mxu0
      %v774 = vpop.f32.mrb[0].mxu0
      %v775 = vadd.f32 0.0, %v774
      %v776 = vpop.f32.mrb[0].mxu0
      %777 = vmatprep.mubr.bf16.mxu0 0
      %778 = vmatmul.mubr.bf16.gmra.mrb[0].mxu0 %v723
      %v779 = vpop.f32.mrb[0].mxu0
      %v780 = vadd.f32 0.0, %v779
      %v781 = vpop.f32.mrb[0].mxu0
      %v782 = vpop.f32.mrb[0].mxu0
      %v783 = vadd.f32 0.0, %v782
      %v784 = vpop.f32.mrb[0].mxu0
      %785 = vmatprep.mubr.bf16.mxu0 0
      %786 = vmatmul.mubr.bf16.gmra.mrb[0].mxu0 %v726
      %v787 = vpop.f32.mrb[0].mxu0
      %v788 = vadd.f32 0.0, %v787
      %v789 = vpop.f32.mrb[0].mxu0
      %v790 = vpop.f32.mrb[0].mxu0
      %v791 = vadd.f32 0.0, %v790
      %v792 = vpop.f32.mrb[0].mxu0
      %793 = vmatprep.mubr.bf16.mxu0 0
      %794 = vmatmul.mubr.bf16.gmra.mrb[0].mxu0 %v729
      %v795 = vpop.f32.mrb[0].mxu0
      %v796 = vadd.f32 0.0, %v795
      %v797 = vpop.f32.mrb[0].mxu0
      %v798 = vpop.f32.mrb[0].mxu0
      %v799 = vadd.f32 0.0, %v798
      %v800 = vpop.f32.mrb[0].mxu0
      %801 = vmatprep.mubr.bf16.mxu0 0
      %802 = vmatmul.mubr.bf16.gmra.mrb[0].mxu0 %v732
      %v803 = vpop.f32.mrb[0].mxu0
      %v804 = vadd.f32 0.0, %v803
      %v805 = vpop.f32.mrb[0].mxu0
      %v806 = vpop.f32.mrb[0].mxu0
      %v807 = vadd.f32 0.0, %v806
      %v808 = vpop.f32.mrb[0].mxu0
      %809 = vdwg.mxu0
      %v810 = vadd.f32 %v641, %v772
      %v811 = vadd.f32 %v644, %v775
      %v812 = vadd.f32 %v649, %v780
      %v813 = vadd.f32 %v652, %v783
      %v814 = vadd.f32 %v657, %v788
      %v815 = vadd.f32 %v660, %v791
      %v816 = vadd.f32 %v665, %v796
      %v817 = vadd.f32 %v668, %v799
      %v818 = vadd.f32 %v673, %v804
      %v819 = vadd.f32 %v676, %v807
      %v820 = vld [vmem:[%s351 + $0x8] sm:$0xe]
      %v821 = vld [vmem:[%s351 + $0xc] sm:$0xf]
      %v822 = vld [vmem:[%s351 + $0x10] sm:$0xf]
      %v823 = vld [vmem:[%s351 + $0x14] sm:$0xf]
      %v824 = vld [vmem:[%s351 + $0x18] sm:$0xf]
      %v825 = vld [vmem:[%s351 + $0x1c] sm:$0xf]
      %v826 = vld [vmem:[%s351 + $0x20] sm:$0xf]
      %v827 = vld [vmem:[%s351 + $0x24] sm:$0xf]
      %v828 = vld [vmem:[%s351 + $0x28] sm:$0xf]
      %v829 = vld [vmem:[%s351 + $0x2c] sm:$0xf]
      %v830 = vld [vmem:[%s351 + $0x30] sm:$0x3]
      %s831 = scalar_lea.vmem %s4, 12
      %v832 = vld [vmem:[%s831] sm:$0xf]
      %v844 = vunpack.c.l.b16 %v820
      %v845 = vunpack.c.l.b16 %v821
      %v846 = vunpack.c.l.b16 %v822
      %v847 = vunpack.c.l.b16 %v823
      %v848 = vunpack.c.l.b16 %v824
      %v849 = vunpack.c.l.b16 %v825
      %v850 = vunpack.c.l.b16 %v826
      %v851 = vunpack.c.l.b16 %v827
      %v852 = vunpack.c.l.b16 %v828
      %v853 = vunpack.c.l.b16 %v829
      %v854 = vunpack.c.l.b16 %v830
      %v855 = vpack.c.b16 %v845, %v844
      %v856 = vpack.c.b16 %v847, %v846
      %v857 = vpack.c.b16 %v849, %v848
      %v858 = vpack.c.b16 %v851, %v850
      %v859 = vpack.c.b16 %v853, %v852
      %v860 = vpack.c.b16 %v854, %v854
      %v862 = vshrl.u32 %v855, 16
      %v864 = vrot.slane %v862, 1
      %v865 = vshll.u32 %v855, 16
      %v867 = vrot.slane %v865, 2
      %v868 = vor.u32 %v864, %v867
      %v870 = vshrl.u32 %v856, 16
      %v872 = vrot.slane %v870, 1
      %v873 = vshll.u32 %v856, 16
      %v875 = vrot.slane %v873, 2
      %v876 = vor.u32 %v872, %v875
      %v877 = vsel %vm685, %v868, %v876
      %v879 = vshrl.u32 %v857, 16
      %v881 = vrot.slane %v879, 1
      %v882 = vshll.u32 %v857, 16
      %v884 = vrot.slane %v882, 2
      %v885 = vor.u32 %v881, %v884
      %v886 = vsel %vm685, %v876, %v885
      %v888 = vshrl.u32 %v858, 16
      %v890 = vrot.slane %v888, 1
      %v891 = vshll.u32 %v858, 16
      %v893 = vrot.slane %v891, 2
      %v894 = vor.u32 %v890, %v893
      %v895 = vsel %vm685, %v885, %v894
      %v897 = vshrl.u32 %v859, 16
      %v899 = vrot.slane %v897, 1
      %v900 = vshll.u32 %v859, 16
      %v902 = vrot.slane %v900, 2
      %v903 = vor.u32 %v899, %v902
      %v904 = vsel %vm685, %v894, %v903
      %v906 = vshrl.u32 %v860, 16
      %v908 = vrot.slane %v906, 1
      %v909 = vshll.u32 %v860, 16
      %v911 = vrot.slane %v909, 2
      %v912 = vor.u32 %v908, %v911
      %v913 = vsel %vm685, %v903, %v912
      %v915 = vsel %vm447, %v877, 0
      %v918 = vsel %vm447, %v886, 0
      %v921 = vsel %vm447, %v895, 0
      %v924 = vsel %vm447, %v904, 0
      %v927 = vsel %vm447, %v913, 0
      %v930 = vsel %vm463, %v832, 0
      %932 = vmatprep.subr.bf16.mxu0 0
      %933 = vmatpush1.bf16.msra.mxu0 %v930
      %934 = vmatprep.subr.bf16.mxu0 0
      %935 = vmatpush1.bf16.msra.mxu0 0
      %936 = vmatprep.subr.bf16.mxu0 0
      %937 = vmatpush1.bf16.msra.mxu0 0
      %938 = vmatprep.subr.bf16.mxu0 0
      %939 = vmatpush1.bf16.msra.mxu0 0
      %940 = vmatprep.subr.bf16.mxu0 0
      %941 = vmatpush1.bf16.msra.mxu0 0
      %942 = vmatprep.subr.bf16.mxu0 0
      %943 = vmatpush1.bf16.msra.mxu0 0
      %944 = vmatprep.subr.bf16.mxu0 0
      %945 = vmatpush1.bf16.msra.mxu0 0
      %946 = vmatprep.subr.bf16.mxu0 0
      %947 = vmatpush1.bf16.msra.mxu0 0
      %948 = vmatprep.subr.bf16.mxu0 0
      %949 = vmatpush1.bf16.msra.mxu0 0
      %950 = vmatprep.subr.bf16.mxu0 0
      %951 = vmatpush1.bf16.msra.mxu0 0
      %952 = vmatprep.subr.bf16.mxu0 0
      %953 = vmatpush1.bf16.msra.mxu0 0
      %954 = vmatprep.subr.bf16.mxu0 0
      %955 = vmatpush1.bf16.msra.mxu0 0
      %956 = vmatprep.subr.bf16.mxu0 0
      %957 = vmatpush1.bf16.msra.mxu0 0
      %958 = vmatprep.subr.bf16.mxu0 0
      %959 = vmatpush1.bf16.msra.mxu0 0
      %960 = vmatprep.subr.bf16.mxu0 0
      %961 = vmatpush1.bf16.msra.mxu0 0
      %962 = vmatprep.subr.bf16.mxu0 0
      %963 = vmatpush1.bf16.msra.mxu0 0
      %964 = vmatprep.mubr.bf16.mxu0 0
      %965 = vmatmul.mubr.bf16.gmra.mrb[0].mxu0 %v915
      %v966 = vpop.f32.mrb[0].mxu0
      %v967 = vadd.f32 0.0, %v966
      %v968 = vpop.f32.mrb[0].mxu0
      %v969 = vpop.f32.mrb[0].mxu0
      %v970 = vadd.f32 0.0, %v969
      %v971 = vpop.f32.mrb[0].mxu0
      %972 = vmatprep.mubr.bf16.mxu0 0
      %973 = vmatmul.mubr.bf16.gmra.mrb[0].mxu0 %v918
      %v974 = vpop.f32.mrb[0].mxu0
      %v975 = vadd.f32 0.0, %v974
      %v976 = vpop.f32.mrb[0].mxu0
      %v977 = vpop.f32.mrb[0].mxu0
      %v978 = vadd.f32 0.0, %v977
      %v979 = vpop.f32.mrb[0].mxu0
      %980 = vmatprep.mubr.bf16.mxu0 0
      %981 = vmatmul.mubr.bf16.gmra.mrb[0].mxu0 %v921
      %v982 = vpop.f32.mrb[0].mxu0
      %v983 = vadd.f32 0.0, %v982
      %v984 = vpop.f32.mrb[0].mxu0
      %v985 = vpop.f32.mrb[0].mxu0
      %v986 = vadd.f32 0.0, %v985
      %v987 = vpop.f32.mrb[0].mxu0
      %988 = vmatprep.mubr.bf16.mxu0 0
      %989 = vmatmul.mubr.bf16.gmra.mrb[0].mxu0 %v924
      %v990 = vpop.f32.mrb[0].mxu0
      %v991 = vadd.f32 0.0, %v990
      %v992 = vpop.f32.mrb[0].mxu0
      %v993 = vpop.f32.mrb[0].mxu0
      %v994 = vadd.f32 0.0, %v993
      %v995 = vpop.f32.mrb[0].mxu0
      %996 = vmatprep.mubr.bf16.mxu0 0
      %997 = vmatmul.mubr.bf16.gmra.mrb[0].mxu0 %v927
      %v998 = vpop.f32.mrb[0].mxu0
      %v999 = vadd.f32 0.0, %v998
      %v1000 = vpop.f32.mrb[0].mxu0
      %v1001 = vpop.f32.mrb[0].mxu0
      %v1002 = vadd.f32 0.0, %v1001
      %v1003 = vpop.f32.mrb[0].mxu0
      %1004 = vdwg.mxu0
      %v1005 = vadd.f32 %v810, %v967
      %v1006 = vadd.f32 %v811, %v970
      %v1007 = vadd.f32 %v812, %v975
      %v1008 = vadd.f32 %v813, %v978
      %v1009 = vadd.f32 %v814, %v983
      %v1010 = vadd.f32 %v815, %v986
      %v1011 = vadd.f32 %v816, %v991
      %v1012 = vadd.f32 %v817, %v994
      %v1013 = vadd.f32 %v818, %v999
      %v1014 = vadd.f32 %v819, %v1002
      %v1015 = vld [vmem:[%s351 + $0x8] sm:$0xc]
      %s1016 = scalar_lea.vmem %s4, 16
      %v1017 = vld [vmem:[%s1016] sm:$0xf]
      %v1019 = vunpack.c.l.b16 %v1015
      %v1020 = vpack.c.b16 %v845, %v1019
      %vm1021 = vcmask 1045504
      %v1022 = vrot.slane %v1020, 2
      %v1023 = vrot.slane %v856, 2
      %v1024 = vsel %vm1021, %v1022, %v1023
      %v1025 = vrot.slane %v857, 2
      %v1026 = vsel %vm1021, %v1023, %v1025
      %v1027 = vrot.slane %v858, 2
      %v1028 = vsel %vm1021, %v1025, %v1027
      %v1029 = vrot.slane %v859, 2
      %v1030 = vsel %vm1021, %v1027, %v1029
      %v1031 = vrot.slane %v860, 2
      %v1032 = vsel %vm1021, %v1029, %v1031
      %v1034 = vsel %vm447, %v1024, 0
      %v1037 = vsel %vm447, %v1026, 0
      %v1040 = vsel %vm447, %v1028, 0
      %v1043 = vsel %vm447, %v1030, 0
      %v1046 = vsel %vm447, %v1032, 0
      %v1049 = vsel %vm463, %v1017, 0
      %1051 = vmatprep.subr.bf16.mxu0 0
      %1052 = vmatpush1.bf16.msra.mxu0 %v1049
      %1053 = vmatprep.subr.bf16.mxu0 0
      %1054 = vmatpush1.bf16.msra.mxu0 0
      %1055 = vmatprep.subr.bf16.mxu0 0
      %1056 = vmatpush1.bf16.msra.mxu0 0
      %1057 = vmatprep.subr.bf16.mxu0 0
      %1058 = vmatpush1.bf16.msra.mxu0 0
      %1059 = vmatprep.subr.bf16.mxu0 0
      %1060 = vmatpush1.bf16.msra.mxu0 0
      %1061 = vmatprep.subr.bf16.mxu0 0
      %1062 = vmatpush1.bf16.msra.mxu0 0
      %1063 = vmatprep.subr.bf16.mxu0 0
      %1064 = vmatpush1.bf16.msra.mxu0 0
      %1065 = vmatprep.subr.bf16.mxu0 0
      %1066 = vmatpush1.bf16.msra.mxu0 0
      %1067 = vmatprep.subr.bf16.mxu0 0
      %1068 = vmatpush1.bf16.msra.mxu0 0
      %1069 = vmatprep.subr.bf16.mxu0 0
      %1070 = vmatpush1.bf16.msra.mxu0 0
      %1071 = vmatprep.subr.bf16.mxu0 0
      %1072 = vmatpush1.bf16.msra.mxu0 0
      %1073 = vmatprep.subr.bf16.mxu0 0
      %1074 = vmatpush1.bf16.msra.mxu0 0
      %1075 = vmatprep.subr.bf16.mxu0 0
      %1076 = vmatpush1.bf16.msra.mxu0 0
      %1077 = vmatprep.subr.bf16.mxu0 0
      %1078 = vmatpush1.bf16.msra.mxu0 0
      %1079 = vmatprep.subr.bf16.mxu0 0
      %1080 = vmatpush1.bf16.msra.mxu0 0
      %1081 = vmatprep.subr.bf16.mxu0 0
      %1082 = vmatpush1.bf16.msra.mxu0 0
      %1083 = vmatprep.mubr.bf16.mxu0 0
      %1084 = vmatmul.mubr.bf16.gmra.mrb[0].mxu0 %v1034
      %v1085 = vpop.f32.mrb[0].mxu0
      %v1086 = vadd.f32 0.0, %v1085
      %v1087 = vpop.f32.mrb[0].mxu0
      %v1088 = vpop.f32.mrb[0].mxu0
      %v1089 = vadd.f32 0.0, %v1088
      %v1090 = vpop.f32.mrb[0].mxu0
      %1091 = vmatprep.mubr.bf16.mxu0 0
      %1092 = vmatmul.mubr.bf16.gmra.mrb[0].mxu0 %v1037
      %v1093 = vpop.f32.mrb[0].mxu0
      %v1094 = vadd.f32 0.0, %v1093
      %v1095 = vpop.f32.mrb[0].mxu0
      %v1096 = vpop.f32.mrb[0].mxu0
      %v1097 = vadd.f32 0.0, %v1096
      %v1098 = vpop.f32.mrb[0].mxu0
      %1099 = vmatprep.mubr.bf16.mxu0 0
      %1100 = vmatmul.mubr.bf16.gmra.mrb[0].mxu0 %v1040
      %v1101 = vpop.f32.mrb[0].mxu0
      %v1102 = vadd.f32 0.0, %v1101
      %v1103 = vpop.f32.mrb[0].mxu0
      %v1104 = vpop.f32.mrb[0].mxu0
      %v1105 = vadd.f32 0.0, %v1104
      %v1106 = vpop.f32.mrb[0].mxu0
      %1107 = vmatprep.mubr.bf16.mxu0 0
      %1108 = vmatmul.mubr.bf16.gmra.mrb[0].mxu0 %v1043
      %v1109 = vpop.f32.mrb[0].mxu0
      %v1110 = vadd.f32 0.0, %v1109
      %v1111 = vpop.f32.mrb[0].mxu0
      %v1112 = vpop.f32.mrb[0].mxu0
      %v1113 = vadd.f32 0.0, %v1112
      %v1114 = vpop.f32.mrb[0].mxu0
      %1115 = vmatprep.mubr.bf16.mxu0 0
      %1116 = vmatmul.mubr.bf16.gmra.mrb[0].mxu0 %v1046
      %v1117 = vpop.f32.mrb[0].mxu0
      %v1118 = vadd.f32 0.0, %v1117
      %v1119 = vpop.f32.mrb[0].mxu0
      %v1120 = vpop.f32.mrb[0].mxu0
      %v1121 = vadd.f32 0.0, %v1120
      %v1122 = vpop.f32.mrb[0].mxu0
      %1123 = vdwg.mxu0
      %v1124 = vadd.f32 %v1005, %v1086
      %v1125 = vadd.f32 %v1006, %v1089
      %v1126 = vadd.f32 %v1007, %v1094
      %v1127 = vadd.f32 %v1008, %v1097
      %v1128 = vadd.f32 %v1009, %v1102
      %v1129 = vadd.f32 %v1010, %v1105
      %v1130 = vadd.f32 %v1011, %v1110
      %v1131 = vadd.f32 %v1012, %v1113
      %v1132 = vadd.f32 %v1013, %v1118
      %v1133 = vadd.f32 %v1014, %v1121
      %v1134 = vld [vmem:[%s351 + $0x30] sm:$0x7]
      %s1135 = scalar_lea.vmem %s4, 20
      %v1136 = vld [vmem:[%s1135] sm:$0xf]
      %v1138 = vunpack.c.l.b16 %v1134
      %v1139 = vpack.c.b16 %v1138, %v1138
      %vm1140 = vsmask.f32 5376
      %v1142 = vshrl.u32 %v1020, 16
      %v1144 = vrot.slane %v1142, 2
      %v1145 = vshll.u32 %v1020, 16
      %v1147 = vrot.slane %v1145, 3
      %v1148 = vor.u32 %v1144, %v1147
      %v1149 = vrot.slane %v870, 2
      %v1150 = vrot.slane %v873, 3
      %v1151 = vor.u32 %v1149, %v1150
      %v1152 = vsel %vm1140, %v1148, %v1151
      %v1153 = vrot.slane %v879, 2
      %v1154 = vrot.slane %v882, 3
      %v1155 = vor.u32 %v1153, %v1154
      %v1156 = vsel %vm1140, %v1151, %v1155
      %v1157 = vrot.slane %v888, 2
      %v1158 = vrot.slane %v891, 3
      %v1159 = vor.u32 %v1157, %v1158
      %v1160 = vsel %vm1140, %v1155, %v1159
      %v1161 = vrot.slane %v897, 2
      %v1162 = vrot.slane %v900, 3
      %v1163 = vor.u32 %v1161, %v1162
      %v1164 = vsel %vm1140, %v1159, %v1163
      %v1166 = vshrl.u32 %v1139, 16
      %v1168 = vrot.slane %v1166, 2
      %v1169 = vshll.u32 %v1139, 16
      %v1171 = vrot.slane %v1169, 3
      %v1172 = vor.u32 %v1168, %v1171
      %v1173 = vsel %vm1140, %v1163, %v1172
      %v1175 = vsel %vm447, %v1152, 0
      %v1178 = vsel %vm447, %v1156, 0
      %v1181 = vsel %vm447, %v1160, 0
      %v1184 = vsel %vm447, %v1164, 0
      %v1187 = vsel %vm447, %v1173, 0
      %v1190 = vsel %vm463, %v1136, 0
      %1192 = vmatprep.subr.bf16.mxu0 0
      %1193 = vmatpush1.bf16.msra.mxu0 %v1190
      %1194 = vmatprep.subr.bf16.mxu0 0
      %1195 = vmatpush1.bf16.msra.mxu0 0
      %1196 = vmatprep.subr.bf16.mxu0 0
      %1197 = vmatpush1.bf16.msra.mxu0 0
      %1198 = vmatprep.subr.bf16.mxu0 0
      %1199 = vmatpush1.bf16.msra.mxu0 0
      %1200 = vmatprep.subr.bf16.mxu0 0
      %1201 = vmatpush1.bf16.msra.mxu0 0
      %1202 = vmatprep.subr.bf16.mxu0 0
      %1203 = vmatpush1.bf16.msra.mxu0 0
      %1204 = vmatprep.subr.bf16.mxu0 0
      %1205 = vmatpush1.bf16.msra.mxu0 0
      %1206 = vmatprep.subr.bf16.mxu0 0
      %1207 = vmatpush1.bf16.msra.mxu0 0
      %1208 = vmatprep.subr.bf16.mxu0 0
      %1209 = vmatpush1.bf16.msra.mxu0 0
      %1210 = vmatprep.subr.bf16.mxu0 0
      %1211 = vmatpush1.bf16.msra.mxu0 0
      %1212 = vmatprep.subr.bf16.mxu0 0
      %1213 = vmatpush1.bf16.msra.mxu0 0
      %1214 = vmatprep.subr.bf16.mxu0 0
      %1215 = vmatpush1.bf16.msra.mxu0 0
      %1216 = vmatprep.subr.bf16.mxu0 0
      %1217 = vmatpush1.bf16.msra.mxu0 0
      %1218 = vmatprep.subr.bf16.mxu0 0
      %1219 = vmatpush1.bf16.msra.mxu0 0
      %1220 = vmatprep.subr.bf16.mxu0 0
      %1221 = vmatpush1.bf16.msra.mxu0 0
      %1222 = vmatprep.subr.bf16.mxu0 0
      %1223 = vmatpush1.bf16.msra.mxu0 0
      %1224 = vmatprep.mubr.bf16.mxu0 0
      %1225 = vmatmul.mubr.bf16.gmra.mrb[0].mxu0 %v1175
      %v1226 = vpop.f32.mrb[0].mxu0
      %v1227 = vadd.f32 0.0, %v1226
      %v1228 = vpop.f32.mrb[0].mxu0
      %v1229 = vpop.f32.mrb[0].mxu0
      %v1230 = vadd.f32 0.0, %v1229
      %v1231 = vpop.f32.mrb[0].mxu0
      %1232 = vmatprep.mubr.bf16.mxu0 0
      %1233 = vmatmul.mubr.bf16.gmra.mrb[0].mxu0 %v1178
      %v1234 = vpop.f32.mrb[0].mxu0
      %v1235 = vadd.f32 0.0, %v1234
      %v1236 = vpop.f32.mrb[0].mxu0
      %v1237 = vpop.f32.mrb[0].mxu0
      %v1238 = vadd.f32 0.0, %v1237
      %v1239 = vpop.f32.mrb[0].mxu0
      %1240 = vmatprep.mubr.bf16.mxu0 0
      %1241 = vmatmul.mubr.bf16.gmra.mrb[0].mxu0 %v1181
      %v1242 = vpop.f32.mrb[0].mxu0
      %v1243 = vadd.f32 0.0, %v1242
      %v1244 = vpop.f32.mrb[0].mxu0
      %v1245 = vpop.f32.mrb[0].mxu0
      %v1246 = vadd.f32 0.0, %v1245
      %v1247 = vpop.f32.mrb[0].mxu0
      %1248 = vmatprep.mubr.bf16.mxu0 0
      %1249 = vmatmul.mubr.bf16.gmra.mrb[0].mxu0 %v1184
      %v1250 = vpop.f32.mrb[0].mxu0
      %v1251 = vadd.f32 0.0, %v1250
      %v1252 = vpop.f32.mrb[0].mxu0
      %v1253 = vpop.f32.mrb[0].mxu0
      %v1254 = vadd.f32 0.0, %v1253
      %v1255 = vpop.f32.mrb[0].mxu0
      %1256 = vmatprep.mubr.bf16.mxu0 0
      %1257 = vmatmul.mubr.bf16.gmra.mrb[0].mxu0 %v1187
      %v1258 = vpop.f32.mrb[0].mxu0
      %v1259 = vadd.f32 0.0, %v1258
      %v1260 = vpop.f32.mrb[0].mxu0
      %v1261 = vpop.f32.mrb[0].mxu0
      %v1262 = vadd.f32 0.0, %v1261
      %v1263 = vpop.f32.mrb[0].mxu0
      %1264 = vdwg.mxu0
      %v1265 = vadd.f32 %v1124, %v1227
      %v1266 = vadd.f32 %v1125, %v1230
      %v1267 = vadd.f32 %v1126, %v1235
      %v1268 = vadd.f32 %v1127, %v1238
      %v1269 = vadd.f32 %v1128, %v1243
      %v1270 = vadd.f32 %v1129, %v1246
      %v1271 = vadd.f32 %v1130, %v1251
      %v1272 = vadd.f32 %v1131, %v1254
      %v1273 = vadd.f32 %v1132, %v1259
      %v1274 = vadd.f32 %v1133, %v1262
      %v1275 = vld [vmem:[%s351 + $0xc] sm:$0xc]
      %v1276 = vld [vmem:[%s351 + $0x10] sm:$0xf]
      %v1277 = vld [vmem:[%s351 + $0x14] sm:$0xf]
      %v1278 = vld [vmem:[%s351 + $0x18] sm:$0xf]
      %v1279 = vld [vmem:[%s351 + $0x1c] sm:$0xf]
      %v1280 = vld [vmem:[%s351 + $0x20] sm:$0xf]
      %v1281 = vld [vmem:[%s351 + $0x24] sm:$0xf]
      %v1282 = vld [vmem:[%s351 + $0x28] sm:$0xf]
      %v1283 = vld [vmem:[%s351 + $0x2c] sm:$0xf]
      %v1284 = vld [vmem:[%s351 + $0x30] sm:$0xf]
      %v1285 = vld [vmem:[%s351 + $0x34] sm:$0x7]
      %s1286 = scalar_lea.vmem %s4, 24
      %v1287 = vld [vmem:[%s1286] sm:$0xf]
      %v1299 = vunpack.c.l.b16 %v1275
      %v1300 = vunpack.c.l.b16 %v1276
      %v1301 = vunpack.c.l.b16 %v1277
      %v1302 = vunpack.c.l.b16 %v1278
      %v1303 = vunpack.c.l.b16 %v1279
      %v1304 = vunpack.c.l.b16 %v1280
      %v1305 = vunpack.c.l.b16 %v1281
      %v1306 = vunpack.c.l.b16 %v1282
      %v1307 = vunpack.c.l.b16 %v1283
      %v1308 = vunpack.c.l.b16 %v1284
      %v1309 = vunpack.c.l.b16 %v1285
      %v1310 = vpack.c.b16 %v1300, %v1299
      %v1311 = vpack.c.b16 %v1302, %v1301
      %v1312 = vpack.c.b16 %v1304, %v1303
      %v1313 = vpack.c.b16 %v1306, %v1305
      %v1314 = vpack.c.b16 %v1308, %v1307
      %v1315 = vpack.c.b16 %v1309, %v1309
      %v1317 = vshrl.u32 %v1310, 16
      %v1319 = vrot.slane %v1317, 2
      %v1320 = vshll.u32 %v1310, 16
      %v1322 = vrot.slane %v1320, 3
      %v1323 = vor.u32 %v1319, %v1322
      %v1325 = vshrl.u32 %v1311, 16
      %v1327 = vrot.slane %v1325, 2
      %v1328 = vshll.u32 %v1311, 16
      %v1330 = vrot.slane %v1328, 3
      %v1331 = vor.u32 %v1327, %v1330
      %v1332 = vsel %vm1140, %v1323, %v1331
      %v1334 = vshrl.u32 %v1312, 16
      %v1336 = vrot.slane %v1334, 2
      %v1337 = vshll.u32 %v1312, 16
      %v1339 = vrot.slane %v1337, 3
      %v1340 = vor.u32 %v1336, %v1339
      %v1341 = vsel %vm1140, %v1331, %v1340
      %v1343 = vshrl.u32 %v1313, 16
      %v1345 = vrot.slane %v1343, 2
      %v1346 = vshll.u32 %v1313, 16
      %v1348 = vrot.slane %v1346, 3
      %v1349 = vor.u32 %v1345, %v1348
      %v1350 = vsel %vm1140, %v1340, %v1349
      %v1352 = vshrl.u32 %v1314, 16
      %v1354 = vrot.slane %v1352, 2
      %v1355 = vshll.u32 %v1314, 16
      %v1357 = vrot.slane %v1355, 3
      %v1358 = vor.u32 %v1354, %v1357
      %v1359 = vsel %vm1140, %v1349, %v1358
      %v1361 = vshrl.u32 %v1315, 16
      %v1363 = vrot.slane %v1361, 2
      %v1364 = vshll.u32 %v1315, 16
      %v1366 = vrot.slane %v1364, 3
      %v1367 = vor.u32 %v1363, %v1366
      %v1368 = vsel %vm1140, %v1358, %v1367
      %v1370 = vsel %vm447, %v1332, 0
      %v1373 = vsel %vm447, %v1341, 0
      %v1376 = vsel %vm447, %v1350, 0
      %v1379 = vsel %vm447, %v1359, 0
      %v1382 = vsel %vm447, %v1368, 0
      %v1385 = vsel %vm463, %v1287, 0
      %1387 = vmatprep.subr.bf16.mxu0 0
      %1388 = vmatpush1.bf16.msra.mxu0 %v1385
      %1389 = vmatprep.subr.bf16.mxu0 0
      %1390 = vmatpush1.bf16.msra.mxu0 0
      %1391 = vmatprep.subr.bf16.mxu0 0
      %1392 = vmatpush1.bf16.msra.mxu0 0
      %1393 = vmatprep.subr.bf16.mxu0 0
      %1394 = vmatpush1.bf16.msra.mxu0 0
      %1395 = vmatprep.subr.bf16.mxu0 0
      %1396 = vmatpush1.bf16.msra.mxu0 0
      %1397 = vmatprep.subr.bf16.mxu0 0
      %1398 = vmatpush1.bf16.msra.mxu0 0
      %1399 = vmatprep.subr.bf16.mxu0 0
      %1400 = vmatpush1.bf16.msra.mxu0 0
      %1401 = vmatprep.subr.bf16.mxu0 0
      %1402 = vmatpush1.bf16.msra.mxu0 0
      %1403 = vmatprep.subr.bf16.mxu0 0
      %1404 = vmatpush1.bf16.msra.mxu0 0
      %1405 = vmatprep.subr.bf16.mxu0 0
      %1406 = vmatpush1.bf16.msra.mxu0 0
      %1407 = vmatprep.subr.bf16.mxu0 0
      %1408 = vmatpush1.bf16.msra.mxu0 0
      %1409 = vmatprep.subr.bf16.mxu0 0
      %1410 = vmatpush1.bf16.msra.mxu0 0
      %1411 = vmatprep.subr.bf16.mxu0 0
      %1412 = vmatpush1.bf16.msra.mxu0 0
      %1413 = vmatprep.subr.bf16.mxu0 0
      %1414 = vmatpush1.bf16.msra.mxu0 0
      %1415 = vmatprep.subr.bf16.mxu0 0
      %1416 = vmatpush1.bf16.msra.mxu0 0
      %1417 = vmatprep.subr.bf16.mxu0 0
      %1418 = vmatpush1.bf16.msra.mxu0 0
      %1419 = vmatprep.mubr.bf16.mxu0 0
      %1420 = vmatmul.mubr.bf16.gmra.mrb[0].mxu0 %v1370
      %v1421 = vpop.f32.mrb[0].mxu0
      %v1422 = vadd.f32 0.0, %v1421
      %v1423 = vpop.f32.mrb[0].mxu0
      %v1424 = vpop.f32.mrb[0].mxu0
      %v1425 = vadd.f32 0.0, %v1424
      %v1426 = vpop.f32.mrb[0].mxu0
      %1427 = vmatprep.mubr.bf16.mxu0 0
      %1428 = vmatmul.mubr.bf16.gmra.mrb[0].mxu0 %v1373
      %v1429 = vpop.f32.mrb[0].mxu0
      %v1430 = vadd.f32 0.0, %v1429
      %v1431 = vpop.f32.mrb[0].mxu0
      %v1432 = vpop.f32.mrb[0].mxu0
      %v1433 = vadd.f32 0.0, %v1432
      %v1434 = vpop.f32.mrb[0].mxu0
      %1435 = vmatprep.mubr.bf16.mxu0 0
      %1436 = vmatmul.mubr.bf16.gmra.mrb[0].mxu0 %v1376
      %v1437 = vpop.f32.mrb[0].mxu0
      %v1438 = vadd.f32 0.0, %v1437
      %v1439 = vpop.f32.mrb[0].mxu0
      %v1440 = vpop.f32.mrb[0].mxu0
      %v1441 = vadd.f32 0.0, %v1440
      %v1442 = vpop.f32.mrb[0].mxu0
      %1443 = vmatprep.mubr.bf16.mxu0 0
      %1444 = vmatmul.mubr.bf16.gmra.mrb[0].mxu0 %v1379
      %v1445 = vpop.f32.mrb[0].mxu0
      %v1446 = vadd.f32 0.0, %v1445
      %v1447 = vpop.f32.mrb[0].mxu0
      %v1448 = vpop.f32.mrb[0].mxu0
      %v1449 = vadd.f32 0.0, %v1448
      %v1450 = vpop.f32.mrb[0].mxu0
      %1451 = vmatprep.mubr.bf16.mxu0 0
      %1452 = vmatmul.mubr.bf16.gmra.mrb[0].mxu0 %v1382
      %v1453 = vpop.f32.mrb[0].mxu0
      %v1454 = vadd.f32 0.0, %v1453
      %v1455 = vpop.f32.mrb[0].mxu0
      %v1456 = vpop.f32.mrb[0].mxu0
      %v1457 = vadd.f32 0.0, %v1456
      %v1458 = vpop.f32.mrb[0].mxu0
      %1459 = vdwg.mxu0
      %v1460 = vadd.f32 %v1265, %v1422
      %v1461 = vadd.f32 %v1266, %v1425
      %v1462 = vadd.f32 %v1267, %v1430
      %v1463 = vadd.f32 %v1268, %v1433
      %v1464 = vadd.f32 %v1269, %v1438
      %v1465 = vadd.f32 %v1270, %v1441
      %v1466 = vadd.f32 %v1271, %v1446
      %v1467 = vadd.f32 %v1272, %v1449
      %v1468 = vadd.f32 %v1273, %v1454
      %v1469 = vadd.f32 %v1274, %v1457
      %v1470 = vld [vmem:[%s351 + $0xc] sm:$0x8]
      %s1471 = scalar_lea.vmem %s4, 28
      %v1472 = vld [vmem:[%s1471] sm:$0xf]
      %v1474 = vunpack.c.l.b16 %v1470
      %v1475 = vpack.c.b16 %v1300, %v1474
      %vm1476 = vcmask 1044480
      %v1477 = vrot.slane %v1475, 3
      %v1478 = vrot.slane %v1311, 3
      %v1479 = vsel %vm1476, %v1477, %v1478
      %v1480 = vrot.slane %v1312, 3
      %v1481 = vsel %vm1476, %v1478, %v1480
      %v1482 = vrot.slane %v1313, 3
      %v1483 = vsel %vm1476, %v1480, %v1482
      %v1484 = vrot.slane %v1314, 3
      %v1485 = vsel %vm1476, %v1482, %v1484
      %v1486 = vrot.slane %v1315, 3
      %v1487 = vsel %vm1476, %v1484, %v1486
      %v1489 = vsel %vm447, %v1479, 0
      %v1492 = vsel %vm447, %v1481, 0
      %v1495 = vsel %vm447, %v1483, 0
      %v1498 = vsel %vm447, %v1485, 0
      %v1501 = vsel %vm447, %v1487, 0
      %v1504 = vsel %vm463, %v1472, 0
      %1506 = vmatprep.subr.bf16.mxu0 0
      %1507 = vmatpush1.bf16.msra.mxu0 %v1504
      %1508 = vmatprep.subr.bf16.mxu0 0
      %1509 = vmatpush1.bf16.msra.mxu0 0
      %1510 = vmatprep.subr.bf16.mxu0 0
      %1511 = vmatpush1.bf16.msra.mxu0 0
      %1512 = vmatprep.subr.bf16.mxu0 0
      %1513 = vmatpush1.bf16.msra.mxu0 0
      %1514 = vmatprep.subr.bf16.mxu0 0
      %1515 = vmatpush1.bf16.msra.mxu0 0
      %1516 = vmatprep.subr.bf16.mxu0 0
      %1517 = vmatpush1.bf16.msra.mxu0 0
      %1518 = vmatprep.subr.bf16.mxu0 0
      %1519 = vmatpush1.bf16.msra.mxu0 0
      %1520 = vmatprep.subr.bf16.mxu0 0
      %1521 = vmatpush1.bf16.msra.mxu0 0
      %1522 = vmatprep.subr.bf16.mxu0 0
      %1523 = vmatpush1.bf16.msra.mxu0 0
      %1524 = vmatprep.subr.bf16.mxu0 0
      %1525 = vmatpush1.bf16.msra.mxu0 0
      %1526 = vmatprep.subr.bf16.mxu0 0
      %1527 = vmatpush1.bf16.msra.mxu0 0
      %1528 = vmatprep.subr.bf16.mxu0 0
      %1529 = vmatpush1.bf16.msra.mxu0 0
      %1530 = vmatprep.subr.bf16.mxu0 0
      %1531 = vmatpush1.bf16.msra.mxu0 0
      %1532 = vmatprep.subr.bf16.mxu0 0
      %1533 = vmatpush1.bf16.msra.mxu0 0
      %1534 = vmatprep.subr.bf16.mxu0 0
      %1535 = vmatpush1.bf16.msra.mxu0 0
      %1536 = vmatprep.subr.bf16.mxu0 0
      %1537 = vmatpush1.bf16.msra.mxu0 0
      %1538 = vmatprep.mubr.bf16.mxu0 0
      %1539 = vmatmul.mubr.bf16.gmra.mrb[0].mxu0 %v1489
      %v1540 = vpop.f32.mrb[0].mxu0
      %v1541 = vadd.f32 0.0, %v1540
      %v1542 = vpop.f32.mrb[0].mxu0
      %v1543 = vpop.f32.mrb[0].mxu0
      %v1544 = vadd.f32 0.0, %v1543
      %v1545 = vpop.f32.mrb[0].mxu0
      %1546 = vmatprep.mubr.bf16.mxu0 0
      %1547 = vmatmul.mubr.bf16.gmra.mrb[0].mxu0 %v1492
      %v1548 = vpop.f32.mrb[0].mxu0
      %v1549 = vadd.f32 0.0, %v1548
      %v1550 = vpop.f32.mrb[0].mxu0
      %v1551 = vpop.f32.mrb[0].mxu0
      %v1552 = vadd.f32 0.0, %v1551
      %v1553 = vpop.f32.mrb[0].mxu0
      %1554 = vmatprep.mubr.bf16.mxu0 0
      %1555 = vmatmul.mubr.bf16.gmra.mrb[0].mxu0 %v1495
      %v1556 = vpop.f32.mrb[0].mxu0
      %v1557 = vadd.f32 0.0, %v1556
      %v1558 = vpop.f32.mrb[0].mxu0
      %v1559 = vpop.f32.mrb[0].mxu0
      %v1560 = vadd.f32 0.0, %v1559
      %v1561 = vpop.f32.mrb[0].mxu0
      %1562 = vmatprep.mubr.bf16.mxu0 0
      %1563 = vmatmul.mubr.bf16.gmra.mrb[0].mxu0 %v1498
      %v1564 = vpop.f32.mrb[0].mxu0
      %v1565 = vadd.f32 0.0, %v1564
      %v1566 = vpop.f32.mrb[0].mxu0
      %v1567 = vpop.f32.mrb[0].mxu0
      %v1568 = vadd.f32 0.0, %v1567
      %v1569 = vpop.f32.mrb[0].mxu0
      %1570 = vmatprep.mubr.bf16.mxu0 0
      %1571 = vmatmul.mubr.bf16.gmra.mrb[0].mxu0 %v1501
      %v1572 = vpop.f32.mrb[0].mxu0
      %v1573 = vadd.f32 0.0, %v1572
      %v1574 = vpop.f32.mrb[0].mxu0
      %v1575 = vpop.f32.mrb[0].mxu0
      %v1576 = vadd.f32 0.0, %v1575
      %v1577 = vpop.f32.mrb[0].mxu0
      %1578 = vdwg.mxu0
      %v1579 = vadd.f32 %v1460, %v1541
      %v1580 = vadd.f32 %v1461, %v1544
      %v1581 = vadd.f32 %v1462, %v1549
      %v1582 = vadd.f32 %v1463, %v1552
      %v1583 = vadd.f32 %v1464, %v1557
      %v1584 = vadd.f32 %v1465, %v1560
      %v1585 = vadd.f32 %v1466, %v1565
      %v1586 = vadd.f32 %v1467, %v1568
      %v1587 = vadd.f32 %v1468, %v1573
      %v1588 = vadd.f32 %v1469, %v1576
      %v1589 = vld [vmem:[%s351 + $0x34] sm:$0xf]
      %s1590 = scalar_lea.vmem %s4, 32
      %v1591 = vld [vmem:[%s1590] sm:$0xf]
      %v1593 = vunpack.c.l.b16 %v1589
      %v1594 = vpack.c.b16 %v1593, %v1593
      %vm1595 = vsmask.f32 4352
      %v1597 = vshrl.u32 %v1475, 16
      %v1599 = vrot.slane %v1597, 3
      %v1600 = vshll.u32 %v1475, 16
      %v1602 = vrot.slane %v1600, 4
      %v1603 = vor.u32 %v1599, %v1602
      %v1604 = vrot.slane %v1325, 3
      %v1605 = vrot.slane %v1328, 4
      %v1606 = vor.u32 %v1604, %v1605
      %v1607 = vsel %vm1595, %v1603, %v1606
      %v1608 = vrot.slane %v1334, 3
      %v1609 = vrot.slane %v1337, 4
      %v1610 = vor.u32 %v1608, %v1609
      %v1611 = vsel %vm1595, %v1606, %v1610
      %v1612 = vrot.slane %v1343, 3
      %v1613 = vrot.slane %v1346, 4
      %v1614 = vor.u32 %v1612, %v1613
      %v1615 = vsel %vm1595, %v1610, %v1614
      %v1616 = vrot.slane %v1352, 3
      %v1617 = vrot.slane %v1355, 4
      %v1618 = vor.u32 %v1616, %v1617
      %v1619 = vsel %vm1595, %v1614, %v1618
      %v1621 = vshrl.u32 %v1594, 16
      %v1623 = vrot.slane %v1621, 3
      %v1624 = vshll.u32 %v1594, 16
      %v1626 = vrot.slane %v1624, 4
      %v1627 = vor.u32 %v1623, %v1626
      %v1628 = vsel %vm1595, %v1618, %v1627
      %v1630 = vsel %vm447, %v1607, 0
      %v1633 = vsel %vm447, %v1611, 0
      %v1636 = vsel %vm447, %v1615, 0
      %v1639 = vsel %vm447, %v1619, 0
      %v1642 = vsel %vm447, %v1628, 0
      %v1645 = vsel %vm463, %v1591, 0
      %1647 = vmatprep.subr.bf16.mxu0 0
      %1648 = vmatpush1.bf16.msra.mxu0 %v1645
      %1649 = vmatprep.subr.bf16.mxu0 0
      %1650 = vmatpush1.bf16.msra.mxu0 0
      %1651 = vmatprep.subr.bf16.mxu0 0
      %1652 = vmatpush1.bf16.msra.mxu0 0
      %1653 = vmatprep.subr.bf16.mxu0 0
      %1654 = vmatpush1.bf16.msra.mxu0 0
      %1655 = vmatprep.subr.bf16.mxu0 0
      %1656 = vmatpush1.bf16.msra.mxu0 0
      %1657 = vmatprep.subr.bf16.mxu0 0
      %1658 = vmatpush1.bf16.msra.mxu0 0
      %1659 = vmatprep.subr.bf16.mxu0 0
      %1660 = vmatpush1.bf16.msra.mxu0 0
      %1661 = vmatprep.subr.bf16.mxu0 0
      %1662 = vmatpush1.bf16.msra.mxu0 0
      %1663 = vmatprep.subr.bf16.mxu0 0
      %1664 = vmatpush1.bf16.msra.mxu0 0
      %1665 = vmatprep.subr.bf16.mxu0 0
      %1666 = vmatpush1.bf16.msra.mxu0 0
      %1667 = vmatprep.subr.bf16.mxu0 0
      %1668 = vmatpush1.bf16.msra.mxu0 0
      %1669 = vmatprep.subr.bf16.mxu0 0
      %1670 = vmatpush1.bf16.msra.mxu0 0
      %1671 = vmatprep.subr.bf16.mxu0 0
      %1672 = vmatpush1.bf16.msra.mxu0 0
      %1673 = vmatprep.subr.bf16.mxu0 0
      %1674 = vmatpush1.bf16.msra.mxu0 0
      %1675 = vmatprep.subr.bf16.mxu0 0
      %1676 = vmatpush1.bf16.msra.mxu0 0
      %1677 = vmatprep.subr.bf16.mxu0 0
      %1678 = vmatpush1.bf16.msra.mxu0 0
      %1679 = vmatprep.mubr.bf16.mxu0 0
      %1680 = vmatmul.mubr.bf16.gmra.mrb[0].mxu0 %v1630
      %v1681 = vpop.f32.mrb[0].mxu0
      %v1682 = vadd.f32 0.0, %v1681
      %v1683 = vpop.f32.mrb[0].mxu0
      %v1684 = vpop.f32.mrb[0].mxu0
      %v1685 = vadd.f32 0.0, %v1684
      %v1686 = vpop.f32.mrb[0].mxu0
      %1687 = vmatprep.mubr.bf16.mxu0 0
      %1688 = vmatmul.mubr.bf16.gmra.mrb[0].mxu0 %v1633
      %v1689 = vpop.f32.mrb[0].mxu0
      %v1690 = vadd.f32 0.0, %v1689
      %v1691 = vpop.f32.mrb[0].mxu0
      %v1692 = vpop.f32.mrb[0].mxu0
      %v1693 = vadd.f32 0.0, %v1692
      %v1694 = vpop.f32.mrb[0].mxu0
      %1695 = vmatprep.mubr.bf16.mxu0 0
      %1696 = vmatmul.mubr.bf16.gmra.mrb[0].mxu0 %v1636
      %v1697 = vpop.f32.mrb[0].mxu0
      %v1698 = vadd.f32 0.0, %v1697
      %v1699 = vpop.f32.mrb[0].mxu0
      %v1700 = vpop.f32.mrb[0].mxu0
      %v1701 = vadd.f32 0.0, %v1700
      %v1702 = vpop.f32.mrb[0].mxu0
      %1703 = vmatprep.mubr.bf16.mxu0 0
      %1704 = vmatmul.mubr.bf16.gmra.mrb[0].mxu0 %v1639
      %v1705 = vpop.f32.mrb[0].mxu0
      %v1706 = vadd.f32 0.0, %v1705
      %v1707 = vpop.f32.mrb[0].mxu0
      %v1708 = vpop.f32.mrb[0].mxu0
      %v1709 = vadd.f32 0.0, %v1708
      %v1710 = vpop.f32.mrb[0].mxu0
      %1711 = vmatprep.mubr.bf16.mxu0 0
      %1712 = vmatmul.mubr.bf16.gmra.mrb[0].mxu0 %v1642
      %v1713 = vpop.f32.mrb[0].mxu0
      %v1714 = vadd.f32 0.0, %v1713
      %v1715 = vpop.f32.mrb[0].mxu0
      %v1716 = vpop.f32.mrb[0].mxu0
      %v1717 = vadd.f32 0.0, %v1716
      %v1718 = vpop.f32.mrb[0].mxu0
      %1719 = vdwg.mxu0
      %v1720 = vadd.f32 %v1579, %v1682
      %v1721 = vadd.f32 %v1580, %v1685
      %v1722 = vadd.f32 %v1581, %v1690
      %v1723 = vadd.f32 %v1582, %v1693
      %v1724 = vadd.f32 %v1583, %v1698
      %v1725 = vadd.f32 %v1584, %v1701
      %v1726 = vadd.f32 %v1585, %v1706
      %v1727 = vadd.f32 %v1586, %v1709
      %v1728 = vadd.f32 %v1587, %v1714
      %v1729 = vadd.f32 %v1588, %v1717
      %v1730 = vld [vmem:[%s361 + $0x4] sm:$0xf]
      %v1731 = vld [vmem:[%s361 + $0x8] sm:$0xf]
      %v1732 = vld [vmem:[%s361 + $0xc] sm:$0xf]
      %v1733 = vld [vmem:[%s361 + $0x10] sm:$0xf]
      %v1734 = vld [vmem:[%s361 + $0x14] sm:$0xf]
      %v1735 = vld [vmem:[%s361 + $0x18] sm:$0xf]
      %v1736 = vld [vmem:[%s361 + $0x1c] sm:$0xf]
      %v1737 = vld [vmem:[%s361 + $0x20] sm:$0xf]
      %v1738 = vld [vmem:[%s361 + $0x24] sm:$0xf]
      %v1739 = vld [vmem:[%s361 + $0x28] sm:$0xf]
      %v1740 = vld [vmem:[%s361 + $0x2c] sm:$0x1]
      %s1741 = scalar_lea.vmem %s4, 36
      %v1742 = vld [vmem:[%s1741] sm:$0xf]
      %v1754 = vunpack.c.l.b16 %v1730
      %v1755 = vunpack.c.l.b16 %v1731
      %v1756 = vunpack.c.l.b16 %v1732
      %v1757 = vunpack.c.l.b16 %v1733
      %v1758 = vunpack.c.l.b16 %v1734
      %v1759 = vunpack.c.l.b16 %v1735
      %v1760 = vunpack.c.l.b16 %v1736
      %v1761 = vunpack.c.l.b16 %v1737
      %v1762 = vunpack.c.l.b16 %v1738
      %v1763 = vunpack.c.l.b16 %v1739
      %v1764 = vunpack.c.l.b16 %v1740
      %v1765 = vpack.c.b16 %v1755, %v1754
      %v1766 = vpack.c.b16 %v1757, %v1756
      %v1767 = vpack.c.b16 %v1759, %v1758
      %v1768 = vpack.c.b16 %v1761, %v1760
      %v1769 = vpack.c.b16 %v1763, %v1762
      %v1770 = vpack.c.b16 %v1764, %v1764
      %v1772 = vshrl.u32 %v1765, 16
      %v1774 = vshll.u32 %v1765, 16
      %v1776 = vrot.slane %v1774, 1
      %v1777 = vor.u32 %v1772, %v1776
      %v1779 = vshll.u32 %v1766, 16
      %v1781 = vrot.slane %v1779, 1
      %v1782 = vsel %vm543, %v1777, %v1781
      %v1783 = vshrl.u32 %v1766, 16
      %v1785 = vor.u32 %v1783, %v1781
      %v1787 = vshll.u32 %v1767, 16
      %v1789 = vrot.slane %v1787, 1
      %v1790 = vsel %vm543, %v1785, %v1789
      %v1791 = vshrl.u32 %v1767, 16
      %v1793 = vor.u32 %v1791, %v1789
      %v1795 = vshll.u32 %v1768, 16
      %v1797 = vrot.slane %v1795, 1
      %v1798 = vsel %vm543, %v1793, %v1797
      %v1799 = vshrl.u32 %v1768, 16
      %v1801 = vor.u32 %v1799, %v1797
      %v1803 = vshll.u32 %v1769, 16
      %v1805 = vrot.slane %v1803, 1
      %v1806 = vsel %vm543, %v1801, %v1805
      %v1807 = vshrl.u32 %v1769, 16
      %v1809 = vor.u32 %v1807, %v1805
      %v1811 = vshll.u32 %v1770, 16
      %v1813 = vrot.slane %v1811, 1
      %v1814 = vsel %vm543, %v1809, %v1813
      %v1816 = vsel %vm447, %v1782, 0
      %v1819 = vsel %vm447, %v1790, 0
      %v1822 = vsel %vm447, %v1798, 0
      %v1825 = vsel %vm447, %v1806, 0
      %v1828 = vsel %vm447, %v1814, 0
      %v1831 = vsel %vm463, %v1742, 0
      %1833 = vmatprep.subr.bf16.mxu0 0
      %1834 = vmatpush1.bf16.msra.mxu0 %v1831
      %1835 = vmatprep.subr.bf16.mxu0 0
      %1836 = vmatpush1.bf16.msra.mxu0 0
      %1837 = vmatprep.subr.bf16.mxu0 0
      %1838 = vmatpush1.bf16.msra.mxu0 0
      %1839 = vmatprep.subr.bf16.mxu0 0
      %1840 = vmatpush1.bf16.msra.mxu0 0
      %1841 = vmatprep.subr.bf16.mxu0 0
      %1842 = vmatpush1.bf16.msra.mxu0 0
      %1843 = vmatprep.subr.bf16.mxu0 0
      %1844 = vmatpush1.bf16.msra.mxu0 0
      %1845 = vmatprep.subr.bf16.mxu0 0
      %1846 = vmatpush1.bf16.msra.mxu0 0
      %1847 = vmatprep.subr.bf16.mxu0 0
      %1848 = vmatpush1.bf16.msra.mxu0 0
      %1849 = vmatprep.subr.bf16.mxu0 0
      %1850 = vmatpush1.bf16.msra.mxu0 0
      %1851 = vmatprep.subr.bf16.mxu0 0
      %1852 = vmatpush1.bf16.msra.mxu0 0
      %1853 = vmatprep.subr.bf16.mxu0 0
      %1854 = vmatpush1.bf16.msra.mxu0 0
      %1855 = vmatprep.subr.bf16.mxu0 0
      %1856 = vmatpush1.bf16.msra.mxu0 0
      %1857 = vmatprep.subr.bf16.mxu0 0
      %1858 = vmatpush1.bf16.msra.mxu0 0
      %1859 = vmatprep.subr.bf16.mxu0 0
      %1860 = vmatpush1.bf16.msra.mxu0 0
      %1861 = vmatprep.subr.bf16.mxu0 0
      %1862 = vmatpush1.bf16.msra.mxu0 0
      %1863 = vmatprep.subr.bf16.mxu0 0
      %1864 = vmatpush1.bf16.msra.mxu0 0
      %1865 = vmatprep.mubr.bf16.mxu0 0
      %1866 = vmatmul.mubr.bf16.gmra.mrb[0].mxu0 %v1816
      %v1867 = vpop.f32.mrb[0].mxu0
      %v1868 = vadd.f32 0.0, %v1867
      %v1869 = vpop.f32.mrb[0].mxu0
      %v1870 = vpop.f32.mrb[0].mxu0
      %v1871 = vadd.f32 0.0, %v1870
      %v1872 = vpop.f32.mrb[0].mxu0
      %1873 = vmatprep.mubr.bf16.mxu0 0
      %1874 = vmatmul.mubr.bf16.gmra.mrb[0].mxu0 %v1819
      %v1875 = vpop.f32.mrb[0].mxu0
      %v1876 = vadd.f32 0.0, %v1875
      %v1877 = vpop.f32.mrb[0].mxu0
      %v1878 = vpop.f32.mrb[0].mxu0
      %v1879 = vadd.f32 0.0, %v1878
      %v1880 = vpop.f32.mrb[0].mxu0
      %1881 = vmatprep.mubr.bf16.mxu0 0
      %1882 = vmatmul.mubr.bf16.gmra.mrb[0].mxu0 %v1822
      %v1883 = vpop.f32.mrb[0].mxu0
      %v1884 = vadd.f32 0.0, %v1883
      %v1885 = vpop.f32.mrb[0].mxu0
      %v1886 = vpop.f32.mrb[0].mxu0
      %v1887 = vadd.f32 0.0, %v1886
      %v1888 = vpop.f32.mrb[0].mxu0
      %1889 = vmatprep.mubr.bf16.mxu0 0
      %1890 = vmatmul.mubr.bf16.gmra.mrb[0].mxu0 %v1825
      %v1891 = vpop.f32.mrb[0].mxu0
      %v1892 = vadd.f32 0.0, %v1891
      %v1893 = vpop.f32.mrb[0].mxu0
      %v1894 = vpop.f32.mrb[0].mxu0
      %v1895 = vadd.f32 0.0, %v1894
      %v1896 = vpop.f32.mrb[0].mxu0
      %1897 = vmatprep.mubr.bf16.mxu0 0
      %1898 = vmatmul.mubr.bf16.gmra.mrb[0].mxu0 %v1828
      %v1899 = vpop.f32.mrb[0].mxu0
      %v1900 = vadd.f32 0.0, %v1899
      %v1901 = vpop.f32.mrb[0].mxu0
      %v1902 = vpop.f32.mrb[0].mxu0
      %v1903 = vadd.f32 0.0, %v1902
      %v1904 = vpop.f32.mrb[0].mxu0
      %1905 = vdwg.mxu0
      %v1906 = vadd.f32 %v1720, %v1868
      %v1907 = vadd.f32 %v1721, %v1871
      %v1908 = vadd.f32 %v1722, %v1876
      %v1909 = vadd.f32 %v1723, %v1879
      %v1910 = vadd.f32 %v1724, %v1884
      %v1911 = vadd.f32 %v1725, %v1887
      %v1912 = vadd.f32 %v1726, %v1892
      %v1913 = vadd.f32 %v1727, %v1895
      %v1914 = vadd.f32 %v1728, %v1900
      %v1915 = vadd.f32 %v1729, %v1903
      %v1916 = vld [vmem:[%s361 + $0x4] sm:$0xe]
      %s1917 = scalar_lea.vmem %s4, 40
      %v1918 = vld [vmem:[%s1917] sm:$0xf]
      %v1920 = vunpack.c.l.b16 %v1916
      %v1921 = vpack.c.b16 %v1755, %v1920
      %v1922 = vrot.slane %v1921, 1
      %v1923 = vrot.slane %v1766, 1
      %v1924 = vsel %vm435, %v1922, %v1923
      %v1925 = vrot.slane %v1767, 1
      %v1926 = vsel %vm435, %v1923, %v1925
      %v1927 = vrot.slane %v1768, 1
      %v1928 = vsel %vm435, %v1925, %v1927
      %v1929 = vrot.slane %v1769, 1
      %v1930 = vsel %vm435, %v1927, %v1929
      %v1931 = vrot.slane %v1770, 1
      %v1932 = vsel %vm435, %v1929, %v1931
      %v1934 = vsel %vm447, %v1924, 0
      %v1937 = vsel %vm447, %v1926, 0
      %v1940 = vsel %vm447, %v1928, 0
      %v1943 = vsel %vm447, %v1930, 0
      %v1946 = vsel %vm447, %v1932, 0
      %v1949 = vsel %vm463, %v1918, 0
      %1951 = vmatprep.subr.bf16.mxu0 0
      %1952 = vmatpush1.bf16.msra.mxu0 %v1949
      %1953 = vmatprep.subr.bf16.mxu0 0
      %1954 = vmatpush1.bf16.msra.mxu0 0
      %1955 = vmatprep.subr.bf16.mxu0 0
      %1956 = vmatpush1.bf16.msra.mxu0 0
      %1957 = vmatprep.subr.bf16.mxu0 0
      %1958 = vmatpush1.bf16.msra.mxu0 0
      %1959 = vmatprep.subr.bf16.mxu0 0
      %1960 = vmatpush1.bf16.msra.mxu0 0
      %1961 = vmatprep.subr.bf16.mxu0 0
      %1962 = vmatpush1.bf16.msra.mxu0 0
      %1963 = vmatprep.subr.bf16.mxu0 0
      %1964 = vmatpush1.bf16.msra.mxu0 0
      %1965 = vmatprep.subr.bf16.mxu0 0
      %1966 = vmatpush1.bf16.msra.mxu0 0
      %1967 = vmatprep.subr.bf16.mxu0 0
      %1968 = vmatpush1.bf16.msra.mxu0 0
      %1969 = vmatprep.subr.bf16.mxu0 0
      %1970 = vmatpush1.bf16.msra.mxu0 0
      %1971 = vmatprep.subr.bf16.mxu0 0
      %1972 = vmatpush1.bf16.msra.mxu0 0
      %1973 = vmatprep.subr.bf16.mxu0 0
      %1974 = vmatpush1.bf16.msra.mxu0 0
      %1975 = vmatprep.subr.bf16.mxu0 0
      %1976 = vmatpush1.bf16.msra.mxu0 0
      %1977 = vmatprep.subr.bf16.mxu0 0
      %1978 = vmatpush1.bf16.msra.mxu0 0
      %1979 = vmatprep.subr.bf16.mxu0 0
      %1980 = vmatpush1.bf16.msra.mxu0 0
      %1981 = vmatprep.subr.bf16.mxu0 0
      %1982 = vmatpush1.bf16.msra.mxu0 0
      %1983 = vmatprep.mubr.bf16.mxu0 0
      %1984 = vmatmul.mubr.bf16.gmra.mrb[0].mxu0 %v1934
      %v1985 = vpop.f32.mrb[0].mxu0
      %v1986 = vadd.f32 0.0, %v1985
      %v1987 = vpop.f32.mrb[0].mxu0
      %v1988 = vpop.f32.mrb[0].mxu0
      %v1989 = vadd.f32 0.0, %v1988
      %v1990 = vpop.f32.mrb[0].mxu0
      %1991 = vmatprep.mubr.bf16.mxu0 0
      %1992 = vmatmul.mubr.bf16.gmra.mrb[0].mxu0 %v1937
      %v1993 = vpop.f32.mrb[0].mxu0
      %v1994 = vadd.f32 0.0, %v1993
      %v1995 = vpop.f32.mrb[0].mxu0
      %v1996 = vpop.f32.mrb[0].mxu0
      %v1997 = vadd.f32 0.0, %v1996
      %v1998 = vpop.f32.mrb[0].mxu0
      %1999 = vmatprep.mubr.bf16.mxu0 0
      %2000 = vmatmul.mubr.bf16.gmra.mrb[0].mxu0 %v1940
      %v2001 = vpop.f32.mrb[0].mxu0
      %v2002 = vadd.f32 0.0, %v2001
      %v2003 = vpop.f32.mrb[0].mxu0
      %v2004 = vpop.f32.mrb[0].mxu0
      %v2005 = vadd.f32 0.0, %v2004
      %v2006 = vpop.f32.mrb[0].mxu0
      %2007 = vmatprep.mubr.bf16.mxu0 0
      %2008 = vmatmul.mubr.bf16.gmra.mrb[0].mxu0 %v1943
      %v2009 = vpop.f32.mrb[0].mxu0
      %v2010 = vadd.f32 0.0, %v2009
      %v2011 = vpop.f32.mrb[0].mxu0
      %v2012 = vpop.f32.mrb[0].mxu0
      %v2013 = vadd.f32 0.0, %v2012
      %v2014 = vpop.f32.mrb[0].mxu0
      %2015 = vmatprep.mubr.bf16.mxu0 0
      %2016 = vmatmul.mubr.bf16.gmra.mrb[0].mxu0 %v1946
      %v2017 = vpop.f32.mrb[0].mxu0
      %v2018 = vadd.f32 0.0, %v2017
      %v2019 = vpop.f32.mrb[0].mxu0
      %v2020 = vpop.f32.mrb[0].mxu0
      %v2021 = vadd.f32 0.0, %v2020
      %v2022 = vpop.f32.mrb[0].mxu0
      %2023 = vdwg.mxu0
      %v2024 = vadd.f32 %v1906, %v1986
      %v2025 = vadd.f32 %v1907, %v1989
      %v2026 = vadd.f32 %v1908, %v1994
      %v2027 = vadd.f32 %v1909, %v1997
      %v2028 = vadd.f32 %v1910, %v2002
      %v2029 = vadd.f32 %v1911, %v2005
      %v2030 = vadd.f32 %v1912, %v2010
      %v2031 = vadd.f32 %v1913, %v2013
      %v2032 = vadd.f32 %v1914, %v2018
      %v2033 = vadd.f32 %v1915, %v2021
      %v2034 = vld [vmem:[%s361 + $0x2c] sm:$0x3]
      %s2035 = scalar_lea.vmem %s4, 44
      %v2036 = vld [vmem:[%s2035] sm:$0xf]
      %v2038 = vunpack.c.l.b16 %v2034
      %v2039 = vpack.c.b16 %v2038, %v2038
      %v2041 = vshrl.u32 %v1921, 16
      %v2043 = vrot.slane %v2041, 1
      %v2044 = vshll.u32 %v1921, 16
      %v2046 = vrot.slane %v2044, 2
      %v2047 = vor.u32 %v2043, %v2046
      %v2048 = vrot.slane %v1783, 1
      %v2049 = vrot.slane %v1779, 2
      %v2050 = vor.u32 %v2048, %v2049
      %v2051 = vsel %vm685, %v2047, %v2050
      %v2052 = vrot.slane %v1791, 1
      %v2053 = vrot.slane %v1787, 2
      %v2054 = vor.u32 %v2052, %v2053
      %v2055 = vsel %vm685, %v2050, %v2054
      %v2056 = vrot.slane %v1799, 1
      %v2057 = vrot.slane %v1795, 2
      %v2058 = vor.u32 %v2056, %v2057
      %v2059 = vsel %vm685, %v2054, %v2058
      %v2060 = vrot.slane %v1807, 1
      %v2061 = vrot.slane %v1803, 2
      %v2062 = vor.u32 %v2060, %v2061
      %v2063 = vsel %vm685, %v2058, %v2062
      %v2065 = vshrl.u32 %v2039, 16
      %v2067 = vrot.slane %v2065, 1
      %v2068 = vshll.u32 %v2039, 16
      %v2070 = vrot.slane %v2068, 2
      %v2071 = vor.u32 %v2067, %v2070
      %v2072 = vsel %vm685, %v2062, %v2071
      %v2074 = vsel %vm447, %v2051, 0
      %v2077 = vsel %vm447, %v2055, 0
      %v2080 = vsel %vm447, %v2059, 0
      %v2083 = vsel %vm447, %v2063, 0
      %v2086 = vsel %vm447, %v2072, 0
      %v2089 = vsel %vm463, %v2036, 0
      %2091 = vmatprep.subr.bf16.mxu0 0
      %2092 = vmatpush1.bf16.msra.mxu0 %v2089
      %2093 = vmatprep.subr.bf16.mxu0 0
      %2094 = vmatpush1.bf16.msra.mxu0 0
      %2095 = vmatprep.subr.bf16.mxu0 0
      %2096 = vmatpush1.bf16.msra.mxu0 0
      %2097 = vmatprep.subr.bf16.mxu0 0
      %2098 = vmatpush1.bf16.msra.mxu0 0
      %2099 = vmatprep.subr.bf16.mxu0 0
      %2100 = vmatpush1.bf16.msra.mxu0 0
      %2101 = vmatprep.subr.bf16.mxu0 0
      %2102 = vmatpush1.bf16.msra.mxu0 0
      %2103 = vmatprep.subr.bf16.mxu0 0
      %2104 = vmatpush1.bf16.msra.mxu0 0
      %2105 = vmatprep.subr.bf16.mxu0 0
      %2106 = vmatpush1.bf16.msra.mxu0 0
      %2107 = vmatprep.subr.bf16.mxu0 0
      %2108 = vmatpush1.bf16.msra.mxu0 0
      %2109 = vmatprep.subr.bf16.mxu0 0
      %2110 = vmatpush1.bf16.msra.mxu0 0
      %2111 = vmatprep.subr.bf16.mxu0 0
      %2112 = vmatpush1.bf16.msra.mxu0 0
      %2113 = vmatprep.subr.bf16.mxu0 0
      %2114 = vmatpush1.bf16.msra.mxu0 0
      %2115 = vmatprep.subr.bf16.mxu0 0
      %2116 = vmatpush1.bf16.msra.mxu0 0
      %2117 = vmatprep.subr.bf16.mxu0 0
      %2118 = vmatpush1.bf16.msra.mxu0 0
      %2119 = vmatprep.subr.bf16.mxu0 0
      %2120 = vmatpush1.bf16.msra.mxu0 0
      %2121 = vmatprep.subr.bf16.mxu0 0
      %2122 = vmatpush1.bf16.msra.mxu0 0
      %2123 = vmatprep.mubr.bf16.mxu0 0
      %2124 = vmatmul.mubr.bf16.gmra.mrb[0].mxu0 %v2074
      %v2125 = vpop.f32.mrb[0].mxu0
      %v2126 = vadd.f32 0.0, %v2125
      %v2127 = vpop.f32.mrb[0].mxu0
      %v2128 = vpop.f32.mrb[0].mxu0
      %v2129 = vadd.f32 0.0, %v2128
      %v2130 = vpop.f32.mrb[0].mxu0
      %2131 = vmatprep.mubr.bf16.mxu0 0
      %2132 = vmatmul.mubr.bf16.gmra.mrb[0].mxu0 %v2077
      %v2133 = vpop.f32.mrb[0].mxu0
      %v2134 = vadd.f32 0.0, %v2133
      %v2135 = vpop.f32.mrb[0].mxu0
      %v2136 = vpop.f32.mrb[0].mxu0
      %v2137 = vadd.f32 0.0, %v2136
      %v2138 = vpop.f32.mrb[0].mxu0
      %2139 = vmatprep.mubr.bf16.mxu0 0
      %2140 = vmatmul.mubr.bf16.gmra.mrb[0].mxu0 %v2080
      %v2141 = vpop.f32.mrb[0].mxu0
      %v2142 = vadd.f32 0.0, %v2141
      %v2143 = vpop.f32.mrb[0].mxu0
      %v2144 = vpop.f32.mrb[0].mxu0
      %v2145 = vadd.f32 0.0, %v2144
      %v2146 = vpop.f32.mrb[0].mxu0
      %2147 = vmatprep.mubr.bf16.mxu0 0
      %2148 = vmatmul.mubr.bf16.gmra.mrb[0].mxu0 %v2083
      %v2149 = vpop.f32.mrb[0].mxu0
      %v2150 = vadd.f32 0.0, %v2149
      %v2151 = vpop.f32.mrb[0].mxu0
      %v2152 = vpop.f32.mrb[0].mxu0
      %v2153 = vadd.f32 0.0, %v2152
      %v2154 = vpop.f32.mrb[0].mxu0
      %2155 = vmatprep.mubr.bf16.mxu0 0
      %2156 = vmatmul.mubr.bf16.gmra.mrb[0].mxu0 %v2086
      %v2157 = vpop.f32.mrb[0].mxu0
      %v2158 = vadd.f32 0.0, %v2157
      %v2159 = vpop.f32.mrb[0].mxu0
      %v2160 = vpop.f32.mrb[0].mxu0
      %v2161 = vadd.f32 0.0, %v2160
      %v2162 = vpop.f32.mrb[0].mxu0
      %2163 = vdwg.mxu0
      %v2164 = vadd.f32 %v2024, %v2126
      %v2165 = vadd.f32 %v2025, %v2129
      %v2166 = vadd.f32 %v2026, %v2134
      %v2167 = vadd.f32 %v2027, %v2137
      %v2168 = vadd.f32 %v2028, %v2142
      %v2169 = vadd.f32 %v2029, %v2145
      %v2170 = vadd.f32 %v2030, %v2150
      %v2171 = vadd.f32 %v2031, %v2153
      %v2172 = vadd.f32 %v2032, %v2158
      %v2173 = vadd.f32 %v2033, %v2161
      %v2174 = vld [vmem:[%s361 + $0x8] sm:$0xe]
      %v2175 = vld [vmem:[%s361 + $0xc] sm:$0xf]
      %v2176 = vld [vmem:[%s361 + $0x10] sm:$0xf]
      %v2177 = vld [vmem:[%s361 + $0x14] sm:$0xf]
      %v2178 = vld [vmem:[%s361 + $0x18] sm:$0xf]
      %v2179 = vld [vmem:[%s361 + $0x1c] sm:$0xf]
      %v2180 = vld [vmem:[%s361 + $0x20] sm:$0xf]
      %v2181 = vld [vmem:[%s361 + $0x24] sm:$0xf]
      %v2182 = vld [vmem:[%s361 + $0x28] sm:$0xf]
      %v2183 = vld [vmem:[%s361 + $0x2c] sm:$0xf]
      %v2184 = vld [vmem:[%s361 + $0x30] sm:$0x3]
      %s2185 = scalar_lea.vmem %s4, 48
      %v2186 = vld [vmem:[%s2185] sm:$0xf]
      %v2198 = vunpack.c.l.b16 %v2174
      %v2199 = vunpack.c.l.b16 %v2175
      %v2200 = vunpack.c.l.b16 %v2176
      %v2201 = vunpack.c.l.b16 %v2177
      %v2202 = vunpack.c.l.b16 %v2178
      %v2203 = vunpack.c.l.b16 %v2179
      %v2204 = vunpack.c.l.b16 %v2180
      %v2205 = vunpack.c.l.b16 %v2181
      %v2206 = vunpack.c.l.b16 %v2182
      %v2207 = vunpack.c.l.b16 %v2183
      %v2208 = vunpack.c.l.b16 %v2184
      %v2209 = vpack.c.b16 %v2199, %v2198
      %v2210 = vpack.c.b16 %v2201, %v2200
      %v2211 = vpack.c.b16 %v2203, %v2202
      %v2212 = vpack.c.b16 %v2205, %v2204
      %v2213 = vpack.c.b16 %v2207, %v2206
      %v2214 = vpack.c.b16 %v2208, %v2208
      %v2216 = vshrl.u32 %v2209, 16
      %v2218 = vrot.slane %v2216, 1
      %v2219 = vshll.u32 %v2209, 16
      %v2221 = vrot.slane %v2219, 2
      %v2222 = vor.u32 %v2218, %v2221
      %v2224 = vshrl.u32 %v2210, 16
      %v2226 = vrot.slane %v2224, 1
      %v2227 = vshll.u32 %v2210, 16
      %v2229 = vrot.slane %v2227, 2
      %v2230 = vor.u32 %v2226, %v2229
      %v2231 = vsel %vm685, %v2222, %v2230
      %v2233 = vshrl.u32 %v2211, 16
      %v2235 = vrot.slane %v2233, 1
      %v2236 = vshll.u32 %v2211, 16
      %v2238 = vrot.slane %v2236, 2
      %v2239 = vor.u32 %v2235, %v2238
      %v2240 = vsel %vm685, %v2230, %v2239
      %v2242 = vshrl.u32 %v2212, 16
      %v2244 = vrot.slane %v2242, 1
      %v2245 = vshll.u32 %v2212, 16
      %v2247 = vrot.slane %v2245, 2
      %v2248 = vor.u32 %v2244, %v2247
      %v2249 = vsel %vm685, %v2239, %v2248
      %v2251 = vshrl.u32 %v2213, 16
      %v2253 = vrot.slane %v2251, 1
      %v2254 = vshll.u32 %v2213, 16
      %v2256 = vrot.slane %v2254, 2
      %v2257 = vor.u32 %v2253, %v2256
      %v2258 = vsel %vm685, %v2248, %v2257
      %v2260 = vshrl.u32 %v2214, 16
      %v2262 = vrot.slane %v2260, 1
      %v2263 = vshll.u32 %v2214, 16
      %v2265 = vrot.slane %v2263, 2
      %v2266 = vor.u32 %v2262, %v2265
      %v2267 = vsel %vm685, %v2257, %v2266
      %v2269 = vsel %vm447, %v2231, 0
      %v2272 = vsel %vm447, %v2240, 0
      %v2275 = vsel %vm447, %v2249, 0
      %v2278 = vsel %vm447, %v2258, 0
      %v2281 = vsel %vm447, %v2267, 0
      %v2284 = vsel %vm463, %v2186, 0
      %2286 = vmatprep.subr.bf16.mxu0 0
      %2287 = vmatpush1.bf16.msra.mxu0 %v2284
      %2288 = vmatprep.subr.bf16.mxu0 0
      %2289 = vmatpush1.bf16.msra.mxu0 0
      %2290 = vmatprep.subr.bf16.mxu0 0
      %2291 = vmatpush1.bf16.msra.mxu0 0
      %2292 = vmatprep.subr.bf16.mxu0 0
      %2293 = vmatpush1.bf16.msra.mxu0 0
      %2294 = vmatprep.subr.bf16.mxu0 0
      %2295 = vmatpush1.bf16.msra.mxu0 0
      %2296 = vmatprep.subr.bf16.mxu0 0
      %2297 = vmatpush1.bf16.msra.mxu0 0
      %2298 = vmatprep.subr.bf16.mxu0 0
      %2299 = vmatpush1.bf16.msra.mxu0 0
      %2300 = vmatprep.subr.bf16.mxu0 0
      %2301 = vmatpush1.bf16.msra.mxu0 0
      %2302 = vmatprep.subr.bf16.mxu0 0
      %2303 = vmatpush1.bf16.msra.mxu0 0
      %2304 = vmatprep.subr.bf16.mxu0 0
      %2305 = vmatpush1.bf16.msra.mxu0 0
      %2306 = vmatprep.subr.bf16.mxu0 0
      %2307 = vmatpush1.bf16.msra.mxu0 0
      %2308 = vmatprep.subr.bf16.mxu0 0
      %2309 = vmatpush1.bf16.msra.mxu0 0
      %2310 = vmatprep.subr.bf16.mxu0 0
      %2311 = vmatpush1.bf16.msra.mxu0 0
      %2312 = vmatprep.subr.bf16.mxu0 0
      %2313 = vmatpush1.bf16.msra.mxu0 0
      %2314 = vmatprep.subr.bf16.mxu0 0
      %2315 = vmatpush1.bf16.msra.mxu0 0
      %2316 = vmatprep.subr.bf16.mxu0 0
      %2317 = vmatpush1.bf16.msra.mxu0 0
      %2318 = vmatprep.mubr.bf16.mxu0 0
      %2319 = vmatmul.mubr.bf16.gmra.mrb[0].mxu0 %v2269
      %v2320 = vpop.f32.mrb[0].mxu0
      %v2321 = vadd.f32 0.0, %v2320
      %v2322 = vpop.f32.mrb[0].mxu0
      %v2323 = vpop.f32.mrb[0].mxu0
      %v2324 = vadd.f32 0.0, %v2323
      %v2325 = vpop.f32.mrb[0].mxu0
      %2326 = vmatprep.mubr.bf16.mxu0 0
      %2327 = vmatmul.mubr.bf16.gmra.mrb[0].mxu0 %v2272
      %v2328 = vpop.f32.mrb[0].mxu0
      %v2329 = vadd.f32 0.0, %v2328
      %v2330 = vpop.f32.mrb[0].mxu0
      %v2331 = vpop.f32.mrb[0].mxu0
      %v2332 = vadd.f32 0.0, %v2331
      %v2333 = vpop.f32.mrb[0].mxu0
      %2334 = vmatprep.mubr.bf16.mxu0 0
      %2335 = vmatmul.mubr.bf16.gmra.mrb[0].mxu0 %v2275
      %v2336 = vpop.f32.mrb[0].mxu0
      %v2337 = vadd.f32 0.0, %v2336
      %v2338 = vpop.f32.mrb[0].mxu0
      %v2339 = vpop.f32.mrb[0].mxu0
      %v2340 = vadd.f32 0.0, %v2339
      %v2341 = vpop.f32.mrb[0].mxu0
      %2342 = vmatprep.mubr.bf16.mxu0 0
      %2343 = vmatmul.mubr.bf16.gmra.mrb[0].mxu0 %v2278
      %v2344 = vpop.f32.mrb[0].mxu0
      %v2345 = vadd.f32 0.0, %v2344
      %v2346 = vpop.f32.mrb[0].mxu0
      %v2347 = vpop.f32.mrb[0].mxu0
      %v2348 = vadd.f32 0.0, %v2347
      %v2349 = vpop.f32.mrb[0].mxu0
      %2350 = vmatprep.mubr.bf16.mxu0 0
      %2351 = vmatmul.mubr.bf16.gmra.mrb[0].mxu0 %v2281
      %v2352 = vpop.f32.mrb[0].mxu0
      %v2353 = vadd.f32 0.0, %v2352
      %v2354 = vpop.f32.mrb[0].mxu0
      %v2355 = vpop.f32.mrb[0].mxu0
      %v2356 = vadd.f32 0.0, %v2355
      %v2357 = vpop.f32.mrb[0].mxu0
      %2358 = vdwg.mxu0
      %v2359 = vadd.f32 %v2164, %v2321
      %v2360 = vadd.f32 %v2165, %v2324
      %v2361 = vadd.f32 %v2166, %v2329
      %v2362 = vadd.f32 %v2167, %v2332
      %v2363 = vadd.f32 %v2168, %v2337
      %v2364 = vadd.f32 %v2169, %v2340
      %v2365 = vadd.f32 %v2170, %v2345
      %v2366 = vadd.f32 %v2171, %v2348
      %v2367 = vadd.f32 %v2172, %v2353
      %v2368 = vadd.f32 %v2173, %v2356
      %v2369 = vld [vmem:[%s361 + $0x8] sm:$0xc]
      %s2370 = scalar_lea.vmem %s4, 52
      %v2371 = vld [vmem:[%s2370] sm:$0xf]
      %v2373 = vunpack.c.l.b16 %v2369
      %v2374 = vpack.c.b16 %v2199, %v2373
      %v2375 = vrot.slane %v2374, 2
      %v2376 = vrot.slane %v2210, 2
      %v2377 = vsel %vm1021, %v2375, %v2376
      %v2378 = vrot.slane %v2211, 2
      %v2379 = vsel %vm1021, %v2376, %v2378
      %v2380 = vrot.slane %v2212, 2
      %v2381 = vsel %vm1021, %v2378, %v2380
      %v2382 = vrot.slane %v2213, 2
      %v2383 = vsel %vm1021, %v2380, %v2382
      %v2384 = vrot.slane %v2214, 2
      %v2385 = vsel %vm1021, %v2382, %v2384
      %v2387 = vsel %vm447, %v2377, 0
      %v2390 = vsel %vm447, %v2379, 0
      %v2393 = vsel %vm447, %v2381, 0
      %v2396 = vsel %vm447, %v2383, 0
      %v2399 = vsel %vm447, %v2385, 0
      %v2402 = vsel %vm463, %v2371, 0
      %2404 = vmatprep.subr.bf16.mxu0 0
      %2405 = vmatpush1.bf16.msra.mxu0 %v2402
      %2406 = vmatprep.subr.bf16.mxu0 0
      %2407 = vmatpush1.bf16.msra.mxu0 0
      %2408 = vmatprep.subr.bf16.mxu0 0
      %2409 = vmatpush1.bf16.msra.mxu0 0
      %2410 = vmatprep.subr.bf16.mxu0 0
      %2411 = vmatpush1.bf16.msra.mxu0 0
      %2412 = vmatprep.subr.bf16.mxu0 0
      %2413 = vmatpush1.bf16.msra.mxu0 0
      %2414 = vmatprep.subr.bf16.mxu0 0
      %2415 = vmatpush1.bf16.msra.mxu0 0
      %2416 = vmatprep.subr.bf16.mxu0 0
      %2417 = vmatpush1.bf16.msra.mxu0 0
      %2418 = vmatprep.subr.bf16.mxu0 0
      %2419 = vmatpush1.bf16.msra.mxu0 0
      %2420 = vmatprep.subr.bf16.mxu0 0
      %2421 = vmatpush1.bf16.msra.mxu0 0
      %2422 = vmatprep.subr.bf16.mxu0 0
      %2423 = vmatpush1.bf16.msra.mxu0 0
      %2424 = vmatprep.subr.bf16.mxu0 0
      %2425 = vmatpush1.bf16.msra.mxu0 0
      %2426 = vmatprep.subr.bf16.mxu0 0
      %2427 = vmatpush1.bf16.msra.mxu0 0
      %2428 = vmatprep.subr.bf16.mxu0 0
      %2429 = vmatpush1.bf16.msra.mxu0 0
      %2430 = vmatprep.subr.bf16.mxu0 0
      %2431 = vmatpush1.bf16.msra.mxu0 0
      %2432 = vmatprep.subr.bf16.mxu0 0
      %2433 = vmatpush1.bf16.msra.mxu0 0
      %2434 = vmatprep.subr.bf16.mxu0 0
      %2435 = vmatpush1.bf16.msra.mxu0 0
      %2436 = vmatprep.mubr.bf16.mxu0 0
      %2437 = vmatmul.mubr.bf16.gmra.mrb[0].mxu0 %v2387
      %v2438 = vpop.f32.mrb[0].mxu0
      %v2439 = vadd.f32 0.0, %v2438
      %v2440 = vpop.f32.mrb[0].mxu0
      %v2441 = vpop.f32.mrb[0].mxu0
      %v2442 = vadd.f32 0.0, %v2441
      %v2443 = vpop.f32.mrb[0].mxu0
      %2444 = vmatprep.mubr.bf16.mxu0 0
      %2445 = vmatmul.mubr.bf16.gmra.mrb[0].mxu0 %v2390
      %v2446 = vpop.f32.mrb[0].mxu0
      %v2447 = vadd.f32 0.0, %v2446
      %v2448 = vpop.f32.mrb[0].mxu0
      %v2449 = vpop.f32.mrb[0].mxu0
      %v2450 = vadd.f32 0.0, %v2449
      %v2451 = vpop.f32.mrb[0].mxu0
      %2452 = vmatprep.mubr.bf16.mxu0 0
      %2453 = vmatmul.mubr.bf16.gmra.mrb[0].mxu0 %v2393
      %v2454 = vpop.f32.mrb[0].mxu0
      %v2455 = vadd.f32 0.0, %v2454
      %v2456 = vpop.f32.mrb[0].mxu0
      %v2457 = vpop.f32.mrb[0].mxu0
      %v2458 = vadd.f32 0.0, %v2457
      %v2459 = vpop.f32.mrb[0].mxu0
      %2460 = vmatprep.mubr.bf16.mxu0 0
      %2461 = vmatmul.mubr.bf16.gmra.mrb[0].mxu0 %v2396
      %v2462 = vpop.f32.mrb[0].mxu0
      %v2463 = vadd.f32 0.0, %v2462
      %v2464 = vpop.f32.mrb[0].mxu0
      %v2465 = vpop.f32.mrb[0].mxu0
      %v2466 = vadd.f32 0.0, %v2465
      %v2467 = vpop.f32.mrb[0].mxu0
      %2468 = vmatprep.mubr.bf16.mxu0 0
      %2469 = vmatmul.mubr.bf16.gmra.mrb[0].mxu0 %v2399
      %v2470 = vpop.f32.mrb[0].mxu0
      %v2471 = vadd.f32 0.0, %v2470
      %v2472 = vpop.f32.mrb[0].mxu0
      %v2473 = vpop.f32.mrb[0].mxu0
      %v2474 = vadd.f32 0.0, %v2473
      %v2475 = vpop.f32.mrb[0].mxu0
      %2476 = vdwg.mxu0
      %v2477 = vadd.f32 %v2359, %v2439
      %v2478 = vadd.f32 %v2360, %v2442
      %v2479 = vadd.f32 %v2361, %v2447
      %v2480 = vadd.f32 %v2362, %v2450
      %v2481 = vadd.f32 %v2363, %v2455
      %v2482 = vadd.f32 %v2364, %v2458
      %v2483 = vadd.f32 %v2365, %v2463
      %v2484 = vadd.f32 %v2366, %v2466
      %v2485 = vadd.f32 %v2367, %v2471
      %v2486 = vadd.f32 %v2368, %v2474
      %v2487 = vld [vmem:[%s361 + $0x30] sm:$0x7]
      %s2488 = scalar_lea.vmem %s4, 56
      %v2489 = vld [vmem:[%s2488] sm:$0xf]
      %v2491 = vunpack.c.l.b16 %v2487
      %v2492 = vpack.c.b16 %v2491, %v2491
      %v2494 = vshrl.u32 %v2374, 16
      %v2496 = vrot.slane %v2494, 2
      %v2497 = vshll.u32 %v2374, 16
      %v2499 = vrot.slane %v2497, 3
      %v2500 = vor.u32 %v2496, %v2499
      %v2501 = vrot.slane %v2224, 2
      %v2502 = vrot.slane %v2227, 3
      %v2503 = vor.u32 %v2501, %v2502
      %v2504 = vsel %vm1140, %v2500, %v2503
      %v2505 = vrot.slane %v2233, 2
      %v2506 = vrot.slane %v2236, 3
      %v2507 = vor.u32 %v2505, %v2506
      %v2508 = vsel %vm1140, %v2503, %v2507
      %v2509 = vrot.slane %v2242, 2
      %v2510 = vrot.slane %v2245, 3
      %v2511 = vor.u32 %v2509, %v2510
      %v2512 = vsel %vm1140, %v2507, %v2511
      %v2513 = vrot.slane %v2251, 2
      %v2514 = vrot.slane %v2254, 3
      %v2515 = vor.u32 %v2513, %v2514
      %v2516 = vsel %vm1140, %v2511, %v2515
      %v2518 = vshrl.u32 %v2492, 16
      %v2520 = vrot.slane %v2518, 2
      %v2521 = vshll.u32 %v2492, 16
      %v2523 = vrot.slane %v2521, 3
      %v2524 = vor.u32 %v2520, %v2523
      %v2525 = vsel %vm1140, %v2515, %v2524
      %v2527 = vsel %vm447, %v2504, 0
      %v2530 = vsel %vm447, %v2508, 0
      %v2533 = vsel %vm447, %v2512, 0
      %v2536 = vsel %vm447, %v2516, 0
      %v2539 = vsel %vm447, %v2525, 0
      %v2542 = vsel %vm463, %v2489, 0
      %2544 = vmatprep.subr.bf16.mxu0 0
      %2545 = vmatpush1.bf16.msra.mxu0 %v2542
      %2546 = vmatprep.subr.bf16.mxu0 0
      %2547 = vmatpush1.bf16.msra.mxu0 0
      %2548 = vmatprep.subr.bf16.mxu0 0
      %2549 = vmatpush1.bf16.msra.mxu0 0
      %2550 = vmatprep.subr.bf16.mxu0 0
      %2551 = vmatpush1.bf16.msra.mxu0 0
      %2552 = vmatprep.subr.bf16.mxu0 0
      %2553 = vmatpush1.bf16.msra.mxu0 0
      %2554 = vmatprep.subr.bf16.mxu0 0
      %2555 = vmatpush1.bf16.msra.mxu0 0
      %2556 = vmatprep.subr.bf16.mxu0 0
      %2557 = vmatpush1.bf16.msra.mxu0 0
      %2558 = vmatprep.subr.bf16.mxu0 0
      %2559 = vmatpush1.bf16.msra.mxu0 0
      %2560 = vmatprep.subr.bf16.mxu0 0
      %2561 = vmatpush1.bf16.msra.mxu0 0
      %2562 = vmatprep.subr.bf16.mxu0 0
      %2563 = vmatpush1.bf16.msra.mxu0 0
      %2564 = vmatprep.subr.bf16.mxu0 0
      %2565 = vmatpush1.bf16.msra.mxu0 0
      %2566 = vmatprep.subr.bf16.mxu0 0
      %2567 = vmatpush1.bf16.msra.mxu0 0
      %2568 = vmatprep.subr.bf16.mxu0 0
      %2569 = vmatpush1.bf16.msra.mxu0 0
      %2570 = vmatprep.subr.bf16.mxu0 0
      %2571 = vmatpush1.bf16.msra.mxu0 0
      %2572 = vmatprep.subr.bf16.mxu0 0
      %2573 = vmatpush1.bf16.msra.mxu0 0
      %2574 = vmatprep.subr.bf16.mxu0 0
      %2575 = vmatpush1.bf16.msra.mxu0 0
      %2576 = vmatprep.mubr.bf16.mxu0 0
      %2577 = vmatmul.mubr.bf16.gmra.mrb[0].mxu0 %v2527
      %v2578 = vpop.f32.mrb[0].mxu0
      %v2579 = vadd.f32 0.0, %v2578
      %v2580 = vpop.f32.mrb[0].mxu0
      %v2581 = vpop.f32.mrb[0].mxu0
      %v2582 = vadd.f32 0.0, %v2581
      %v2583 = vpop.f32.mrb[0].mxu0
      %2584 = vmatprep.mubr.bf16.mxu0 0
      %2585 = vmatmul.mubr.bf16.gmra.mrb[0].mxu0 %v2530
      %v2586 = vpop.f32.mrb[0].mxu0
      %v2587 = vadd.f32 0.0, %v2586
      %v2588 = vpop.f32.mrb[0].mxu0
      %v2589 = vpop.f32.mrb[0].mxu0
      %v2590 = vadd.f32 0.0, %v2589
      %v2591 = vpop.f32.mrb[0].mxu0
      %2592 = vmatprep.mubr.bf16.mxu0 0
      %2593 = vmatmul.mubr.bf16.gmra.mrb[0].mxu0 %v2533
      %v2594 = vpop.f32.mrb[0].mxu0
      %v2595 = vadd.f32 0.0, %v2594
      %v2596 = vpop.f32.mrb[0].mxu0
      %v2597 = vpop.f32.mrb[0].mxu0
      %v2598 = vadd.f32 0.0, %v2597
      %v2599 = vpop.f32.mrb[0].mxu0
      %2600 = vmatprep.mubr.bf16.mxu0 0
      %2601 = vmatmul.mubr.bf16.gmra.mrb[0].mxu0 %v2536
      %v2602 = vpop.f32.mrb[0].mxu0
      %v2603 = vadd.f32 0.0, %v2602
      %v2604 = vpop.f32.mrb[0].mxu0
      %v2605 = vpop.f32.mrb[0].mxu0
      %v2606 = vadd.f32 0.0, %v2605
      %v2607 = vpop.f32.mrb[0].mxu0
      %2608 = vmatprep.mubr.bf16.mxu0 0
      %2609 = vmatmul.mubr.bf16.gmra.mrb[0].mxu0 %v2539
      %v2610 = vpop.f32.mrb[0].mxu0
      %v2611 = vadd.f32 0.0, %v2610
      %v2612 = vpop.f32.mrb[0].mxu0
      %v2613 = vpop.f32.mrb[0].mxu0
      %v2614 = vadd.f32 0.0, %v2613
      %v2615 = vpop.f32.mrb[0].mxu0
      %2616 = vdwg.mxu0
      %v2617 = vadd.f32 %v2477, %v2579
      %v2618 = vadd.f32 %v2478, %v2582
      %v2619 = vadd.f32 %v2479, %v2587
      %v2620 = vadd.f32 %v2480, %v2590
      %v2621 = vadd.f32 %v2481, %v2595
      %v2622 = vadd.f32 %v2482, %v2598
      %v2623 = vadd.f32 %v2483, %v2603
      %v2624 = vadd.f32 %v2484, %v2606
      %v2625 = vadd.f32 %v2485, %v2611
      %v2626 = vadd.f32 %v2486, %v2614
      %v2627 = vld [vmem:[%s361 + $0xc] sm:$0xc]
      %v2628 = vld [vmem:[%s361 + $0x10] sm:$0xf]
      %v2629 = vld [vmem:[%s361 + $0x14] sm:$0xf]
      %v2630 = vld [vmem:[%s361 + $0x18] sm:$0xf]
      %v2631 = vld [vmem:[%s361 + $0x1c] sm:$0xf]
      %v2632 = vld [vmem:[%s361 + $0x20] sm:$0xf]
      %v2633 = vld [vmem:[%s361 + $0x24] sm:$0xf]
      %v2634 = vld [vmem:[%s361 + $0x28] sm:$0xf]
      %v2635 = vld [vmem:[%s361 + $0x2c] sm:$0xf]
      %v2636 = vld [vmem:[%s361 + $0x30] sm:$0xf]
      %v2637 = vld [vmem:[%s361 + $0x34] sm:$0x7]
      %s2638 = scalar_lea.vmem %s4, 60
      %v2639 = vld [vmem:[%s2638] sm:$0xf]
      %v2651 = vunpack.c.l.b16 %v2627
      %v2652 = vunpack.c.l.b16 %v2628
      %v2653 = vunpack.c.l.b16 %v2629
      %v2654 = vunpack.c.l.b16 %v2630
      %v2655 = vunpack.c.l.b16 %v2631
      %v2656 = vunpack.c.l.b16 %v2632
      %v2657 = vunpack.c.l.b16 %v2633
      %v2658 = vunpack.c.l.b16 %v2634
      %v2659 = vunpack.c.l.b16 %v2635
      %v2660 = vunpack.c.l.b16 %v2636
      %v2661 = vunpack.c.l.b16 %v2637
      %v2662 = vpack.c.b16 %v2652, %v2651
      %v2663 = vpack.c.b16 %v2654, %v2653
      %v2664 = vpack.c.b16 %v2656, %v2655
      %v2665 = vpack.c.b16 %v2658, %v2657
      %v2666 = vpack.c.b16 %v2660, %v2659
      %v2667 = vpack.c.b16 %v2661, %v2661
      %v2669 = vshrl.u32 %v2662, 16
      %v2671 = vrot.slane %v2669, 2
      %v2672 = vshll.u32 %v2662, 16
      %v2674 = vrot.slane %v2672, 3
      %v2675 = vor.u32 %v2671, %v2674
      %v2677 = vshrl.u32 %v2663, 16
      %v2679 = vrot.slane %v2677, 2
      %v2680 = vshll.u32 %v2663, 16
      %v2682 = vrot.slane %v2680, 3
      %v2683 = vor.u32 %v2679, %v2682
      %v2684 = vsel %vm1140, %v2675, %v2683
      %v2686 = vshrl.u32 %v2664, 16
      %v2688 = vrot.slane %v2686, 2
      %v2689 = vshll.u32 %v2664, 16
      %v2691 = vrot.slane %v2689, 3
      %v2692 = vor.u32 %v2688, %v2691
      %v2693 = vsel %vm1140, %v2683, %v2692
      %v2695 = vshrl.u32 %v2665, 16
      %v2697 = vrot.slane %v2695, 2
      %v2698 = vshll.u32 %v2665, 16
      %v2700 = vrot.slane %v2698, 3
      %v2701 = vor.u32 %v2697, %v2700
      %v2702 = vsel %vm1140, %v2692, %v2701
      %v2704 = vshrl.u32 %v2666, 16
      %v2706 = vrot.slane %v2704, 2
      %v2707 = vshll.u32 %v2666, 16
      %v2709 = vrot.slane %v2707, 3
      %v2710 = vor.u32 %v2706, %v2709
      %v2711 = vsel %vm1140, %v2701, %v2710
      %v2713 = vshrl.u32 %v2667, 16
      %v2715 = vrot.slane %v2713, 2
      %v2716 = vshll.u32 %v2667, 16
      %v2718 = vrot.slane %v2716, 3
      %v2719 = vor.u32 %v2715, %v2718
      %v2720 = vsel %vm1140, %v2710, %v2719
      %v2722 = vsel %vm447, %v2684, 0
      %v2725 = vsel %vm447, %v2693, 0
      %v2728 = vsel %vm447, %v2702, 0
      %v2731 = vsel %vm447, %v2711, 0
      %v2734 = vsel %vm447, %v2720, 0
      %v2737 = vsel %vm463, %v2639, 0
      %2739 = vmatprep.subr.bf16.mxu0 0
      %2740 = vmatpush1.bf16.msra.mxu0 %v2737
      %2741 = vmatprep.subr.bf16.mxu0 0
      %2742 = vmatpush1.bf16.msra.mxu0 0
      %2743 = vmatprep.subr.bf16.mxu0 0
      %2744 = vmatpush1.bf16.msra.mxu0 0
      %2745 = vmatprep.subr.bf16.mxu0 0
      %2746 = vmatpush1.bf16.msra.mxu0 0
      %2747 = vmatprep.subr.bf16.mxu0 0
      %2748 = vmatpush1.bf16.msra.mxu0 0
      %2749 = vmatprep.subr.bf16.mxu0 0
      %2750 = vmatpush1.bf16.msra.mxu0 0
      %2751 = vmatprep.subr.bf16.mxu0 0
      %2752 = vmatpush1.bf16.msra.mxu0 0
      %2753 = vmatprep.subr.bf16.mxu0 0
      %2754 = vmatpush1.bf16.msra.mxu0 0
      %2755 = vmatprep.subr.bf16.mxu0 0
      %2756 = vmatpush1.bf16.msra.mxu0 0
      %2757 = vmatprep.subr.bf16.mxu0 0
      %2758 = vmatpush1.bf16.msra.mxu0 0
      %2759 = vmatprep.subr.bf16.mxu0 0
      %2760 = vmatpush1.bf16.msra.mxu0 0
      %2761 = vmatprep.subr.bf16.mxu0 0
      %2762 = vmatpush1.bf16.msra.mxu0 0
      %2763 = vmatprep.subr.bf16.mxu0 0
      %2764 = vmatpush1.bf16.msra.mxu0 0
      %2765 = vmatprep.subr.bf16.mxu0 0
      %2766 = vmatpush1.bf16.msra.mxu0 0
      %2767 = vmatprep.subr.bf16.mxu0 0
      %2768 = vmatpush1.bf16.msra.mxu0 0
      %2769 = vmatprep.subr.bf16.mxu0 0
      %2770 = vmatpush1.bf16.msra.mxu0 0
      %2771 = vmatprep.mubr.bf16.mxu0 0
      %2772 = vmatmul.mubr.bf16.gmra.mrb[0].mxu0 %v2722
      %v2773 = vpop.f32.mrb[0].mxu0
      %v2774 = vadd.f32 0.0, %v2773
      %v2775 = vpop.f32.mrb[0].mxu0
      %v2776 = vpop.f32.mrb[0].mxu0
      %v2777 = vadd.f32 0.0, %v2776
      %v2778 = vpop.f32.mrb[0].mxu0
      %2779 = vmatprep.mubr.bf16.mxu0 0
      %2780 = vmatmul.mubr.bf16.gmra.mrb[0].mxu0 %v2725
      %v2781 = vpop.f32.mrb[0].mxu0
      %v2782 = vadd.f32 0.0, %v2781
      %v2783 = vpop.f32.mrb[0].mxu0
      %v2784 = vpop.f32.mrb[0].mxu0
      %v2785 = vadd.f32 0.0, %v2784
      %v2786 = vpop.f32.mrb[0].mxu0
      %2787 = vmatprep.mubr.bf16.mxu0 0
      %2788 = vmatmul.mubr.bf16.gmra.mrb[0].mxu0 %v2728
      %v2789 = vpop.f32.mrb[0].mxu0
      %v2790 = vadd.f32 0.0, %v2789
      %v2791 = vpop.f32.mrb[0].mxu0
      %v2792 = vpop.f32.mrb[0].mxu0
      %v2793 = vadd.f32 0.0, %v2792
      %v2794 = vpop.f32.mrb[0].mxu0
      %2795 = vmatprep.mubr.bf16.mxu0 0
      %2796 = vmatmul.mubr.bf16.gmra.mrb[0].mxu0 %v2731
      %v2797 = vpop.f32.mrb[0].mxu0
      %v2798 = vadd.f32 0.0, %v2797
      %v2799 = vpop.f32.mrb[0].mxu0
      %v2800 = vpop.f32.mrb[0].mxu0
      %v2801 = vadd.f32 0.0, %v2800
      %v2802 = vpop.f32.mrb[0].mxu0
      %2803 = vmatprep.mubr.bf16.mxu0 0
      %2804 = vmatmul.mubr.bf16.gmra.mrb[0].mxu0 %v2734
      %v2805 = vpop.f32.mrb[0].mxu0
      %v2806 = vadd.f32 0.0, %v2805
      %v2807 = vpop.f32.mrb[0].mxu0
      %v2808 = vpop.f32.mrb[0].mxu0
      %v2809 = vadd.f32 0.0, %v2808
      %v2810 = vpop.f32.mrb[0].mxu0
      %2811 = vdwg.mxu0
      %v2812 = vadd.f32 %v2617, %v2774
      %v2813 = vadd.f32 %v2618, %v2777
      %v2814 = vadd.f32 %v2619, %v2782
      %v2815 = vadd.f32 %v2620, %v2785
      %v2816 = vadd.f32 %v2621, %v2790
      %v2817 = vadd.f32 %v2622, %v2793
      %v2818 = vadd.f32 %v2623, %v2798
      %v2819 = vadd.f32 %v2624, %v2801
      %v2820 = vadd.f32 %v2625, %v2806
      %v2821 = vadd.f32 %v2626, %v2809
      %v2822 = vld [vmem:[%s361 + $0xc] sm:$0x8]
      %s2823 = scalar_lea.vmem %s4, 64
      %v2824 = vld [vmem:[%s2823] sm:$0xf]
      %v2826 = vunpack.c.l.b16 %v2822
      %v2827 = vpack.c.b16 %v2652, %v2826
      %v2828 = vrot.slane %v2827, 3
      %v2829 = vrot.slane %v2663, 3
      %v2830 = vsel %vm1476, %v2828, %v2829
      %v2831 = vrot.slane %v2664, 3
      %v2832 = vsel %vm1476, %v2829, %v2831
      %v2833 = vrot.slane %v2665, 3
      %v2834 = vsel %vm1476, %v2831, %v2833
      %v2835 = vrot.slane %v2666, 3
      %v2836 = vsel %vm1476, %v2833, %v2835
      %v2837 = vrot.slane %v2667, 3
      %v2838 = vsel %vm1476, %v2835, %v2837
      %v2840 = vsel %vm447, %v2830, 0
      %v2843 = vsel %vm447, %v2832, 0
      %v2846 = vsel %vm447, %v2834, 0
      %v2849 = vsel %vm447, %v2836, 0
      %v2852 = vsel %vm447, %v2838, 0
      %v2855 = vsel %vm463, %v2824, 0
      %2857 = vmatprep.subr.bf16.mxu0 0
      %2858 = vmatpush1.bf16.msra.mxu0 %v2855
      %2859 = vmatprep.subr.bf16.mxu0 0
      %2860 = vmatpush1.bf16.msra.mxu0 0
      %2861 = vmatprep.subr.bf16.mxu0 0
      %2862 = vmatpush1.bf16.msra.mxu0 0
      %2863 = vmatprep.subr.bf16.mxu0 0
      %2864 = vmatpush1.bf16.msra.mxu0 0
      %2865 = vmatprep.subr.bf16.mxu0 0
      %2866 = vmatpush1.bf16.msra.mxu0 0
      %2867 = vmatprep.subr.bf16.mxu0 0
      %2868 = vmatpush1.bf16.msra.mxu0 0
      %2869 = vmatprep.subr.bf16.mxu0 0
      %2870 = vmatpush1.bf16.msra.mxu0 0
      %2871 = vmatprep.subr.bf16.mxu0 0
      %2872 = vmatpush1.bf16.msra.mxu0 0
      %2873 = vmatprep.subr.bf16.mxu0 0
      %2874 = vmatpush1.bf16.msra.mxu0 0
      %2875 = vmatprep.subr.bf16.mxu0 0
      %2876 = vmatpush1.bf16.msra.mxu0 0
      %2877 = vmatprep.subr.bf16.mxu0 0
      %2878 = vmatpush1.bf16.msra.mxu0 0
      %2879 = vmatprep.subr.bf16.mxu0 0
      %2880 = vmatpush1.bf16.msra.mxu0 0
      %2881 = vmatprep.subr.bf16.mxu0 0
      %2882 = vmatpush1.bf16.msra.mxu0 0
      %2883 = vmatprep.subr.bf16.mxu0 0
      %2884 = vmatpush1.bf16.msra.mxu0 0
      %2885 = vmatprep.subr.bf16.mxu0 0
      %2886 = vmatpush1.bf16.msra.mxu0 0
      %2887 = vmatprep.subr.bf16.mxu0 0
      %2888 = vmatpush1.bf16.msra.mxu0 0
      %2889 = vmatprep.mubr.bf16.mxu0 0
      %2890 = vmatmul.mubr.bf16.gmra.mrb[0].mxu0 %v2840
      %v2891 = vpop.f32.mrb[0].mxu0
      %v2892 = vadd.f32 0.0, %v2891
      %v2893 = vpop.f32.mrb[0].mxu0
      %v2894 = vpop.f32.mrb[0].mxu0
      %v2895 = vadd.f32 0.0, %v2894
      %v2896 = vpop.f32.mrb[0].mxu0
      %2897 = vmatprep.mubr.bf16.mxu0 0
      %2898 = vmatmul.mubr.bf16.gmra.mrb[0].mxu0 %v2843
      %v2899 = vpop.f32.mrb[0].mxu0
      %v2900 = vadd.f32 0.0, %v2899
      %v2901 = vpop.f32.mrb[0].mxu0
      %v2902 = vpop.f32.mrb[0].mxu0
      %v2903 = vadd.f32 0.0, %v2902
      %v2904 = vpop.f32.mrb[0].mxu0
      %2905 = vmatprep.mubr.bf16.mxu0 0
      %2906 = vmatmul.mubr.bf16.gmra.mrb[0].mxu0 %v2846
      %v2907 = vpop.f32.mrb[0].mxu0
      %v2908 = vadd.f32 0.0, %v2907
      %v2909 = vpop.f32.mrb[0].mxu0
      %v2910 = vpop.f32.mrb[0].mxu0
      %v2911 = vadd.f32 0.0, %v2910
      %v2912 = vpop.f32.mrb[0].mxu0
      %2913 = vmatprep.mubr.bf16.mxu0 0
      %2914 = vmatmul.mubr.bf16.gmra.mrb[0].mxu0 %v2849
      %v2915 = vpop.f32.mrb[0].mxu0
      %v2916 = vadd.f32 0.0, %v2915
      %v2917 = vpop.f32.mrb[0].mxu0
      %v2918 = vpop.f32.mrb[0].mxu0
      %v2919 = vadd.f32 0.0, %v2918
      %v2920 = vpop.f32.mrb[0].mxu0
      %2921 = vmatprep.mubr.bf16.mxu0 0
      %2922 = vmatmul.mubr.bf16.gmra.mrb[0].mxu0 %v2852
      %v2923 = vpop.f32.mrb[0].mxu0
      %v2924 = vadd.f32 0.0, %v2923
      %v2925 = vpop.f32.mrb[0].mxu0
      %v2926 = vpop.f32.mrb[0].mxu0
      %v2927 = vadd.f32 0.0, %v2926
      %v2928 = vpop.f32.mrb[0].mxu0
      %2929 = vdwg.mxu0
      %v2930 = vadd.f32 %v2812, %v2892
      %v2931 = vadd.f32 %v2813, %v2895
      %v2932 = vadd.f32 %v2814, %v2900
      %v2933 = vadd.f32 %v2815, %v2903
      %v2934 = vadd.f32 %v2816, %v2908
      %v2935 = vadd.f32 %v2817, %v2911
      %v2936 = vadd.f32 %v2818, %v2916
      %v2937 = vadd.f32 %v2819, %v2919
      %v2938 = vadd.f32 %v2820, %v2924
      %v2939 = vadd.f32 %v2821, %v2927
      %v2940 = vld [vmem:[%s361 + $0x34] sm:$0xf]
      %s2941 = scalar_lea.vmem %s4, 68
      %v2942 = vld [vmem:[%s2941] sm:$0xf]
      %v2944 = vunpack.c.l.b16 %v2940
      %v2945 = vpack.c.b16 %v2944, %v2944
      %v2947 = vshrl.u32 %v2827, 16
      %v2949 = vrot.slane %v2947, 3
      %v2950 = vshll.u32 %v2827, 16
      %v2952 = vrot.slane %v2950, 4
      %v2953 = vor.u32 %v2949, %v2952
      %v2954 = vrot.slane %v2677, 3
      %v2955 = vrot.slane %v2680, 4
      %v2956 = vor.u32 %v2954, %v2955
      %v2957 = vsel %vm1595, %v2953, %v2956
      %v2958 = vrot.slane %v2686, 3
      %v2959 = vrot.slane %v2689, 4
      %v2960 = vor.u32 %v2958, %v2959
      %v2961 = vsel %vm1595, %v2956, %v2960
      %v2962 = vrot.slane %v2695, 3
      %v2963 = vrot.slane %v2698, 4
      %v2964 = vor.u32 %v2962, %v2963
      %v2965 = vsel %vm1595, %v2960, %v2964
      %v2966 = vrot.slane %v2704, 3
      %v2967 = vrot.slane %v2707, 4
      %v2968 = vor.u32 %v2966, %v2967
      %v2969 = vsel %vm1595, %v2964, %v2968
      %v2971 = vshrl.u32 %v2945, 16
      %v2973 = vrot.slane %v2971, 3
      %v2974 = vshll.u32 %v2945, 16
      %v2976 = vrot.slane %v2974, 4
      %v2977 = vor.u32 %v2973, %v2976
      %v2978 = vsel %vm1595, %v2968, %v2977
      %v2980 = vsel %vm447, %v2957, 0
      %v2983 = vsel %vm447, %v2961, 0
      %v2986 = vsel %vm447, %v2965, 0
      %v2989 = vsel %vm447, %v2969, 0
      %v2992 = vsel %vm447, %v2978, 0
      %v2995 = vsel %vm463, %v2942, 0
      %2997 = vmatprep.subr.bf16.mxu0 0
      %2998 = vmatpush1.bf16.msra.mxu0 %v2995
      %2999 = vmatprep.subr.bf16.mxu0 0
      %3000 = vmatpush1.bf16.msra.mxu0 0
      %3001 = vmatprep.subr.bf16.mxu0 0
      %3002 = vmatpush1.bf16.msra.mxu0 0
      %3003 = vmatprep.subr.bf16.mxu0 0
      %3004 = vmatpush1.bf16.msra.mxu0 0
      %3005 = vmatprep.subr.bf16.mxu0 0
      %3006 = vmatpush1.bf16.msra.mxu0 0
      %3007 = vmatprep.subr.bf16.mxu0 0
      %3008 = vmatpush1.bf16.msra.mxu0 0
      %3009 = vmatprep.subr.bf16.mxu0 0
      %3010 = vmatpush1.bf16.msra.mxu0 0
      %3011 = vmatprep.subr.bf16.mxu0 0
      %3012 = vmatpush1.bf16.msra.mxu0 0
      %3013 = vmatprep.subr.bf16.mxu0 0
      %3014 = vmatpush1.bf16.msra.mxu0 0
      %3015 = vmatprep.subr.bf16.mxu0 0
      %3016 = vmatpush1.bf16.msra.mxu0 0
      %3017 = vmatprep.subr.bf16.mxu0 0
      %3018 = vmatpush1.bf16.msra.mxu0 0
      %3019 = vmatprep.subr.bf16.mxu0 0
      %3020 = vmatpush1.bf16.msra.mxu0 0
      %3021 = vmatprep.subr.bf16.mxu0 0
      %3022 = vmatpush1.bf16.msra.mxu0 0
      %3023 = vmatprep.subr.bf16.mxu0 0
      %3024 = vmatpush1.bf16.msra.mxu0 0
      %3025 = vmatprep.subr.bf16.mxu0 0
      %3026 = vmatpush1.bf16.msra.mxu0 0
      %3027 = vmatprep.subr.bf16.mxu0 0
      %3028 = vmatpush1.bf16.msra.mxu0 0
      %3029 = vmatprep.mubr.bf16.mxu0 0
      %3030 = vmatmul.mubr.bf16.gmra.mrb[0].mxu0 %v2980
      %v3031 = vpop.f32.mrb[0].mxu0
      %v3032 = vadd.f32 0.0, %v3031
      %v3033 = vpop.f32.mrb[0].mxu0
      %v3034 = vpop.f32.mrb[0].mxu0
      %v3035 = vadd.f32 0.0, %v3034
      %v3036 = vpop.f32.mrb[0].mxu0
      %3037 = vmatprep.mubr.bf16.mxu0 0
      %3038 = vmatmul.mubr.bf16.gmra.mrb[0].mxu0 %v2983
      %v3039 = vpop.f32.mrb[0].mxu0
      %v3040 = vadd.f32 0.0, %v3039
      %v3041 = vpop.f32.mrb[0].mxu0
      %v3042 = vpop.f32.mrb[0].mxu0
      %v3043 = vadd.f32 0.0, %v3042
      %v3044 = vpop.f32.mrb[0].mxu0
      %3045 = vmatprep.mubr.bf16.mxu0 0
      %3046 = vmatmul.mubr.bf16.gmra.mrb[0].mxu0 %v2986
      %v3047 = vpop.f32.mrb[0].mxu0
      %v3048 = vadd.f32 0.0, %v3047
      %v3049 = vpop.f32.mrb[0].mxu0
      %v3050 = vpop.f32.mrb[0].mxu0
      %v3051 = vadd.f32 0.0, %v3050
      %v3052 = vpop.f32.mrb[0].mxu0
      %3053 = vmatprep.mubr.bf16.mxu0 0
      %3054 = vmatmul.mubr.bf16.gmra.mrb[0].mxu0 %v2989
      %v3055 = vpop.f32.mrb[0].mxu0
      %v3056 = vadd.f32 0.0, %v3055
      %v3057 = vpop.f32.mrb[0].mxu0
      %v3058 = vpop.f32.mrb[0].mxu0
      %v3059 = vadd.f32 0.0, %v3058
      %v3060 = vpop.f32.mrb[0].mxu0
      %3061 = vmatprep.mubr.bf16.mxu0 0
      %3062 = vmatmul.mubr.bf16.gmra.mrb[0].mxu0 %v2992
      %v3063 = vpop.f32.mrb[0].mxu0
      %v3064 = vadd.f32 0.0, %v3063
      %v3065 = vpop.f32.mrb[0].mxu0
      %v3066 = vpop.f32.mrb[0].mxu0
      %v3067 = vadd.f32 0.0, %v3066
      %v3068 = vpop.f32.mrb[0].mxu0
      %3069 = vdwg.mxu0
      %v3070 = vadd.f32 %v2930, %v3032
      %v3071 = vadd.f32 %v2931, %v3035
      %v3072 = vadd.f32 %v2932, %v3040
      %v3073 = vadd.f32 %v2933, %v3043
      %v3074 = vadd.f32 %v2934, %v3048
      %v3075 = vadd.f32 %v2935, %v3051
      %v3076 = vadd.f32 %v2936, %v3056
      %v3077 = vadd.f32 %v2937, %v3059
      %v3078 = vadd.f32 %v2938, %v3064
      %v3079 = vadd.f32 %v2939, %v3067
      %v3080 = vld [vmem:[%s372 + $0x4] sm:$0xf]
      %v3081 = vld [vmem:[%s372 + $0x8] sm:$0xf]
      %v3082 = vld [vmem:[%s372 + $0xc] sm:$0xf]
      %v3083 = vld [vmem:[%s372 + $0x10] sm:$0xf]
      %v3084 = vld [vmem:[%s372 + $0x14] sm:$0xf]
      %v3085 = vld [vmem:[%s372 + $0x18] sm:$0xf]
      %v3086 = vld [vmem:[%s372 + $0x1c] sm:$0xf]
      %v3087 = vld [vmem:[%s372 + $0x20] sm:$0xf]
      %v3088 = vld [vmem:[%s372 + $0x24] sm:$0xf]
      %v3089 = vld [vmem:[%s372 + $0x28] sm:$0xf]
      %v3090 = vld [vmem:[%s372 + $0x2c] sm:$0x1]
      %s3091 = scalar_lea.vmem %s4, 72
      %v3092 = vld [vmem:[%s3091] sm:$0xf]
      %v3104 = vunpack.c.l.b16 %v3080
      %v3105 = vunpack.c.l.b16 %v3081
      %v3106 = vunpack.c.l.b16 %v3082
      %v3107 = vunpack.c.l.b16 %v3083
      %v3108 = vunpack.c.l.b16 %v3084
      %v3109 = vunpack.c.l.b16 %v3085
      %v3110 = vunpack.c.l.b16 %v3086
      %v3111 = vunpack.c.l.b16 %v3087
      %v3112 = vunpack.c.l.b16 %v3088
      %v3113 = vunpack.c.l.b16 %v3089
      %v3114 = vunpack.c.l.b16 %v3090
      %v3115 = vpack.c.b16 %v3105, %v3104
      %v3116 = vpack.c.b16 %v3107, %v3106
      %v3117 = vpack.c.b16 %v3109, %v3108
      %v3118 = vpack.c.b16 %v3111, %v3110
      %v3119 = vpack.c.b16 %v3113, %v3112
      %v3120 = vpack.c.b16 %v3114, %v3114
      %v3122 = vshrl.u32 %v3115, 16
      %v3124 = vshll.u32 %v3115, 16
      %v3126 = vrot.slane %v3124, 1
      %v3127 = vor.u32 %v3122, %v3126
      %v3129 = vshll.u32 %v3116, 16
      %v3131 = vrot.slane %v3129, 1
      %v3132 = vsel %vm543, %v3127, %v3131
      %v3133 = vshrl.u32 %v3116, 16
      %v3135 = vor.u32 %v3133, %v3131
      %v3137 = vshll.u32 %v3117, 16
      %v3139 = vrot.slane %v3137, 1
      %v3140 = vsel %vm543, %v3135, %v3139
      %v3141 = vshrl.u32 %v3117, 16
      %v3143 = vor.u32 %v3141, %v3139
      %v3145 = vshll.u32 %v3118, 16
      %v3147 = vrot.slane %v3145, 1
      %v3148 = vsel %vm543, %v3143, %v3147
      %v3149 = vshrl.u32 %v3118, 16
      %v3151 = vor.u32 %v3149, %v3147
      %v3153 = vshll.u32 %v3119, 16
      %v3155 = vrot.slane %v3153, 1
      %v3156 = vsel %vm543, %v3151, %v3155
      %v3157 = vshrl.u32 %v3119, 16
      %v3159 = vor.u32 %v3157, %v3155
      %v3161 = vshll.u32 %v3120, 16
      %v3163 = vrot.slane %v3161, 1
      %v3164 = vsel %vm543, %v3159, %v3163
      %v3166 = vsel %vm447, %v3132, 0
      %v3169 = vsel %vm447, %v3140, 0
      %v3172 = vsel %vm447, %v3148, 0
      %v3175 = vsel %vm447, %v3156, 0
      %v3178 = vsel %vm447, %v3164, 0
      %v3181 = vsel %vm463, %v3092, 0
      %3183 = vmatprep.subr.bf16.mxu0 0
      %3184 = vmatpush1.bf16.msra.mxu0 %v3181
      %3185 = vmatprep.subr.bf16.mxu0 0
      %3186 = vmatpush1.bf16.msra.mxu0 0
      %3187 = vmatprep.subr.bf16.mxu0 0
      %3188 = vmatpush1.bf16.msra.mxu0 0
      %3189 = vmatprep.subr.bf16.mxu0 0
      %3190 = vmatpush1.bf16.msra.mxu0 0
      %3191 = vmatprep.subr.bf16.mxu0 0
      %3192 = vmatpush1.bf16.msra.mxu0 0
      %3193 = vmatprep.subr.bf16.mxu0 0
      %3194 = vmatpush1.bf16.msra.mxu0 0
      %3195 = vmatprep.subr.bf16.mxu0 0
      %3196 = vmatpush1.bf16.msra.mxu0 0
      %3197 = vmatprep.subr.bf16.mxu0 0
      %3198 = vmatpush1.bf16.msra.mxu0 0
      %3199 = vmatprep.subr.bf16.mxu0 0
      %3200 = vmatpush1.bf16.msra.mxu0 0
      %3201 = vmatprep.subr.bf16.mxu0 0
      %3202 = vmatpush1.bf16.msra.mxu0 0
      %3203 = vmatprep.subr.bf16.mxu0 0
      %3204 = vmatpush1.bf16.msra.mxu0 0
      %3205 = vmatprep.subr.bf16.mxu0 0
      %3206 = vmatpush1.bf16.msra.mxu0 0
      %3207 = vmatprep.subr.bf16.mxu0 0
      %3208 = vmatpush1.bf16.msra.mxu0 0
      %3209 = vmatprep.subr.bf16.mxu0 0
      %3210 = vmatpush1.bf16.msra.mxu0 0
      %3211 = vmatprep.subr.bf16.mxu0 0
      %3212 = vmatpush1.bf16.msra.mxu0 0
      %3213 = vmatprep.subr.bf16.mxu0 0
      %3214 = vmatpush1.bf16.msra.mxu0 0
      %3215 = vmatprep.mubr.bf16.mxu0 0
      %3216 = vmatmul.mubr.bf16.gmra.mrb[0].mxu0 %v3166
      %v3217 = vpop.f32.mrb[0].mxu0
      %v3218 = vadd.f32 0.0, %v3217
      %v3219 = vpop.f32.mrb[0].mxu0
      %v3220 = vpop.f32.mrb[0].mxu0
      %v3221 = vadd.f32 0.0, %v3220
      %v3222 = vpop.f32.mrb[0].mxu0
      %3223 = vmatprep.mubr.bf16.mxu0 0
      %3224 = vmatmul.mubr.bf16.gmra.mrb[0].mxu0 %v3169
      %v3225 = vpop.f32.mrb[0].mxu0
      %v3226 = vadd.f32 0.0, %v3225
      %v3227 = vpop.f32.mrb[0].mxu0
      %v3228 = vpop.f32.mrb[0].mxu0
      %v3229 = vadd.f32 0.0, %v3228
      %v3230 = vpop.f32.mrb[0].mxu0
      %3231 = vmatprep.mubr.bf16.mxu0 0
      %3232 = vmatmul.mubr.bf16.gmra.mrb[0].mxu0 %v3172
      %v3233 = vpop.f32.mrb[0].mxu0
      %v3234 = vadd.f32 0.0, %v3233
      %v3235 = vpop.f32.mrb[0].mxu0
      %v3236 = vpop.f32.mrb[0].mxu0
      %v3237 = vadd.f32 0.0, %v3236
      %v3238 = vpop.f32.mrb[0].mxu0
      %3239 = vmatprep.mubr.bf16.mxu0 0
      %3240 = vmatmul.mubr.bf16.gmra.mrb[0].mxu0 %v3175
      %v3241 = vpop.f32.mrb[0].mxu0
      %v3242 = vadd.f32 0.0, %v3241
      %v3243 = vpop.f32.mrb[0].mxu0
      %v3244 = vpop.f32.mrb[0].mxu0
      %v3245 = vadd.f32 0.0, %v3244
      %v3246 = vpop.f32.mrb[0].mxu0
      %3247 = vmatprep.mubr.bf16.mxu0 0
      %3248 = vmatmul.mubr.bf16.gmra.mrb[0].mxu0 %v3178
      %v3249 = vpop.f32.mrb[0].mxu0
      %v3250 = vadd.f32 0.0, %v3249
      %v3251 = vpop.f32.mrb[0].mxu0
      %v3252 = vpop.f32.mrb[0].mxu0
      %v3253 = vadd.f32 0.0, %v3252
      %v3254 = vpop.f32.mrb[0].mxu0
      %3255 = vdwg.mxu0
      %v3256 = vadd.f32 %v3070, %v3218
      %v3257 = vadd.f32 %v3071, %v3221
      %v3258 = vadd.f32 %v3072, %v3226
      %v3259 = vadd.f32 %v3073, %v3229
      %v3260 = vadd.f32 %v3074, %v3234
      %v3261 = vadd.f32 %v3075, %v3237
      %v3262 = vadd.f32 %v3076, %v3242
      %v3263 = vadd.f32 %v3077, %v3245
      %v3264 = vadd.f32 %v3078, %v3250
      %v3265 = vadd.f32 %v3079, %v3253
      %v3266 = vld [vmem:[%s372 + $0x4] sm:$0xe]
      %s3267 = scalar_lea.vmem %s4, 76
      %v3268 = vld [vmem:[%s3267] sm:$0xf]
      %v3270 = vunpack.c.l.b16 %v3266
      %v3271 = vpack.c.b16 %v3105, %v3270
      %v3272 = vrot.slane %v3271, 1
      %v3273 = vrot.slane %v3116, 1
      %v3274 = vsel %vm435, %v3272, %v3273
      %v3275 = vrot.slane %v3117, 1
      %v3276 = vsel %vm435, %v3273, %v3275
      %v3277 = vrot.slane %v3118, 1
      %v3278 = vsel %vm435, %v3275, %v3277
      %v3279 = vrot.slane %v3119, 1
      %v3280 = vsel %vm435, %v3277, %v3279
      %v3281 = vrot.slane %v3120, 1
      %v3282 = vsel %vm435, %v3279, %v3281
      %v3284 = vsel %vm447, %v3274, 0
      %v3287 = vsel %vm447, %v3276, 0
      %v3290 = vsel %vm447, %v3278, 0
      %v3293 = vsel %vm447, %v3280, 0
      %v3296 = vsel %vm447, %v3282, 0
      %v3299 = vsel %vm463, %v3268, 0
      %3301 = vmatprep.subr.bf16.mxu0 0
      %3302 = vmatpush1.bf16.msra.mxu0 %v3299
      %3303 = vmatprep.subr.bf16.mxu0 0
      %3304 = vmatpush1.bf16.msra.mxu0 0
      %3305 = vmatprep.subr.bf16.mxu0 0
      %3306 = vmatpush1.bf16.msra.mxu0 0
      %3307 = vmatprep.subr.bf16.mxu0 0
      %3308 = vmatpush1.bf16.msra.mxu0 0
      %3309 = vmatprep.subr.bf16.mxu0 0
      %3310 = vmatpush1.bf16.msra.mxu0 0
      %3311 = vmatprep.subr.bf16.mxu0 0
      %3312 = vmatpush1.bf16.msra.mxu0 0
      %3313 = vmatprep.subr.bf16.mxu0 0
      %3314 = vmatpush1.bf16.msra.mxu0 0
      %3315 = vmatprep.subr.bf16.mxu0 0
      %3316 = vmatpush1.bf16.msra.mxu0 0
      %3317 = vmatprep.subr.bf16.mxu0 0
      %3318 = vmatpush1.bf16.msra.mxu0 0
      %3319 = vmatprep.subr.bf16.mxu0 0
      %3320 = vmatpush1.bf16.msra.mxu0 0
      %3321 = vmatprep.subr.bf16.mxu0 0
      %3322 = vmatpush1.bf16.msra.mxu0 0
      %3323 = vmatprep.subr.bf16.mxu0 0
      %3324 = vmatpush1.bf16.msra.mxu0 0
      %3325 = vmatprep.subr.bf16.mxu0 0
      %3326 = vmatpush1.bf16.msra.mxu0 0
      %3327 = vmatprep.subr.bf16.mxu0 0
      %3328 = vmatpush1.bf16.msra.mxu0 0
      %3329 = vmatprep.subr.bf16.mxu0 0
      %3330 = vmatpush1.bf16.msra.mxu0 0
      %3331 = vmatprep.subr.bf16.mxu0 0
      %3332 = vmatpush1.bf16.msra.mxu0 0
      %3333 = vmatprep.mubr.bf16.mxu0 0
      %3334 = vmatmul.mubr.bf16.gmra.mrb[0].mxu0 %v3284
      %v3335 = vpop.f32.mrb[0].mxu0
      %v3336 = vadd.f32 0.0, %v3335
      %v3337 = vpop.f32.mrb[0].mxu0
      %v3338 = vpop.f32.mrb[0].mxu0
      %v3339 = vadd.f32 0.0, %v3338
      %v3340 = vpop.f32.mrb[0].mxu0
      %3341 = vmatprep.mubr.bf16.mxu0 0
      %3342 = vmatmul.mubr.bf16.gmra.mrb[0].mxu0 %v3287
      %v3343 = vpop.f32.mrb[0].mxu0
      %v3344 = vadd.f32 0.0, %v3343
      %v3345 = vpop.f32.mrb[0].mxu0
      %v3346 = vpop.f32.mrb[0].mxu0
      %v3347 = vadd.f32 0.0, %v3346
      %v3348 = vpop.f32.mrb[0].mxu0
      %3349 = vmatprep.mubr.bf16.mxu0 0
      %3350 = vmatmul.mubr.bf16.gmra.mrb[0].mxu0 %v3290
      %v3351 = vpop.f32.mrb[0].mxu0
      %v3352 = vadd.f32 0.0, %v3351
      %v3353 = vpop.f32.mrb[0].mxu0
      %v3354 = vpop.f32.mrb[0].mxu0
      %v3355 = vadd.f32 0.0, %v3354
      %v3356 = vpop.f32.mrb[0].mxu0
      %3357 = vmatprep.mubr.bf16.mxu0 0
      %3358 = vmatmul.mubr.bf16.gmra.mrb[0].mxu0 %v3293
      %v3359 = vpop.f32.mrb[0].mxu0
      %v3360 = vadd.f32 0.0, %v3359
      %v3361 = vpop.f32.mrb[0].mxu0
      %v3362 = vpop.f32.mrb[0].mxu0
      %v3363 = vadd.f32 0.0, %v3362
      %v3364 = vpop.f32.mrb[0].mxu0
      %3365 = vmatprep.mubr.bf16.mxu0 0
      %3366 = vmatmul.mubr.bf16.gmra.mrb[0].mxu0 %v3296
      %v3367 = vpop.f32.mrb[0].mxu0
      %v3368 = vadd.f32 0.0, %v3367
      %v3369 = vpop.f32.mrb[0].mxu0
      %v3370 = vpop.f32.mrb[0].mxu0
      %v3371 = vadd.f32 0.0, %v3370
      %v3372 = vpop.f32.mrb[0].mxu0
      %3373 = vdwg.mxu0
      %v3374 = vadd.f32 %v3256, %v3336
      %v3375 = vadd.f32 %v3257, %v3339
      %v3376 = vadd.f32 %v3258, %v3344
      %v3377 = vadd.f32 %v3259, %v3347
      %v3378 = vadd.f32 %v3260, %v3352
      %v3379 = vadd.f32 %v3261, %v3355
      %v3380 = vadd.f32 %v3262, %v3360
      %v3381 = vadd.f32 %v3263, %v3363
      %v3382 = vadd.f32 %v3264, %v3368
      %v3383 = vadd.f32 %v3265, %v3371
      %v3384 = vld [vmem:[%s372 + $0x2c] sm:$0x3]
      %s3385 = scalar_lea.vmem %s4, 80
      %v3386 = vld [vmem:[%s3385] sm:$0xf]
      %v3388 = vunpack.c.l.b16 %v3384
      %v3389 = vpack.c.b16 %v3388, %v3388
      %v3391 = vshrl.u32 %v3271, 16
      %v3393 = vrot.slane %v3391, 1
      %v3394 = vshll.u32 %v3271, 16
      %v3396 = vrot.slane %v3394, 2
      %v3397 = vor.u32 %v3393, %v3396
      %v3398 = vrot.slane %v3133, 1
      %v3399 = vrot.slane %v3129, 2
      %v3400 = vor.u32 %v3398, %v3399
      %v3401 = vsel %vm685, %v3397, %v3400
      %v3402 = vrot.slane %v3141, 1
      %v3403 = vrot.slane %v3137, 2
      %v3404 = vor.u32 %v3402, %v3403
      %v3405 = vsel %vm685, %v3400, %v3404
      %v3406 = vrot.slane %v3149, 1
      %v3407 = vrot.slane %v3145, 2
      %v3408 = vor.u32 %v3406, %v3407
      %v3409 = vsel %vm685, %v3404, %v3408
      %v3410 = vrot.slane %v3157, 1
      %v3411 = vrot.slane %v3153, 2
      %v3412 = vor.u32 %v3410, %v3411
      %v3413 = vsel %vm685, %v3408, %v3412
      %v3415 = vshrl.u32 %v3389, 16
      %v3417 = vrot.slane %v3415, 1
      %v3418 = vshll.u32 %v3389, 16
      %v3420 = vrot.slane %v3418, 2
      %v3421 = vor.u32 %v3417, %v3420
      %v3422 = vsel %vm685, %v3412, %v3421
      %v3424 = vsel %vm447, %v3401, 0
      %v3427 = vsel %vm447, %v3405, 0
      %v3430 = vsel %vm447, %v3409, 0
      %v3433 = vsel %vm447, %v3413, 0
      %v3436 = vsel %vm447, %v3422, 0
      %v3439 = vsel %vm463, %v3386, 0
      %3441 = vmatprep.subr.bf16.mxu0 0
      %3442 = vmatpush1.bf16.msra.mxu0 %v3439
      %3443 = vmatprep.subr.bf16.mxu0 0
      %3444 = vmatpush1.bf16.msra.mxu0 0
      %3445 = vmatprep.subr.bf16.mxu0 0
      %3446 = vmatpush1.bf16.msra.mxu0 0
      %3447 = vmatprep.subr.bf16.mxu0 0
      %3448 = vmatpush1.bf16.msra.mxu0 0
      %3449 = vmatprep.subr.bf16.mxu0 0
      %3450 = vmatpush1.bf16.msra.mxu0 0
      %3451 = vmatprep.subr.bf16.mxu0 0
      %3452 = vmatpush1.bf16.msra.mxu0 0
      %3453 = vmatprep.subr.bf16.mxu0 0
      %3454 = vmatpush1.bf16.msra.mxu0 0
      %3455 = vmatprep.subr.bf16.mxu0 0
      %3456 = vmatpush1.bf16.msra.mxu0 0
      %3457 = vmatprep.subr.bf16.mxu0 0
      %3458 = vmatpush1.bf16.msra.mxu0 0
      %3459 = vmatprep.subr.bf16.mxu0 0
      %3460 = vmatpush1.bf16.msra.mxu0 0
      %3461 = vmatprep.subr.bf16.mxu0 0
      %3462 = vmatpush1.bf16.msra.mxu0 0
      %3463 = vmatprep.subr.bf16.mxu0 0
      %3464 = vmatpush1.bf16.msra.mxu0 0
      %3465 = vmatprep.subr.bf16.mxu0 0
      %3466 = vmatpush1.bf16.msra.mxu0 0
      %3467 = vmatprep.subr.bf16.mxu0 0
      %3468 = vmatpush1.bf16.msra.mxu0 0
      %3469 = vmatprep.subr.bf16.mxu0 0
      %3470 = vmatpush1.bf16.msra.mxu0 0
      %3471 = vmatprep.subr.bf16.mxu0 0
      %3472 = vmatpush1.bf16.msra.mxu0 0
      %3473 = vmatprep.mubr.bf16.mxu0 0
      %3474 = vmatmul.mubr.bf16.gmra.mrb[0].mxu0 %v3424
      %v3475 = vpop.f32.mrb[0].mxu0
      %v3476 = vadd.f32 0.0, %v3475
      %v3477 = vpop.f32.mrb[0].mxu0
      %v3478 = vpop.f32.mrb[0].mxu0
      %v3479 = vadd.f32 0.0, %v3478
      %v3480 = vpop.f32.mrb[0].mxu0
      %3481 = vmatprep.mubr.bf16.mxu0 0
      %3482 = vmatmul.mubr.bf16.gmra.mrb[0].mxu0 %v3427
      %v3483 = vpop.f32.mrb[0].mxu0
      %v3484 = vadd.f32 0.0, %v3483
      %v3485 = vpop.f32.mrb[0].mxu0
      %v3486 = vpop.f32.mrb[0].mxu0
      %v3487 = vadd.f32 0.0, %v3486
      %v3488 = vpop.f32.mrb[0].mxu0
      %3489 = vmatprep.mubr.bf16.mxu0 0
      %3490 = vmatmul.mubr.bf16.gmra.mrb[0].mxu0 %v3430
      %v3491 = vpop.f32.mrb[0].mxu0
      %v3492 = vadd.f32 0.0, %v3491
      %v3493 = vpop.f32.mrb[0].mxu0
      %v3494 = vpop.f32.mrb[0].mxu0
      %v3495 = vadd.f32 0.0, %v3494
      %v3496 = vpop.f32.mrb[0].mxu0
      %3497 = vmatprep.mubr.bf16.mxu0 0
      %3498 = vmatmul.mubr.bf16.gmra.mrb[0].mxu0 %v3433
      %v3499 = vpop.f32.mrb[0].mxu0
      %v3500 = vadd.f32 0.0, %v3499
      %v3501 = vpop.f32.mrb[0].mxu0
      %v3502 = vpop.f32.mrb[0].mxu0
      %v3503 = vadd.f32 0.0, %v3502
      %v3504 = vpop.f32.mrb[0].mxu0
      %3505 = vmatprep.mubr.bf16.mxu0 0
      %3506 = vmatmul.mubr.bf16.gmra.mrb[0].mxu0 %v3436
      %v3507 = vpop.f32.mrb[0].mxu0
      %v3508 = vadd.f32 0.0, %v3507
      %v3509 = vpop.f32.mrb[0].mxu0
      %v3510 = vpop.f32.mrb[0].mxu0
      %v3511 = vadd.f32 0.0, %v3510
      %v3512 = vpop.f32.mrb[0].mxu0
      %3513 = vdwg.mxu0
      %v3514 = vadd.f32 %v3374, %v3476
      %v3515 = vadd.f32 %v3375, %v3479
      %v3516 = vadd.f32 %v3376, %v3484
      %v3517 = vadd.f32 %v3377, %v3487
      %v3518 = vadd.f32 %v3378, %v3492
      %v3519 = vadd.f32 %v3379, %v3495
      %v3520 = vadd.f32 %v3380, %v3500
      %v3521 = vadd.f32 %v3381, %v3503
      %v3522 = vadd.f32 %v3382, %v3508
      %v3523 = vadd.f32 %v3383, %v3511
      %v3524 = vld [vmem:[%s372 + $0x8] sm:$0xe]
      %v3525 = vld [vmem:[%s372 + $0xc] sm:$0xf]
      %v3526 = vld [vmem:[%s372 + $0x10] sm:$0xf]
      %v3527 = vld [vmem:[%s372 + $0x14] sm:$0xf]
      %v3528 = vld [vmem:[%s372 + $0x18] sm:$0xf]
      %v3529 = vld [vmem:[%s372 + $0x1c] sm:$0xf]
      %v3530 = vld [vmem:[%s372 + $0x20] sm:$0xf]
      %v3531 = vld [vmem:[%s372 + $0x24] sm:$0xf]
      %v3532 = vld [vmem:[%s372 + $0x28] sm:$0xf]
      %v3533 = vld [vmem:[%s372 + $0x2c] sm:$0xf]
      %v3534 = vld [vmem:[%s372 + $0x30] sm:$0x3]
      %s3535 = scalar_lea.vmem %s4, 84
      %v3536 = vld [vmem:[%s3535] sm:$0xf]
      %v3548 = vunpack.c.l.b16 %v3524
      %v3549 = vunpack.c.l.b16 %v3525
      %v3550 = vunpack.c.l.b16 %v3526
      %v3551 = vunpack.c.l.b16 %v3527
      %v3552 = vunpack.c.l.b16 %v3528
      %v3553 = vunpack.c.l.b16 %v3529
      %v3554 = vunpack.c.l.b16 %v3530
      %v3555 = vunpack.c.l.b16 %v3531
      %v3556 = vunpack.c.l.b16 %v3532
      %v3557 = vunpack.c.l.b16 %v3533
      %v3558 = vunpack.c.l.b16 %v3534
      %v3559 = vpack.c.b16 %v3549, %v3548
      %v3560 = vpack.c.b16 %v3551, %v3550
      %v3561 = vpack.c.b16 %v3553, %v3552
      %v3562 = vpack.c.b16 %v3555, %v3554
      %v3563 = vpack.c.b16 %v3557, %v3556
      %v3564 = vpack.c.b16 %v3558, %v3558
      %v3566 = vshrl.u32 %v3559, 16
      %v3568 = vrot.slane %v3566, 1
      %v3569 = vshll.u32 %v3559, 16
      %v3571 = vrot.slane %v3569, 2
      %v3572 = vor.u32 %v3568, %v3571
      %v3574 = vshrl.u32 %v3560, 16
      %v3576 = vrot.slane %v3574, 1
      %v3577 = vshll.u32 %v3560, 16
      %v3579 = vrot.slane %v3577, 2
      %v3580 = vor.u32 %v3576, %v3579
      %v3581 = vsel %vm685, %v3572, %v3580
      %v3583 = vshrl.u32 %v3561, 16
      %v3585 = vrot.slane %v3583, 1
      %v3586 = vshll.u32 %v3561, 16
      %v3588 = vrot.slane %v3586, 2
      %v3589 = vor.u32 %v3585, %v3588
      %v3590 = vsel %vm685, %v3580, %v3589
      %v3592 = vshrl.u32 %v3562, 16
      %v3594 = vrot.slane %v3592, 1
      %v3595 = vshll.u32 %v3562, 16
      %v3597 = vrot.slane %v3595, 2
      %v3598 = vor.u32 %v3594, %v3597
      %v3599 = vsel %vm685, %v3589, %v3598
      %v3601 = vshrl.u32 %v3563, 16
      %v3603 = vrot.slane %v3601, 1
      %v3604 = vshll.u32 %v3563, 16
      %v3606 = vrot.slane %v3604, 2
      %v3607 = vor.u32 %v3603, %v3606
      %v3608 = vsel %vm685, %v3598, %v3607
      %v3610 = vshrl.u32 %v3564, 16
      %v3612 = vrot.slane %v3610, 1
      %v3613 = vshll.u32 %v3564, 16
      %v3615 = vrot.slane %v3613, 2
      %v3616 = vor.u32 %v3612, %v3615
      %v3617 = vsel %vm685, %v3607, %v3616
      %v3619 = vsel %vm447, %v3581, 0
      %v3622 = vsel %vm447, %v3590, 0
      %v3625 = vsel %vm447, %v3599, 0
      %v3628 = vsel %vm447, %v3608, 0
      %v3631 = vsel %vm447, %v3617, 0
      %v3634 = vsel %vm463, %v3536, 0
      %3636 = vmatprep.subr.bf16.mxu0 0
      %3637 = vmatpush1.bf16.msra.mxu0 %v3634
      %3638 = vmatprep.subr.bf16.mxu0 0
      %3639 = vmatpush1.bf16.msra.mxu0 0
      %3640 = vmatprep.subr.bf16.mxu0 0
      %3641 = vmatpush1.bf16.msra.mxu0 0
      %3642 = vmatprep.subr.bf16.mxu0 0
      %3643 = vmatpush1.bf16.msra.mxu0 0
      %3644 = vmatprep.subr.bf16.mxu0 0
      %3645 = vmatpush1.bf16.msra.mxu0 0
      %3646 = vmatprep.subr.bf16.mxu0 0
      %3647 = vmatpush1.bf16.msra.mxu0 0
      %3648 = vmatprep.subr.bf16.mxu0 0
      %3649 = vmatpush1.bf16.msra.mxu0 0
      %3650 = vmatprep.subr.bf16.mxu0 0
      %3651 = vmatpush1.bf16.msra.mxu0 0
      %3652 = vmatprep.subr.bf16.mxu0 0
      %3653 = vmatpush1.bf16.msra.mxu0 0
      %3654 = vmatprep.subr.bf16.mxu0 0
      %3655 = vmatpush1.bf16.msra.mxu0 0
      %3656 = vmatprep.subr.bf16.mxu0 0
      %3657 = vmatpush1.bf16.msra.mxu0 0
      %3658 = vmatprep.subr.bf16.mxu0 0
      %3659 = vmatpush1.bf16.msra.mxu0 0
      %3660 = vmatprep.subr.bf16.mxu0 0
      %3661 = vmatpush1.bf16.msra.mxu0 0
      %3662 = vmatprep.subr.bf16.mxu0 0
      %3663 = vmatpush1.bf16.msra.mxu0 0
      %3664 = vmatprep.subr.bf16.mxu0 0
      %3665 = vmatpush1.bf16.msra.mxu0 0
      %3666 = vmatprep.subr.bf16.mxu0 0
      %3667 = vmatpush1.bf16.msra.mxu0 0
      %3668 = vmatprep.mubr.bf16.mxu0 0
      %3669 = vmatmul.mubr.bf16.gmra.mrb[0].mxu0 %v3619
      %v3670 = vpop.f32.mrb[0].mxu0
      %v3671 = vadd.f32 0.0, %v3670
      %v3672 = vpop.f32.mrb[0].mxu0
      %v3673 = vpop.f32.mrb[0].mxu0
      %v3674 = vadd.f32 0.0, %v3673
      %v3675 = vpop.f32.mrb[0].mxu0
      %3676 = vmatprep.mubr.bf16.mxu0 0
      %3677 = vmatmul.mubr.bf16.gmra.mrb[0].mxu0 %v3622
      %v3678 = vpop.f32.mrb[0].mxu0
      %v3679 = vadd.f32 0.0, %v3678
      %v3680 = vpop.f32.mrb[0].mxu0
      %v3681 = vpop.f32.mrb[0].mxu0
      %v3682 = vadd.f32 0.0, %v3681
      %v3683 = vpop.f32.mrb[0].mxu0
      %3684 = vmatprep.mubr.bf16.mxu0 0
      %3685 = vmatmul.mubr.bf16.gmra.mrb[0].mxu0 %v3625
      %v3686 = vpop.f32.mrb[0].mxu0
      %v3687 = vadd.f32 0.0, %v3686
      %v3688 = vpop.f32.mrb[0].mxu0
      %v3689 = vpop.f32.mrb[0].mxu0
      %v3690 = vadd.f32 0.0, %v3689
      %v3691 = vpop.f32.mrb[0].mxu0
      %3692 = vmatprep.mubr.bf16.mxu0 0
      %3693 = vmatmul.mubr.bf16.gmra.mrb[0].mxu0 %v3628
      %v3694 = vpop.f32.mrb[0].mxu0
      %v3695 = vadd.f32 0.0, %v3694
      %v3696 = vpop.f32.mrb[0].mxu0
      %v3697 = vpop.f32.mrb[0].mxu0
      %v3698 = vadd.f32 0.0, %v3697
      %v3699 = vpop.f32.mrb[0].mxu0
      %3700 = vmatprep.mubr.bf16.mxu0 0
      %3701 = vmatmul.mubr.bf16.gmra.mrb[0].mxu0 %v3631
      %v3702 = vpop.f32.mrb[0].mxu0
      %v3703 = vadd.f32 0.0, %v3702
      %v3704 = vpop.f32.mrb[0].mxu0
      %v3705 = vpop.f32.mrb[0].mxu0
      %v3706 = vadd.f32 0.0, %v3705
      %v3707 = vpop.f32.mrb[0].mxu0
      %3708 = vdwg.mxu0
      %v3709 = vadd.f32 %v3514, %v3671
      %v3710 = vadd.f32 %v3515, %v3674
      %v3711 = vadd.f32 %v3516, %v3679
      %v3712 = vadd.f32 %v3517, %v3682
      %v3713 = vadd.f32 %v3518, %v3687
      %v3714 = vadd.f32 %v3519, %v3690
      %v3715 = vadd.f32 %v3520, %v3695
      %v3716 = vadd.f32 %v3521, %v3698
      %v3717 = vadd.f32 %v3522, %v3703
      %v3718 = vadd.f32 %v3523, %v3706
      %v3719 = vld [vmem:[%s372 + $0x8] sm:$0xc]
      %s3720 = scalar_lea.vmem %s4, 88
      %v3721 = vld [vmem:[%s3720] sm:$0xf]
      %v3723 = vunpack.c.l.b16 %v3719
      %v3724 = vpack.c.b16 %v3549, %v3723
      %v3725 = vrot.slane %v3724, 2
      %v3726 = vrot.slane %v3560, 2
      %v3727 = vsel %vm1021, %v3725, %v3726
      %v3728 = vrot.slane %v3561, 2
      %v3729 = vsel %vm1021, %v3726, %v3728
      %v3730 = vrot.slane %v3562, 2
      %v3731 = vsel %vm1021, %v3728, %v3730
      %v3732 = vrot.slane %v3563, 2
      %v3733 = vsel %vm1021, %v3730, %v3732
      %v3734 = vrot.slane %v3564, 2
      %v3735 = vsel %vm1021, %v3732, %v3734
      %v3737 = vsel %vm447, %v3727, 0
      %v3740 = vsel %vm447, %v3729, 0
      %v3743 = vsel %vm447, %v3731, 0
      %v3746 = vsel %vm447, %v3733, 0
      %v3749 = vsel %vm447, %v3735, 0
      %v3752 = vsel %vm463, %v3721, 0
      %3754 = vmatprep.subr.bf16.mxu0 0
      %3755 = vmatpush1.bf16.msra.mxu0 %v3752
      %3756 = vmatprep.subr.bf16.mxu0 0
      %3757 = vmatpush1.bf16.msra.mxu0 0
      %3758 = vmatprep.subr.bf16.mxu0 0
      %3759 = vmatpush1.bf16.msra.mxu0 0
      %3760 = vmatprep.subr.bf16.mxu0 0
      %3761 = vmatpush1.bf16.msra.mxu0 0
      %3762 = vmatprep.subr.bf16.mxu0 0
      %3763 = vmatpush1.bf16.msra.mxu0 0
      %3764 = vmatprep.subr.bf16.mxu0 0
      %3765 = vmatpush1.bf16.msra.mxu0 0
      %3766 = vmatprep.subr.bf16.mxu0 0
      %3767 = vmatpush1.bf16.msra.mxu0 0
      %3768 = vmatprep.subr.bf16.mxu0 0
      %3769 = vmatpush1.bf16.msra.mxu0 0
      %3770 = vmatprep.subr.bf16.mxu0 0
      %3771 = vmatpush1.bf16.msra.mxu0 0
      %3772 = vmatprep.subr.bf16.mxu0 0
      %3773 = vmatpush1.bf16.msra.mxu0 0
      %3774 = vmatprep.subr.bf16.mxu0 0
      %3775 = vmatpush1.bf16.msra.mxu0 0
      %3776 = vmatprep.subr.bf16.mxu0 0
      %3777 = vmatpush1.bf16.msra.mxu0 0
      %3778 = vmatprep.subr.bf16.mxu0 0
      %3779 = vmatpush1.bf16.msra.mxu0 0
      %3780 = vmatprep.subr.bf16.mxu0 0
      %3781 = vmatpush1.bf16.msra.mxu0 0
      %3782 = vmatprep.subr.bf16.mxu0 0
      %3783 = vmatpush1.bf16.msra.mxu0 0
      %3784 = vmatprep.subr.bf16.mxu0 0
      %3785 = vmatpush1.bf16.msra.mxu0 0
      %3786 = vmatprep.mubr.bf16.mxu0 0
      %3787 = vmatmul.mubr.bf16.gmra.mrb[0].mxu0 %v3737
      %v3788 = vpop.f32.mrb[0].mxu0
      %v3789 = vadd.f32 0.0, %v3788
      %v3790 = vpop.f32.mrb[0].mxu0
      %v3791 = vpop.f32.mrb[0].mxu0
      %v3792 = vadd.f32 0.0, %v3791
      %v3793 = vpop.f32.mrb[0].mxu0
      %3794 = vmatprep.mubr.bf16.mxu0 0
      %3795 = vmatmul.mubr.bf16.gmra.mrb[0].mxu0 %v3740
      %v3796 = vpop.f32.mrb[0].mxu0
      %v3797 = vadd.f32 0.0, %v3796
      %v3798 = vpop.f32.mrb[0].mxu0
      %v3799 = vpop.f32.mrb[0].mxu0
      %v3800 = vadd.f32 0.0, %v3799
      %v3801 = vpop.f32.mrb[0].mxu0
      %3802 = vmatprep.mubr.bf16.mxu0 0
      %3803 = vmatmul.mubr.bf16.gmra.mrb[0].mxu0 %v3743
      %v3804 = vpop.f32.mrb[0].mxu0
      %v3805 = vadd.f32 0.0, %v3804
      %v3806 = vpop.f32.mrb[0].mxu0
      %v3807 = vpop.f32.mrb[0].mxu0
      %v3808 = vadd.f32 0.0, %v3807
      %v3809 = vpop.f32.mrb[0].mxu0
      %3810 = vmatprep.mubr.bf16.mxu0 0
      %3811 = vmatmul.mubr.bf16.gmra.mrb[0].mxu0 %v3746
      %v3812 = vpop.f32.mrb[0].mxu0
      %v3813 = vadd.f32 0.0, %v3812
      %v3814 = vpop.f32.mrb[0].mxu0
      %v3815 = vpop.f32.mrb[0].mxu0
      %v3816 = vadd.f32 0.0, %v3815
      %v3817 = vpop.f32.mrb[0].mxu0
      %3818 = vmatprep.mubr.bf16.mxu0 0
      %3819 = vmatmul.mubr.bf16.gmra.mrb[0].mxu0 %v3749
      %v3820 = vpop.f32.mrb[0].mxu0
      %v3821 = vadd.f32 0.0, %v3820
      %v3822 = vpop.f32.mrb[0].mxu0
      %v3823 = vpop.f32.mrb[0].mxu0
      %v3824 = vadd.f32 0.0, %v3823
      %v3825 = vpop.f32.mrb[0].mxu0
      %3826 = vdwg.mxu0
      %v3827 = vadd.f32 %v3709, %v3789
      %v3828 = vadd.f32 %v3710, %v3792
      %v3829 = vadd.f32 %v3711, %v3797
      %v3830 = vadd.f32 %v3712, %v3800
      %v3831 = vadd.f32 %v3713, %v3805
      %v3832 = vadd.f32 %v3714, %v3808
      %v3833 = vadd.f32 %v3715, %v3813
      %v3834 = vadd.f32 %v3716, %v3816
      %v3835 = vadd.f32 %v3717, %v3821
      %v3836 = vadd.f32 %v3718, %v3824
      %v3837 = vld [vmem:[%s372 + $0x30] sm:$0x7]
      %s3838 = scalar_lea.vmem %s4, 92
      %v3839 = vld [vmem:[%s3838] sm:$0xf]
      %v3841 = vunpack.c.l.b16 %v3837
      %v3842 = vpack.c.b16 %v3841, %v3841
      %v3844 = vshrl.u32 %v3724, 16
      %v3846 = vrot.slane %v3844, 2
      %v3847 = vshll.u32 %v3724, 16
      %v3849 = vrot.slane %v3847, 3
      %v3850 = vor.u32 %v3846, %v3849
      %v3851 = vrot.slane %v3574, 2
      %v3852 = vrot.slane %v3577, 3
      %v3853 = vor.u32 %v3851, %v3852
      %v3854 = vsel %vm1140, %v3850, %v3853
      %v3855 = vrot.slane %v3583, 2
      %v3856 = vrot.slane %v3586, 3
      %v3857 = vor.u32 %v3855, %v3856
      %v3858 = vsel %vm1140, %v3853, %v3857
      %v3859 = vrot.slane %v3592, 2
      %v3860 = vrot.slane %v3595, 3
      %v3861 = vor.u32 %v3859, %v3860
      %v3862 = vsel %vm1140, %v3857, %v3861
      %v3863 = vrot.slane %v3601, 2
      %v3864 = vrot.slane %v3604, 3
      %v3865 = vor.u32 %v3863, %v3864
      %v3866 = vsel %vm1140, %v3861, %v3865
      %v3868 = vshrl.u32 %v3842, 16
      %v3870 = vrot.slane %v3868, 2
      %v3871 = vshll.u32 %v3842, 16
      %v3873 = vrot.slane %v3871, 3
      %v3874 = vor.u32 %v3870, %v3873
      %v3875 = vsel %vm1140, %v3865, %v3874
      %v3877 = vsel %vm447, %v3854, 0
      %v3880 = vsel %vm447, %v3858, 0
      %v3883 = vsel %vm447, %v3862, 0
      %v3886 = vsel %vm447, %v3866, 0
      %v3889 = vsel %vm447, %v3875, 0
      %v3892 = vsel %vm463, %v3839, 0
      %3894 = vmatprep.subr.bf16.mxu0 0
      %3895 = vmatpush1.bf16.msra.mxu0 %v3892
      %3896 = vmatprep.subr.bf16.mxu0 0
      %3897 = vmatpush1.bf16.msra.mxu0 0
      %3898 = vmatprep.subr.bf16.mxu0 0
      %3899 = vmatpush1.bf16.msra.mxu0 0
      %3900 = vmatprep.subr.bf16.mxu0 0
      %3901 = vmatpush1.bf16.msra.mxu0 0
      %3902 = vmatprep.subr.bf16.mxu0 0
      %3903 = vmatpush1.bf16.msra.mxu0 0
      %3904 = vmatprep.subr.bf16.mxu0 0
      %3905 = vmatpush1.bf16.msra.mxu0 0
      %3906 = vmatprep.subr.bf16.mxu0 0
      %3907 = vmatpush1.bf16.msra.mxu0 0
      %3908 = vmatprep.subr.bf16.mxu0 0
      %3909 = vmatpush1.bf16.msra.mxu0 0
      %3910 = vmatprep.subr.bf16.mxu0 0
      %3911 = vmatpush1.bf16.msra.mxu0 0
      %3912 = vmatprep.subr.bf16.mxu0 0
      %3913 = vmatpush1.bf16.msra.mxu0 0
      %3914 = vmatprep.subr.bf16.mxu0 0
      %3915 = vmatpush1.bf16.msra.mxu0 0
      %3916 = vmatprep.subr.bf16.mxu0 0
      %3917 = vmatpush1.bf16.msra.mxu0 0
      %3918 = vmatprep.subr.bf16.mxu0 0
      %3919 = vmatpush1.bf16.msra.mxu0 0
      %3920 = vmatprep.subr.bf16.mxu0 0
      %3921 = vmatpush1.bf16.msra.mxu0 0
      %3922 = vmatprep.subr.bf16.mxu0 0
      %3923 = vmatpush1.bf16.msra.mxu0 0
      %3924 = vmatprep.subr.bf16.mxu0 0
      %3925 = vmatpush1.bf16.msra.mxu0 0
      %3926 = vmatprep.mubr.bf16.mxu0 0
      %3927 = vmatmul.mubr.bf16.gmra.mrb[0].mxu0 %v3877
      %v3928 = vpop.f32.mrb[0].mxu0
      %v3929 = vadd.f32 0.0, %v3928
      %v3930 = vpop.f32.mrb[0].mxu0
      %v3931 = vpop.f32.mrb[0].mxu0
      %v3932 = vadd.f32 0.0, %v3931
      %v3933 = vpop.f32.mrb[0].mxu0
      %3934 = vmatprep.mubr.bf16.mxu0 0
      %3935 = vmatmul.mubr.bf16.gmra.mrb[0].mxu0 %v3880
      %v3936 = vpop.f32.mrb[0].mxu0
      %v3937 = vadd.f32 0.0, %v3936
      %v3938 = vpop.f32.mrb[0].mxu0
      %v3939 = vpop.f32.mrb[0].mxu0
      %v3940 = vadd.f32 0.0, %v3939
      %v3941 = vpop.f32.mrb[0].mxu0
      %3942 = vmatprep.mubr.bf16.mxu0 0
      %3943 = vmatmul.mubr.bf16.gmra.mrb[0].mxu0 %v3883
      %v3944 = vpop.f32.mrb[0].mxu0
      %v3945 = vadd.f32 0.0, %v3944
      %v3946 = vpop.f32.mrb[0].mxu0
      %v3947 = vpop.f32.mrb[0].mxu0
      %v3948 = vadd.f32 0.0, %v3947
      %v3949 = vpop.f32.mrb[0].mxu0
      %3950 = vmatprep.mubr.bf16.mxu0 0
      %3951 = vmatmul.mubr.bf16.gmra.mrb[0].mxu0 %v3886
      %v3952 = vpop.f32.mrb[0].mxu0
      %v3953 = vadd.f32 0.0, %v3952
      %v3954 = vpop.f32.mrb[0].mxu0
      %v3955 = vpop.f32.mrb[0].mxu0
      %v3956 = vadd.f32 0.0, %v3955
      %v3957 = vpop.f32.mrb[0].mxu0
      %3958 = vmatprep.mubr.bf16.mxu0 0
      %3959 = vmatmul.mubr.bf16.gmra.mrb[0].mxu0 %v3889
      %v3960 = vpop.f32.mrb[0].mxu0
      %v3961 = vadd.f32 0.0, %v3960
      %v3962 = vpop.f32.mrb[0].mxu0
      %v3963 = vpop.f32.mrb[0].mxu0
      %v3964 = vadd.f32 0.0, %v3963
      %v3965 = vpop.f32.mrb[0].mxu0
      %3966 = vdwg.mxu0
      %v3967 = vadd.f32 %v3827, %v3929
      %v3968 = vadd.f32 %v3828, %v3932
      %v3969 = vadd.f32 %v3829, %v3937
      %v3970 = vadd.f32 %v3830, %v3940
      %v3971 = vadd.f32 %v3831, %v3945
      %v3972 = vadd.f32 %v3832, %v3948
      %v3973 = vadd.f32 %v3833, %v3953
      %v3974 = vadd.f32 %v3834, %v3956
      %v3975 = vadd.f32 %v3835, %v3961
      %v3976 = vadd.f32 %v3836, %v3964
      %v3977 = vld [vmem:[%s372 + $0xc] sm:$0xc]
      %v3978 = vld [vmem:[%s372 + $0x10] sm:$0xf]
      %v3979 = vld [vmem:[%s372 + $0x14] sm:$0xf]
      %v3980 = vld [vmem:[%s372 + $0x18] sm:$0xf]
      %v3981 = vld [vmem:[%s372 + $0x1c] sm:$0xf]
      %v3982 = vld [vmem:[%s372 + $0x20] sm:$0xf]
      %v3983 = vld [vmem:[%s372 + $0x24] sm:$0xf]
      %v3984 = vld [vmem:[%s372 + $0x28] sm:$0xf]
      %v3985 = vld [vmem:[%s372 + $0x2c] sm:$0xf]
      %v3986 = vld [vmem:[%s372 + $0x30] sm:$0xf]
      %v3987 = vld [vmem:[%s372 + $0x34] sm:$0x7]
      %s3988 = scalar_lea.vmem %s4, 96
      %v3989 = vld [vmem:[%s3988] sm:$0xf]
      %v4001 = vunpack.c.l.b16 %v3977
      %v4002 = vunpack.c.l.b16 %v3978
      %v4003 = vunpack.c.l.b16 %v3979
      %v4004 = vunpack.c.l.b16 %v3980
      %v4005 = vunpack.c.l.b16 %v3981
      %v4006 = vunpack.c.l.b16 %v3982
      %v4007 = vunpack.c.l.b16 %v3983
      %v4008 = vunpack.c.l.b16 %v3984
      %v4009 = vunpack.c.l.b16 %v3985
      %v4010 = vunpack.c.l.b16 %v3986
      %v4011 = vunpack.c.l.b16 %v3987
      %v4012 = vpack.c.b16 %v4002, %v4001
      %v4013 = vpack.c.b16 %v4004, %v4003
      %v4014 = vpack.c.b16 %v4006, %v4005
      %v4015 = vpack.c.b16 %v4008, %v4007
      %v4016 = vpack.c.b16 %v4010, %v4009
      %v4017 = vpack.c.b16 %v4011, %v4011
      %v4019 = vshrl.u32 %v4012, 16
      %v4021 = vrot.slane %v4019, 2
      %v4022 = vshll.u32 %v4012, 16
      %v4024 = vrot.slane %v4022, 3
      %v4025 = vor.u32 %v4021, %v4024
      %v4027 = vshrl.u32 %v4013, 16
      %v4029 = vrot.slane %v4027, 2
      %v4030 = vshll.u32 %v4013, 16
      %v4032 = vrot.slane %v4030, 3
      %v4033 = vor.u32 %v4029, %v4032
      %v4034 = vsel %vm1140, %v4025, %v4033
      %v4036 = vshrl.u32 %v4014, 16
      %v4038 = vrot.slane %v4036, 2
      %v4039 = vshll.u32 %v4014, 16
      %v4041 = vrot.slane %v4039, 3
      %v4042 = vor.u32 %v4038, %v4041
      %v4043 = vsel %vm1140, %v4033, %v4042
      %v4045 = vshrl.u32 %v4015, 16
      %v4047 = vrot.slane %v4045, 2
      %v4048 = vshll.u32 %v4015, 16
      %v4050 = vrot.slane %v4048, 3
      %v4051 = vor.u32 %v4047, %v4050
      %v4052 = vsel %vm1140, %v4042, %v4051
      %v4054 = vshrl.u32 %v4016, 16
      %v4056 = vrot.slane %v4054, 2
      %v4057 = vshll.u32 %v4016, 16
      %v4059 = vrot.slane %v4057, 3
      %v4060 = vor.u32 %v4056, %v4059
      %v4061 = vsel %vm1140, %v4051, %v4060
      %v4063 = vshrl.u32 %v4017, 16
      %v4065 = vrot.slane %v4063, 2
      %v4066 = vshll.u32 %v4017, 16
      %v4068 = vrot.slane %v4066, 3
      %v4069 = vor.u32 %v4065, %v4068
      %v4070 = vsel %vm1140, %v4060, %v4069
      %v4072 = vsel %vm447, %v4034, 0
      %v4075 = vsel %vm447, %v4043, 0
      %v4078 = vsel %vm447, %v4052, 0
      %v4081 = vsel %vm447, %v4061, 0
      %v4084 = vsel %vm447, %v4070, 0
      %v4087 = vsel %vm463, %v3989, 0
      %4089 = vmatprep.subr.bf16.mxu0 0
      %4090 = vmatpush1.bf16.msra.mxu0 %v4087
      %4091 = vmatprep.subr.bf16.mxu0 0
      %4092 = vmatpush1.bf16.msra.mxu0 0
      %4093 = vmatprep.subr.bf16.mxu0 0
      %4094 = vmatpush1.bf16.msra.mxu0 0
      %4095 = vmatprep.subr.bf16.mxu0 0
      %4096 = vmatpush1.bf16.msra.mxu0 0
      %4097 = vmatprep.subr.bf16.mxu0 0
      %4098 = vmatpush1.bf16.msra.mxu0 0
      %4099 = vmatprep.subr.bf16.mxu0 0
      %4100 = vmatpush1.bf16.msra.mxu0 0
      %4101 = vmatprep.subr.bf16.mxu0 0
      %4102 = vmatpush1.bf16.msra.mxu0 0
      %4103 = vmatprep.subr.bf16.mxu0 0
      %4104 = vmatpush1.bf16.msra.mxu0 0
      %4105 = vmatprep.subr.bf16.mxu0 0
      %4106 = vmatpush1.bf16.msra.mxu0 0
      %4107 = vmatprep.subr.bf16.mxu0 0
      %4108 = vmatpush1.bf16.msra.mxu0 0
      %4109 = vmatprep.subr.bf16.mxu0 0
      %4110 = vmatpush1.bf16.msra.mxu0 0
      %4111 = vmatprep.subr.bf16.mxu0 0
      %4112 = vmatpush1.bf16.msra.mxu0 0
      %4113 = vmatprep.subr.bf16.mxu0 0
      %4114 = vmatpush1.bf16.msra.mxu0 0
      %4115 = vmatprep.subr.bf16.mxu0 0
      %4116 = vmatpush1.bf16.msra.mxu0 0
      %4117 = vmatprep.subr.bf16.mxu0 0
      %4118 = vmatpush1.bf16.msra.mxu0 0
      %4119 = vmatprep.subr.bf16.mxu0 0
      %4120 = vmatpush1.bf16.msra.mxu0 0
      %4121 = vmatprep.mubr.bf16.mxu0 0
      %4122 = vmatmul.mubr.bf16.gmra.mrb[0].mxu0 %v4072
      %v4123 = vpop.f32.mrb[0].mxu0
      %v4124 = vadd.f32 0.0, %v4123
      %v4125 = vpop.f32.mrb[0].mxu0
      %v4126 = vpop.f32.mrb[0].mxu0
      %v4127 = vadd.f32 0.0, %v4126
      %v4128 = vpop.f32.mrb[0].mxu0
      %4129 = vmatprep.mubr.bf16.mxu0 0
      %4130 = vmatmul.mubr.bf16.gmra.mrb[0].mxu0 %v4075
      %v4131 = vpop.f32.mrb[0].mxu0
      %v4132 = vadd.f32 0.0, %v4131
      %v4133 = vpop.f32.mrb[0].mxu0
      %v4134 = vpop.f32.mrb[0].mxu0
      %v4135 = vadd.f32 0.0, %v4134
      %v4136 = vpop.f32.mrb[0].mxu0
      %4137 = vmatprep.mubr.bf16.mxu0 0
      %4138 = vmatmul.mubr.bf16.gmra.mrb[0].mxu0 %v4078
      %v4139 = vpop.f32.mrb[0].mxu0
      %v4140 = vadd.f32 0.0, %v4139
      %v4141 = vpop.f32.mrb[0].mxu0
      %v4142 = vpop.f32.mrb[0].mxu0
      %v4143 = vadd.f32 0.0, %v4142
      %v4144 = vpop.f32.mrb[0].mxu0
      %4145 = vmatprep.mubr.bf16.mxu0 0
      %4146 = vmatmul.mubr.bf16.gmra.mrb[0].mxu0 %v4081
      %v4147 = vpop.f32.mrb[0].mxu0
      %v4148 = vadd.f32 0.0, %v4147
      %v4149 = vpop.f32.mrb[0].mxu0
      %v4150 = vpop.f32.mrb[0].mxu0
      %v4151 = vadd.f32 0.0, %v4150
      %v4152 = vpop.f32.mrb[0].mxu0
      %4153 = vmatprep.mubr.bf16.mxu0 0
      %4154 = vmatmul.mubr.bf16.gmra.mrb[0].mxu0 %v4084
      %v4155 = vpop.f32.mrb[0].mxu0
      %v4156 = vadd.f32 0.0, %v4155
      %v4157 = vpop.f32.mrb[0].mxu0
      %v4158 = vpop.f32.mrb[0].mxu0
      %v4159 = vadd.f32 0.0, %v4158
      %v4160 = vpop.f32.mrb[0].mxu0
      %4161 = vdwg.mxu0
      %v4162 = vadd.f32 %v3967, %v4124
      %v4163 = vadd.f32 %v3968, %v4127
      %v4164 = vadd.f32 %v3969, %v4132
      %v4165 = vadd.f32 %v3970, %v4135
      %v4166 = vadd.f32 %v3971, %v4140
      %v4167 = vadd.f32 %v3972, %v4143
      %v4168 = vadd.f32 %v3973, %v4148
      %v4169 = vadd.f32 %v3974, %v4151
      %v4170 = vadd.f32 %v3975, %v4156
      %v4171 = vadd.f32 %v3976, %v4159
      %v4172 = vld [vmem:[%s372 + $0xc] sm:$0x8]
      %s4173 = scalar_lea.vmem %s4, 100
      %v4174 = vld [vmem:[%s4173] sm:$0xf]
      %v4176 = vunpack.c.l.b16 %v4172
      %v4177 = vpack.c.b16 %v4002, %v4176
      %v4178 = vrot.slane %v4177, 3
      %v4179 = vrot.slane %v4013, 3
      %v4180 = vsel %vm1476, %v4178, %v4179
      %v4181 = vrot.slane %v4014, 3
      %v4182 = vsel %vm1476, %v4179, %v4181
      %v4183 = vrot.slane %v4015, 3
      %v4184 = vsel %vm1476, %v4181, %v4183
      %v4185 = vrot.slane %v4016, 3
      %v4186 = vsel %vm1476, %v4183, %v4185
      %v4187 = vrot.slane %v4017, 3
      %v4188 = vsel %vm1476, %v4185, %v4187
      %v4190 = vsel %vm447, %v4180, 0
      %v4193 = vsel %vm447, %v4182, 0
      %v4196 = vsel %vm447, %v4184, 0
      %v4199 = vsel %vm447, %v4186, 0
      %v4202 = vsel %vm447, %v4188, 0
      %v4205 = vsel %vm463, %v4174, 0
      %4207 = vmatprep.subr.bf16.mxu0 0
      %4208 = vmatpush1.bf16.msra.mxu0 %v4205
      %4209 = vmatprep.subr.bf16.mxu0 0
      %4210 = vmatpush1.bf16.msra.mxu0 0
      %4211 = vmatprep.subr.bf16.mxu0 0
      %4212 = vmatpush1.bf16.msra.mxu0 0
      %4213 = vmatprep.subr.bf16.mxu0 0
      %4214 = vmatpush1.bf16.msra.mxu0 0
      %4215 = vmatprep.subr.bf16.mxu0 0
      %4216 = vmatpush1.bf16.msra.mxu0 0
      %4217 = vmatprep.subr.bf16.mxu0 0
      %4218 = vmatpush1.bf16.msra.mxu0 0
      %4219 = vmatprep.subr.bf16.mxu0 0
      %4220 = vmatpush1.bf16.msra.mxu0 0
      %4221 = vmatprep.subr.bf16.mxu0 0
      %4222 = vmatpush1.bf16.msra.mxu0 0
      %4223 = vmatprep.subr.bf16.mxu0 0
      %4224 = vmatpush1.bf16.msra.mxu0 0
      %4225 = vmatprep.subr.bf16.mxu0 0
      %4226 = vmatpush1.bf16.msra.mxu0 0
      %4227 = vmatprep.subr.bf16.mxu0 0
      %4228 = vmatpush1.bf16.msra.mxu0 0
      %4229 = vmatprep.subr.bf16.mxu0 0
      %4230 = vmatpush1.bf16.msra.mxu0 0
      %4231 = vmatprep.subr.bf16.mxu0 0
      %4232 = vmatpush1.bf16.msra.mxu0 0
      %4233 = vmatprep.subr.bf16.mxu0 0
      %4234 = vmatpush1.bf16.msra.mxu0 0
      %4235 = vmatprep.subr.bf16.mxu0 0
      %4236 = vmatpush1.bf16.msra.mxu0 0
      %4237 = vmatprep.subr.bf16.mxu0 0
      %4238 = vmatpush1.bf16.msra.mxu0 0
      %4239 = vmatprep.mubr.bf16.mxu0 0
      %4240 = vmatmul.mubr.bf16.gmra.mrb[0].mxu0 %v4190
      %v4241 = vpop.f32.mrb[0].mxu0
      %v4242 = vadd.f32 0.0, %v4241
      %v4243 = vpop.f32.mrb[0].mxu0
      %v4244 = vpop.f32.mrb[0].mxu0
      %v4245 = vadd.f32 0.0, %v4244
      %v4246 = vpop.f32.mrb[0].mxu0
      %4247 = vmatprep.mubr.bf16.mxu0 0
      %4248 = vmatmul.mubr.bf16.gmra.mrb[0].mxu0 %v4193
      %v4249 = vpop.f32.mrb[0].mxu0
      %v4250 = vadd.f32 0.0, %v4249
      %v4251 = vpop.f32.mrb[0].mxu0
      %v4252 = vpop.f32.mrb[0].mxu0
      %v4253 = vadd.f32 0.0, %v4252
      %v4254 = vpop.f32.mrb[0].mxu0
      %4255 = vmatprep.mubr.bf16.mxu0 0
      %4256 = vmatmul.mubr.bf16.gmra.mrb[0].mxu0 %v4196
      %v4257 = vpop.f32.mrb[0].mxu0
      %v4258 = vadd.f32 0.0, %v4257
      %v4259 = vpop.f32.mrb[0].mxu0
      %v4260 = vpop.f32.mrb[0].mxu0
      %v4261 = vadd.f32 0.0, %v4260
      %v4262 = vpop.f32.mrb[0].mxu0
      %4263 = vmatprep.mubr.bf16.mxu0 0
      %4264 = vmatmul.mubr.bf16.gmra.mrb[0].mxu0 %v4199
      %v4265 = vpop.f32.mrb[0].mxu0
      %v4266 = vadd.f32 0.0, %v4265
      %v4267 = vpop.f32.mrb[0].mxu0
      %v4268 = vpop.f32.mrb[0].mxu0
      %v4269 = vadd.f32 0.0, %v4268
      %v4270 = vpop.f32.mrb[0].mxu0
      %4271 = vmatprep.mubr.bf16.mxu0 0
      %4272 = vmatmul.mubr.bf16.gmra.mrb[0].mxu0 %v4202
      %v4273 = vpop.f32.mrb[0].mxu0
      %v4274 = vadd.f32 0.0, %v4273
      %v4275 = vpop.f32.mrb[0].mxu0
      %v4276 = vpop.f32.mrb[0].mxu0
      %v4277 = vadd.f32 0.0, %v4276
      %v4278 = vpop.f32.mrb[0].mxu0
      %4279 = vdwg.mxu0
      %v4280 = vadd.f32 %v4162, %v4242
      %v4281 = vadd.f32 %v4163, %v4245
      %v4282 = vadd.f32 %v4164, %v4250
      %v4283 = vadd.f32 %v4165, %v4253
      %v4284 = vadd.f32 %v4166, %v4258
      %v4285 = vadd.f32 %v4167, %v4261
      %v4286 = vadd.f32 %v4168, %v4266
      %v4287 = vadd.f32 %v4169, %v4269
      %v4288 = vadd.f32 %v4170, %v4274
      %v4289 = vadd.f32 %v4171, %v4277
      %v4290 = vld [vmem:[%s372 + $0x34] sm:$0xf]
      %s4291 = scalar_lea.vmem %s4, 104
      %v4292 = vld [vmem:[%s4291] sm:$0xf]
      %v4294 = vunpack.c.l.b16 %v4290
      %v4295 = vpack.c.b16 %v4294, %v4294
      %v4297 = vshrl.u32 %v4177, 16
      %v4299 = vrot.slane %v4297, 3
      %v4300 = vshll.u32 %v4177, 16
      %v4302 = vrot.slane %v4300, 4
      %v4303 = vor.u32 %v4299, %v4302
      %v4304 = vrot.slane %v4027, 3
      %v4305 = vrot.slane %v4030, 4
      %v4306 = vor.u32 %v4304, %v4305
      %v4307 = vsel %vm1595, %v4303, %v4306
      %v4308 = vrot.slane %v4036, 3
      %v4309 = vrot.slane %v4039, 4
      %v4310 = vor.u32 %v4308, %v4309
      %v4311 = vsel %vm1595, %v4306, %v4310
      %v4312 = vrot.slane %v4045, 3
      %v4313 = vrot.slane %v4048, 4
      %v4314 = vor.u32 %v4312, %v4313
      %v4315 = vsel %vm1595, %v4310, %v4314
      %v4316 = vrot.slane %v4054, 3
      %v4317 = vrot.slane %v4057, 4
      %v4318 = vor.u32 %v4316, %v4317
      %v4319 = vsel %vm1595, %v4314, %v4318
      %v4321 = vshrl.u32 %v4295, 16
      %v4323 = vrot.slane %v4321, 3
      %v4324 = vshll.u32 %v4295, 16
      %v4326 = vrot.slane %v4324, 4
      %v4327 = vor.u32 %v4323, %v4326
      %v4328 = vsel %vm1595, %v4318, %v4327
      %v4330 = vsel %vm447, %v4307, 0
      %v4333 = vsel %vm447, %v4311, 0
      %v4336 = vsel %vm447, %v4315, 0
      %v4339 = vsel %vm447, %v4319, 0
      %v4342 = vsel %vm447, %v4328, 0
      %v4345 = vsel %vm463, %v4292, 0
      %4347 = vmatprep.subr.bf16.mxu0 0
      %4348 = vmatpush1.bf16.msra.mxu0 %v4345
      %4349 = vmatprep.subr.bf16.mxu0 0
      %4350 = vmatpush1.bf16.msra.mxu0 0
      %4351 = vmatprep.subr.bf16.mxu0 0
      %4352 = vmatpush1.bf16.msra.mxu0 0
      %4353 = vmatprep.subr.bf16.mxu0 0
      %4354 = vmatpush1.bf16.msra.mxu0 0
      %4355 = vmatprep.subr.bf16.mxu0 0
      %4356 = vmatpush1.bf16.msra.mxu0 0
      %4357 = vmatprep.subr.bf16.mxu0 0
      %4358 = vmatpush1.bf16.msra.mxu0 0
      %4359 = vmatprep.subr.bf16.mxu0 0
      %4360 = vmatpush1.bf16.msra.mxu0 0
      %4361 = vmatprep.subr.bf16.mxu0 0
      %4362 = vmatpush1.bf16.msra.mxu0 0
      %4363 = vmatprep.subr.bf16.mxu0 0
      %4364 = vmatpush1.bf16.msra.mxu0 0
      %4365 = vmatprep.subr.bf16.mxu0 0
      %4366 = vmatpush1.bf16.msra.mxu0 0
      %4367 = vmatprep.subr.bf16.mxu0 0
      %4368 = vmatpush1.bf16.msra.mxu0 0
      %4369 = vmatprep.subr.bf16.mxu0 0
      %4370 = vmatpush1.bf16.msra.mxu0 0
      %4371 = vmatprep.subr.bf16.mxu0 0
      %4372 = vmatpush1.bf16.msra.mxu0 0
      %4373 = vmatprep.subr.bf16.mxu0 0
      %4374 = vmatpush1.bf16.msra.mxu0 0
      %4375 = vmatprep.subr.bf16.mxu0 0
      %4376 = vmatpush1.bf16.msra.mxu0 0
      %4377 = vmatprep.subr.bf16.mxu0 0
      %4378 = vmatpush1.bf16.msra.mxu0 0
      %4379 = vmatprep.mubr.bf16.mxu0 0
      %4380 = vmatmul.mubr.bf16.gmra.mrb[0].mxu0 %v4330
      %v4381 = vpop.f32.mrb[0].mxu0
      %v4382 = vadd.f32 0.0, %v4381
      %v4383 = vpop.f32.mrb[0].mxu0
      %v4384 = vpop.f32.mrb[0].mxu0
      %v4385 = vadd.f32 0.0, %v4384
      %v4386 = vpop.f32.mrb[0].mxu0
      %4387 = vmatprep.mubr.bf16.mxu0 0
      %4388 = vmatmul.mubr.bf16.gmra.mrb[0].mxu0 %v4333
      %v4389 = vpop.f32.mrb[0].mxu0
      %v4390 = vadd.f32 0.0, %v4389
      %v4391 = vpop.f32.mrb[0].mxu0
      %v4392 = vpop.f32.mrb[0].mxu0
      %v4393 = vadd.f32 0.0, %v4392
      %v4394 = vpop.f32.mrb[0].mxu0
      %4395 = vmatprep.mubr.bf16.mxu0 0
      %4396 = vmatmul.mubr.bf16.gmra.mrb[0].mxu0 %v4336
      %v4397 = vpop.f32.mrb[0].mxu0
      %v4398 = vadd.f32 0.0, %v4397
      %v4399 = vpop.f32.mrb[0].mxu0
      %v4400 = vpop.f32.mrb[0].mxu0
      %v4401 = vadd.f32 0.0, %v4400
      %v4402 = vpop.f32.mrb[0].mxu0
      %4403 = vmatprep.mubr.bf16.mxu0 0
      %4404 = vmatmul.mubr.bf16.gmra.mrb[0].mxu0 %v4339
      %v4405 = vpop.f32.mrb[0].mxu0
      %v4406 = vadd.f32 0.0, %v4405
      %v4407 = vpop.f32.mrb[0].mxu0
      %v4408 = vpop.f32.mrb[0].mxu0
      %v4409 = vadd.f32 0.0, %v4408
      %v4410 = vpop.f32.mrb[0].mxu0
      %4411 = vmatprep.mubr.bf16.mxu0 0
      %4412 = vmatmul.mubr.bf16.gmra.mrb[0].mxu0 %v4342
      %v4413 = vpop.f32.mrb[0].mxu0
      %v4414 = vadd.f32 0.0, %v4413
      %v4415 = vpop.f32.mrb[0].mxu0
      %v4416 = vpop.f32.mrb[0].mxu0
      %v4417 = vadd.f32 0.0, %v4416
      %v4418 = vpop.f32.mrb[0].mxu0
      %4419 = vdwg.mxu0
      %v4420 = vadd.f32 %v4280, %v4382
      %v4421 = vadd.f32 %v4281, %v4385
      %v4422 = vadd.f32 %v4282, %v4390
      %v4423 = vadd.f32 %v4283, %v4393
      %v4424 = vadd.f32 %v4284, %v4398
      %v4425 = vadd.f32 %v4285, %v4401
      %v4426 = vadd.f32 %v4286, %v4406
      %v4427 = vadd.f32 %v4287, %v4409
      %v4428 = vadd.f32 %v4288, %v4414
      %v4429 = vadd.f32 %v4289, %v4417
      %v4430 = vpack.c.bf16 %v4421, %v4420
      %v4431 = vpack.c.bf16 %v4423, %v4422
      %v4432 = vpack.c.bf16 %v4425, %v4424
      %v4433 = vpack.c.bf16 %v4427, %v4426
      %v4434 = vpack.c.bf16 %v4429, %v4428
      %v4440 = vunpack.c.l.b16 %v4430
      %v4441 = vunpack.c.h.b16 %v4430
      %v4442 = vunpack.c.l.b16 %v4431
      %v4443 = vunpack.c.h.b16 %v4431
      %v4444 = vunpack.c.l.b16 %v4432
      %v4445 = vunpack.c.h.b16 %v4432
      %v4446 = vunpack.c.l.b16 %v4433
      %v4447 = vunpack.c.h.b16 %v4433
      %v4448 = vunpack.c.l.b16 %v4434
      %v4449 = vunpack.c.h.b16 %v4434
      %v4450 = vpack.c.b16 %v4440, %v4440
      %v4451 = vpack.c.b16 %v4441, %v4441
      %v4452 = vpack.c.b16 %v4442, %v4442
      %v4453 = vpack.c.b16 %v4443, %v4443
      %v4454 = vpack.c.b16 %v4444, %v4444
      %v4455 = vpack.c.b16 %v4445, %v4445
      %v4456 = vpack.c.b16 %v4446, %v4446
      %v4457 = vpack.c.b16 %v4447, %v4447
      %v4458 = vpack.c.b16 %v4448, %v4448
      %v4459 = vpack.c.b16 %v4449, %v4449
      %vm4470 = vcmask 60416
      %4471 = vst.msk [vmem:[%s382] sm:$0xf] %vm4470, %v4450
      %4472 = vst.msk [vmem:[%s382 + $0x4] sm:$0xf] %vm4470, %v4451
      %4473 = vst.msk [vmem:[%s382 + $0x8] sm:$0xf] %vm4470, %v4452
      %4474 = vst.msk [vmem:[%s382 + $0xc] sm:$0xf] %vm4470, %v4453
      %4475 = vst.msk [vmem:[%s382 + $0x10] sm:$0xf] %vm4470, %v4454
      %4476 = vst.msk [vmem:[%s382 + $0x14] sm:$0xf] %vm4470, %v4455
      %4477 = vst.msk [vmem:[%s382 + $0x18] sm:$0xf] %vm4470, %v4456
      %4478 = vst.msk [vmem:[%s382 + $0x1c] sm:$0xf] %vm4470, %v4457
      %4479 = vst.msk [vmem:[%s382 + $0x20] sm:$0xf] %vm4470, %v4458
      %4480 = vst.msk [vmem:[%s382 + $0x24] sm:$0xf] %vm4470, %v4459
      %v4481 = vld [vmem:[%s0] sm:$0xff]
      %v4482 = vld [vmem:[%s0 + $0x8] sm:$0xff]
      %v4483 = vld [vmem:[%s0 + $0x10] sm:$0xff]
      %v4484 = vld [vmem:[%s0 + $0x18] sm:$0xff]
      %v4485 = vld [vmem:[%s0 + $0x20] sm:$0xff]
      %v4486 = vld [vmem:[%s0 + $0x28] sm:$0xff]
      %v4487 = vld [vmem:[%s0 + $0x30] sm:$0xff]
      %v4488 = vld [vmem:[%s0 + $0x38] sm:$0xff]
      %v4489 = vld [vmem:[%s0 + $0x40] sm:$0xff]
      %v4490 = vld [vmem:[%s0 + $0x48] sm:$0xff]
      %4492 = vset.pattern.permute.xlu0 0
      %4493 = vperm.xlu0 %4492, %v4481
      %v4494 = vpop.permute.xlu0 %4493
      %4497 = vset.pattern.permute.xlu0 0
      %4498 = vperm.xlu0 %4497, %v4482
      %v4499 = vpop.permute.xlu0 %4498
      %4502 = vset.pattern.permute.xlu0 0
      %4503 = vperm.xlu0 %4502, %v4483
      %v4504 = vpop.permute.xlu0 %4503
      %4507 = vset.pattern.permute.xlu0 0
      %4508 = vperm.xlu0 %4507, %v4484
      %v4509 = vpop.permute.xlu0 %4508
      %4512 = vset.pattern.permute.xlu0 0
      %4513 = vperm.xlu0 %4512, %v4485
      %v4514 = vpop.permute.xlu0 %4513
      %4517 = vset.pattern.permute.xlu0 0
      %4518 = vperm.xlu0 %4517, %v4486
      %v4519 = vpop.permute.xlu0 %4518
      %4522 = vset.pattern.permute.xlu0 0
      %4523 = vperm.xlu0 %4522, %v4487
      %v4524 = vpop.permute.xlu0 %4523
      %4527 = vset.pattern.permute.xlu0 0
      %4528 = vperm.xlu0 %4527, %v4488
      %v4529 = vpop.permute.xlu0 %4528
      %4532 = vset.pattern.permute.xlu0 0
      %4533 = vperm.xlu0 %4532, %v4489
      %v4534 = vpop.permute.xlu0 %4533
      %4537 = vset.pattern.permute.xlu0 0
      %4538 = vperm.xlu0 %4537, %v4490
      %v4539 = vpop.permute.xlu0 %4538
      %v4541 = vmul.f32 %v4420, %v4494
      %v4542 = vmul.f32 %v4421, %v4499
      %v4543 = vmul.f32 %v4422, %v4504
      %v4544 = vmul.f32 %v4423, %v4509
      %v4545 = vmul.f32 %v4424, %v4514
      %v4546 = vmul.f32 %v4425, %v4519
      %v4547 = vmul.f32 %v4426, %v4524
      %v4548 = vmul.f32 %v4427, %v4529
      %v4549 = vmul.f32 %v4428, %v4534
      %v4550 = vmul.f32 %v4429, %v4539
      %v4551 = vsel %vm447, %v4541, 0.0
      %v4552 = vsel %vm447, %v4542, 0.0
      %v4553 = vadd.f32 %v4551, %v4552
      %v4554 = vsel %vm447, %v4543, 0.0
      %v4555 = vadd.f32 %v4553, %v4554
      %v4556 = vsel %vm447, %v4544, 0.0
      %v4557 = vadd.f32 %v4555, %v4556
      %v4558 = vsel %vm447, %v4545, 0.0
      %v4559 = vadd.f32 %v4557, %v4558
      %v4560 = vsel %vm447, %v4546, 0.0
      %v4561 = vadd.f32 %v4559, %v4560
      %v4562 = vsel %vm447, %v4547, 0.0
      %v4563 = vadd.f32 %v4561, %v4562
      %v4564 = vsel %vm447, %v4548, 0.0
      %v4565 = vadd.f32 %v4563, %v4564
      %v4566 = vsel %vm447, %v4549, 0.0
      %v4567 = vadd.f32 %v4565, %v4566
      %v4568 = vsel %vm447, %v4550, 0.0
      %v4569 = vadd.f32 %v4567, %v4568
      %v4570 = vrot.slane %v4569, 4
      %v4571 = vadd.f32 %v4569, %v4570
      %v4572 = vrot.slane %v4571, 2
      %v4573 = vadd.f32 %v4571, %v4572
      %v4574 = vrot.slane %v4573, 1
      %v4575 = vadd.f32 %v4573, %v4574
      %v4576 = vmul.f32 %v4575, 0.015625
      %v4577 = vsub.f32 %v4420, %v4576
      %v4578 = vsub.f32 %v4421, %v4576
      %v4579 = vsub.f32 %v4422, %v4576
      %v4580 = vsub.f32 %v4423, %v4576
      %v4581 = vsub.f32 %v4424, %v4576
      %v4582 = vsub.f32 %v4425, %v4576
      %v4583 = vsub.f32 %v4426, %v4576
      %v4584 = vsub.f32 %v4427, %v4576
      %v4585 = vsub.f32 %v4428, %v4576
      %v4586 = vsub.f32 %v4429, %v4576
      %v4587 = vmul.f32 %v4577, %v4494
      %v4588 = vmul.f32 %v4578, %v4499
      %v4589 = vmul.f32 %v4579, %v4504
      %v4590 = vmul.f32 %v4580, %v4509
      %v4591 = vmul.f32 %v4581, %v4514
      %v4592 = vmul.f32 %v4582, %v4519
      %v4593 = vmul.f32 %v4583, %v4524
      %v4594 = vmul.f32 %v4584, %v4529
      %v4595 = vmul.f32 %v4585, %v4534
      %v4596 = vmul.f32 %v4586, %v4539
      %vm4597 = vcmask 57344
      %4598 = vst.msk [vmem:[%s390] sm:$0x1] %vm4597, %v4575
      %v4599 = vmul.f32 %v4587, %v4587
      %v4600 = vmul.f32 %v4588, %v4588
      %v4601 = vmul.f32 %v4589, %v4589
      %v4602 = vmul.f32 %v4590, %v4590
      %v4603 = vmul.f32 %v4591, %v4591
      %v4604 = vmul.f32 %v4592, %v4592
      %v4605 = vmul.f32 %v4593, %v4593
      %v4606 = vmul.f32 %v4594, %v4594
      %v4607 = vmul.f32 %v4595, %v4595
      %v4608 = vmul.f32 %v4596, %v4596
      %v4609 = vsel %vm447, %v4599, 0.0
      %v4610 = vsel %vm447, %v4600, 0.0
      %v4611 = vadd.f32 %v4609, %v4610
      %v4612 = vsel %vm447, %v4601, 0.0
      %v4613 = vadd.f32 %v4611, %v4612
      %v4614 = vsel %vm447, %v4602, 0.0
      %v4615 = vadd.f32 %v4613, %v4614
      %v4616 = vsel %vm447, %v4603, 0.0
      %v4617 = vadd.f32 %v4615, %v4616
      %v4618 = vsel %vm447, %v4604, 0.0
      %v4619 = vadd.f32 %v4617, %v4618
      %v4620 = vsel %vm447, %v4605, 0.0
      %v4621 = vadd.f32 %v4619, %v4620
      %v4622 = vsel %vm447, %v4606, 0.0
      %v4623 = vadd.f32 %v4621, %v4622
      %v4624 = vsel %vm447, %v4607, 0.0
      %v4625 = vadd.f32 %v4623, %v4624
      %v4626 = vsel %vm447, %v4608, 0.0
      %v4627 = vadd.f32 %v4625, %v4626
      %v4628 = vrot.slane %v4627, 4
      %v4629 = vadd.f32 %v4627, %v4628
      %v4630 = vrot.slane %v4629, 2
      %v4631 = vadd.f32 %v4629, %v4630
      %v4632 = vrot.slane %v4631, 1
      %v4633 = vadd.f32 %v4631, %v4632
      %4634 = vst.msk [vmem:[%s390 + $0x1] sm:$0x1] %vm4597, %v4633
      %p4635 = scmp.lt.s32.totalorder %s22, 1
      %s4636 = scalar_select %p4635, %s22, 1
      %p4637 = scmp.lt.s32.totalorder %s23, 7
      %s4638 = scalar_select %p4637, %s23, 7
      %s4639 = smul.addr %s4638, 10
      %s4640 = smul.addr %s4636, 80
      %s4641 = sadd.s32 %s4639, %s4640
      %s4642 = smul.addr %s4641, 4
      %s4643 = scalar_lea.vmem %s5, %s4642
      %p4644 = scmp.lt.s32.totalorder %s22, 1
      %s4645 = scalar_select %p4644, %s22, 1
      %p4646 = scmp.lt.s32.totalorder %s23, 7
      %s4647 = scalar_select %p4646, %s23, 7
      %s4648 = smul.addr %s4645, 8
      %s4649 = sadd.s32 %s4647, %s4648
      %s4650 = smul.addr %s4649, 2
      %s4651 = scalar_lea.vmem %s6, %s4650
      // Predicated region
      $region41: #{basic_block_3d.4} parent=39 // pred_check
        %p4652 = pneg %p180
      $region42: #{basic_block_3d.4} parent=39 // pred_check_branch
        %4654 = sbr.rel (%p4652) target = $region44
      $region43: #{basic_block_3d.4} parent=39 // pred_region
        _
      $region44: #{basic_block_3d.4} parent=39 // pred_fallthru
        _
      // Predicated region
      $region45: #{basic_block_3d.4} parent=39 // pred_check
        %p4655 = pneg %p208
      $region46: #{basic_block_3d.4} parent=39 // pred_check_branch
        %4657 = sbr.rel (%p4655) target = $region48
      $region47: #{basic_block_3d.4} parent=39 // pred_region
        _
      $region48: #{basic_block_3d.4} parent=39 // pred_fallthru
        _
    $region40: #{basic_block_3d.4} parent=5 // pred_fallthru
      _
    %p4658 = scmp.le.s32.totalorder 2, %s13
    // Predicated region
    $region49: #{basic_block_3d.4} parent=5 // pred_check
      %p4659 = pneg %p4658
    $region50: #{basic_block_3d.4} parent=5 // pred_check_branch
      %4661 = sbr.rel (%p4659) target = $region52
    $region51: #{basic_block_3d.4} parent=5 // pred_region
      %s4662 = ssub.s32 %s13, 2
      // Predicated region
      $region53: #{basic_block_3d.4} parent=51 // pred_check
        %p4663 = pneg %p186
      $region54: #{basic_block_3d.4} parent=51 // pred_check_branch
        %4665 = sbr.rel (%p4663) target = $region56
      $region55: #{basic_block_3d.4} parent=51 // pred_region
        %p4666 = scmp.lt.s32.totalorder %s24, 1
        %s4667 = scalar_select %p4666, %s24, 1
        %p4668 = scmp.lt.s32.totalorder %s25, 7
        %s4669 = scalar_select %p4668, %s25, 7
        %s4670 = smul.addr %s4669, 10
        %s4671 = smul.addr %s4667, 80
        %s4672 = sadd.s32 %s4670, %s4671
        %s4673 = smul.addr %s4672, 4
        %s4674 = scalar_lea.vmem %s5, %s4673
      $region56: #{basic_block_3d.4} parent=51 // pred_fallthru
        _
      // Predicated region
      $region57: #{basic_block_3d.4} parent=51 // pred_check
        %p4675 = pneg %p214
      $region58: #{basic_block_3d.4} parent=51 // pred_check_branch
        %4677 = sbr.rel (%p4675) target = $region60
      $region59: #{basic_block_3d.4} parent=51 // pred_region
        %p4678 = scmp.lt.s32.totalorder %s24, 1
        %s4679 = scalar_select %p4678, %s24, 1
        %p4680 = scmp.lt.s32.totalorder %s25, 7
        %s4681 = scalar_select %p4680, %s25, 7
        %s4682 = smul.addr %s4679, 8
        %s4683 = sadd.s32 %s4681, %s4682
        %s4684 = smul.addr %s4683, 2
        %s4685 = scalar_lea.vmem %s6, %s4684
      $region60: #{basic_block_3d.4} parent=51 // pred_fallthru
        _
    $region52: #{basic_block_3d.4} parent=5 // pred_fallthru
      _
  $region6: #{basic_block_3d.4} parent=0 // loop_footer
    %s17 = sadd.s32 1, %s13
  $region7: #{basic_block_3d.4} parent=0 // loop_footer_branch
    %12 = sbr.rel target = $region3
  $region8: #{basic_block_3d.4} parent=0 // loop_exit
    _

</llo_original>
